<compile_context>
chip_gen: v7x
topology: tpu7x:2x2x1
jax: 0.10.0
libtpu: 0.0.40
codegen_flags: <defaults>
</compile_context>

<pallas_src>
import jax
import jax.numpy as jnp
from jax import lax
from jax.experimental import pallas as pl
from jax.experimental.pallas import tpu as pltpu

_TIME_TILE = 640  # conv-output rows per grid step (multiple of 8)


def _round_up(x, m):
    return ((x + m - 1) // m) * m


def _conv_relu_kernel(x_ref, w_ref, b_ref, o_ref, acc_ref):
    """One (batch, time-tile) grid step: full tap reduction + bias + ReLU.

    x_ref  : (1, L_halo, C_in)  whole zero-padded sequence of this batch elem
    w_ref  : (K, C_in, C_out)   full weight tensor (VMEM-resident, tap-major)
    b_ref  : (1, C_out)         bias
    o_ref  : (1, T, C_out)      conv+ReLU output tile
    acc_ref: (T, C_out) f32     VMEM accumulator
    """
    T = acc_ref.shape[0]
    K = w_ref.shape[0]
    t0 = pl.multiple_of(pl.program_id(1) * T, 8)  # tile start, sublane aligned

    # Fold bias into the accumulator init.
    acc_ref[...] = jnp.broadcast_to(b_ref[...], acc_ref.shape)

    def tap_body(k, carry):
        xk = x_ref[0, pl.ds(t0 + k, T), :]                       # (T, C_in)
        acc_ref[...] += jnp.dot(xk, w_ref[k],
                                preferred_element_type=jnp.float32)
        return carry

    lax.fori_loop(0, K, tap_body, 0)

    # Fused ReLU + single block store.
    o_ref[0] = jnp.maximum(acc_ref[...], 0.0).astype(o_ref.dtype)


def conv1d_relu(x, w, b, *, time_tile=_TIME_TILE):
    """Conv1d ("same" padding, stride 1) + ReLU, channels-last.

    x: (B, L, C_in) float32
    w: (C_out, C_in, K) float32  (PyTorch Conv1d weight layout)
    b: (C_out,) float32
    returns: (B, L, C_out) float32
    """
    B, L, C_in = x.shape
    C_out, _, K = w.shape
    pad = (K - 1) // 2

    T = min(time_tile, _round_up(L, 8))
    L_p = _round_up(L, T)
    n_t = L_p // T
    L_halo = L_p + K - 1  # = L_p + 2*pad

    # "same" conv padding + tile padding, all zeros (no tap replication in HBM).
    x_pad = jnp.pad(x.astype(jnp.float32),
                    ((0, 0), (pad, pad + (L_p - L)), (0, 0)))
    w_taps = jnp.transpose(w, (2, 1, 0)).astype(jnp.float32)  # (K, C_in, C_out)
    b2 = b.reshape(1, C_out).astype(jnp.float32)

    out = pl.pallas_call(
        _conv_relu_kernel,
        out_shape=jax.ShapeDtypeStruct((B, L_p, C_out), jnp.float32),
        grid_spec=pltpu.PrefetchScalarGridSpec(
            num_scalar_prefetch=0,
            grid=(B, n_t),
            in_specs=[
                # whole padded sequence of this batch element; constant over ti
                pl.BlockSpec((1, L_halo, C_in), lambda bi, ti: (bi, 0, 0)),
                # full weights, resident (constant index map -> fetched once)
                pl.BlockSpec((K, C_in, C_out), lambda bi, ti: (0, 0, 0)),
                pl.BlockSpec((1, C_out), lambda bi, ti: (0, 0)),
            ],
            out_specs=pl.BlockSpec((1, T, C_out), lambda bi, ti: (bi, ti, 0)),
            scratch_shapes=[pltpu.VMEM((T, C_out), jnp.float32)],
        ),
        compiler_params=pltpu.CompilerParams(
            dimension_semantics=("parallel", "parallel")),
    )(x_pad, w_taps, b2)

    return out[:, :L, :]  # drop tile padding rows


def maxpool5(h):
    """max_pool1d(kernel=5, stride=5) on (B, L, C); done in JAX glue
    (vectorized reshape+max; negligible bytes, avoids in-kernel sublane-split
    reshape)."""
    B, L, C = h.shape
    P = L // 5
    return jnp.max(h[:, :P * 5, :].reshape(B, P, 5, C), axis=2)


def pose_encoder_style_forward(y, params):
    """y: (B, seq_len, 20) -> (B, seq_len // 625, 32).

    params = ((w1,b1), (w2,b2), (w3,b3), (w4,b4)); conv4 is unused and conv3 is
    applied twice — exactly like the PyTorch forward().
    """
    (w1, b1), (w2, b2), (w3, b3), _unused_conv4 = params
    h = maxpool5(conv1d_relu(y, w1, b1))
    h = maxpool5(conv1d_relu(h, w2, b2))
    h = maxpool5(conv1d_relu(h, w3, b3))
    h = maxpool5(conv1d_relu(h, w3, b3))   # PyTorch forward reuses conv3 here
    return h


# ---------------------------- pure-JAX reference ----------------------------

def _ref_conv_relu_pool(x, w, b):
    B, L, C_in = x.shape
    C_out, _, K = w.shape
    pad = (K - 1) // 2
    x_pad = jnp.pad(x, ((0, 0), (pad, pad), (0, 0)))
    taps = jnp.stack([x_pad[:, k:k + L, :] for k in range(K)], axis=0)
    w_taps = jnp.transpose(w, (2, 1, 0))
    conv = jnp.einsum('kblc,kco->blo', taps, w_taps) + b[None, None, :]
    h = jax.nn.relu(conv)
    P = L // 5
    return jnp.max(h[:, :P * 5, :].reshape(B, P, 5, C_out), axis=2)


def ref_forward(y, params):
    (w1, b1), (w2, b2), (w3, b3), _ = params
    h = _ref_conv_relu_pool(y, w1, b1)
    h = _ref_conv_relu_pool(h, w2, b2)
    h = _ref_conv_relu_pool(h, w3, b3)
    h = _ref_conv_relu_pool(h, w3, b3)
    return h


# ------------------------------ param init ----------------------------------

def _init_conv(key, c_out, c_in, k):
    kw, kb = jax.random.split(key)
    bound = 1.0 / (c_in * k) ** 0.5
    w = jax.random.uniform(kw, (c_out, c_in, k), jnp.float32, -bound, bound)
    b = jax.random.uniform(kb, (c_out,), jnp.float32, -bound, bound)
    return w, b


if __name__ == "__main__":
    key = jax.random.PRNGKey(0)
    k_in, k1, k2, k3, k4 = jax.random.split(key, 5)

    B, SEQ, FEAT = 2, 1250, 20          # seq must be >= 625 for a non-empty output
    y = jax.random.normal(k_in, (B, SEQ, FEAT), jnp.float32)

    params = (
        _init_conv(k1, 32, 20, 101),    # conv1
        _init_conv(k2, 32, 32, 25),     # conv2
        _init_conv(k3, 32, 32, 25),     # conv3 (used twice in forward)
        _init_conv(k4, 32, 32, 25),     # conv4 (created but unused, as in PyTorch)
    )

    fwd = jax.jit(pose_encoder_style_forward)
    out = jax.block_until_ready(fwd(y, params))

    expected_shape = (B, SEQ // 625, 32)
    assert out.shape == expected_shape, (out.shape, expected_shape)

    ref = jax.block_until_ready(ref_forward(y, params))
    assert jnp.allclose(out, ref, atol=1e-3, rtol=1e-3), float(
        jnp.max(jnp.abs(out - ref)))

    print("KERNEL_OK")
</pallas_src>

<mosaic_0001>
module attributes {stable_mosaic.version = 11 : i64} {
  func.func @_conv_relu_kernel(%arg0: i32, %arg1: i32, %arg2: memref<1x1380x20xf32, #tpu.memory_space<vmem>>, %arg3: memref<101x20x32xf32, #tpu.memory_space<vmem>>, %arg4: memref<1x32xf32, #tpu.memory_space<vmem>>, %arg5: memref<1x640x32xf32, #tpu.memory_space<vmem>>, %arg6: memref<640x32xf32, #tpu.memory_space<vmem>>) attributes {dimension_semantics = [#tpu.dimension_semantics<parallel>, #tpu.dimension_semantics<parallel>], iteration_bounds = array<i64: 2, 2>, scalar_prefetch = 0 : i64, scratch_operands = 1 : i64, tpu.core_type = #tpu.core_type<tc>, window_params = [{transform_indices = @transform_0, window_bounds = array<i64: 1, 1380, 20>}, {pipeline_mode = #tpu.pipeline_mode<synchronous>, transform_indices = @transform_1, window_bounds = array<i64: 101, 20, 32>}, {pipeline_mode = #tpu.pipeline_mode<synchronous>, transform_indices = @transform_2, window_bounds = array<i64: 1, 32>}, {transform_indices = @transform_3, window_bounds = array<i64: 1, 640, 32>}]} {
    %c640_i32 = arith.constant 640 : i32
    %0 = arith.muli %arg1, %c640_i32 : i32
    %1 = tpu.assume_multiple %0, 8 : i32
    %c0 = arith.constant 0 : index
    %c0_0 = arith.constant 0 : index
    %2 = vector.load %arg4[%c0, %c0_0] : memref<1x32xf32, #tpu.memory_space<vmem>>, vector<1x32xf32>
    %3 = vector.shape_cast %2 : vector<1x32xf32> to vector<1x32xf32>
    %4 = vector.broadcast %3 : vector<1x32xf32> to vector<640x32xf32>
    %c0_1 = arith.constant 0 : index
    %c0_2 = arith.constant 0 : index
    %5 = vector.load %arg6[%c0_1, %c0_2] : memref<640x32xf32, #tpu.memory_space<vmem>>, vector<640x32xf32>
    tpu.vector_store %arg6[%c0_1, %c0_2], %4 {strides = array<i32>} : memref<640x32xf32, #tpu.memory_space<vmem>>, vector<640x32xf32>,
    %c0_i32 = arith.constant 0 : i32
    %c101_i32 = arith.constant 101 : i32
    %6 = arith.addi %c0_i32, %c101_i32 : i32
    %c1_i32 = arith.constant 1 : i32
    scf.for %arg7 = %c0_i32 to %6 step %c1_i32  : i32 {
      %13 = arith.addi %1, %arg7 : i32
      %c0_9 = arith.constant 0 : index
      %14 = arith.index_cast %13 : i32 to index
      %c0_10 = arith.constant 0 : index
      %15 = vector.load %arg2[%c0_9, %14, %c0_10] : memref<1x1380x20xf32, #tpu.memory_space<vmem>>, vector<1x640x20xf32>
      %16 = vector.shape_cast %15 : vector<1x640x20xf32> to vector<640x20xf32>
      %c0_11 = arith.constant 0 : index
      %c0_12 = arith.constant 0 : index
      %17 = vector.load %arg6[%c0_11, %c0_12] : memref<640x32xf32, #tpu.memory_space<vmem>>, vector<640x32xf32>
      %18 = arith.index_cast %arg7 : i32 to index
      %c0_13 = arith.constant 0 : index
      %c0_14 = arith.constant 0 : index
      %19 = vector.load %arg3[%18, %c0_13, %c0_14] : memref<101x20x32xf32, #tpu.memory_space<vmem>>, vector<1x20x32xf32>
      %20 = vector.shape_cast %19 : vector<1x20x32xf32> to vector<20x32xf32>
      %cst_15 = arith.constant dense<0.000000e+00> : vector<640x32xf32>
      %21 = tpu.matmul %16, %20, %cst_15 {dimension_numbers = #tpu.dot_dimension_numbers<[1], [0], [0], [1], [0, 0, 1, 1], [], []>} : vector<640x20xf32>, vector<20x32xf32>, vector<640x32xf32> -> vector<640x32xf32>
      %22 = arith.addf %17, %21 : vector<640x32xf32>
      %c0_16 = arith.constant 0 : index
      %c0_17 = arith.constant 0 : index
      %23 = vector.load %arg6[%c0_16, %c0_17] : memref<640x32xf32, #tpu.memory_space<vmem>>, vector<640x32xf32>
      tpu.vector_store %arg6[%c0_16, %c0_17], %22 {strides = array<i32>} : memref<640x32xf32, #tpu.memory_space<vmem>>, vector<640x32xf32>,
    }
    %c101_i32_3 = arith.constant 101 : i32
    %c0_4 = arith.constant 0 : index
    %c0_5 = arith.constant 0 : index
    %7 = vector.load %arg6[%c0_4, %c0_5] : memref<640x32xf32, #tpu.memory_space<vmem>>, vector<640x32xf32>
    %cst = arith.constant 0.000000e+00 : f32
    %8 = vector.broadcast %cst : f32 to vector<640x32xf32>
    %9 = arith.maximumf %7, %8 : vector<640x32xf32>
    %c0_6 = arith.constant 0 : index
    %c0_7 = arith.constant 0 : index
    %c0_8 = arith.constant 0 : index
    %10 = vector.load %arg5[%c0_6, %c0_7, %c0_8] : memref<1x640x32xf32, #tpu.memory_space<vmem>>, vector<1x640x32xf32>
    %11 = vector.shape_cast %10 : vector<1x640x32xf32> to vector<640x32xf32>
    %12 = vector.shape_cast %9 : vector<640x32xf32> to vector<1x640x32xf32>
    tpu.vector_store %arg5[%c0_6, %c0_7, %c0_8], %12 {strides = array<i32>} : memref<1x640x32xf32, #tpu.memory_space<vmem>>, vector<1x640x32xf32>,
    return
  }
  func.func @transform_0(%arg0: i32, %arg1: i32) -> (i32, i32, i32) {
    %c0_i32 = arith.constant 0 : i32
    %c0_i32_0 = arith.constant 0 : i32
    %c0_i32_1 = arith.constant 0 : i32
    return %arg0, %c0_i32, %c0_i32_0 : i32, i32, i32
  }
  func.func @transform_1(%arg0: i32, %arg1: i32) -> (i32, i32, i32) {
    %c0_i32 = arith.constant 0 : i32
    %c0_i32_0 = arith.constant 0 : i32
    %c0_i32_1 = arith.constant 0 : i32
    %c0_i32_2 = arith.constant 0 : i32
    return %c0_i32, %c0_i32_0, %c0_i32_1 : i32, i32, i32
  }
  func.func @transform_2(%arg0: i32, %arg1: i32) -> (i32, i32) {
    %c0_i32 = arith.constant 0 : i32
    %c0_i32_0 = arith.constant 0 : i32
    %c0_i32_1 = arith.constant 0 : i32
    return %c0_i32, %c0_i32_0 : i32, i32
  }
  func.func @transform_3(%arg0: i32, %arg1: i32) -> (i32, i32, i32) {
    %c0_i32 = arith.constant 0 : i32
    %c0_i32_0 = arith.constant 0 : i32
    return %arg0, %arg1, %c0_i32 : i32, i32, i32
  }
}

module attributes {stable_mosaic.version = 11 : i64} {
  func.func @_conv_relu_kernel(%arg0: i32, %arg1: i32, %arg2: memref<1x280x32xf32, #tpu.memory_space<vmem>>, %arg3: memref<25x32x32xf32, #tpu.memory_space<vmem>>, %arg4: memref<1x32xf32, #tpu.memory_space<vmem>>, %arg5: memref<1x256x32xf32, #tpu.memory_space<vmem>>, %arg6: memref<256x32xf32, #tpu.memory_space<vmem>>) attributes {dimension_semantics = [#tpu.dimension_semantics<parallel>, #tpu.dimension_semantics<parallel>], iteration_bounds = array<i64: 2, 1>, scalar_prefetch = 0 : i64, scratch_operands = 1 : i64, tpu.core_type = #tpu.core_type<tc>, window_params = [{transform_indices = @transform_0, window_bounds = array<i64: 1, 280, 32>}, {pipeline_mode = #tpu.pipeline_mode<synchronous>, transform_indices = @transform_1, window_bounds = array<i64: 25, 32, 32>}, {pipeline_mode = #tpu.pipeline_mode<synchronous>, transform_indices = @transform_2, window_bounds = array<i64: 1, 32>}, {transform_indices = @transform_3, window_bounds = array<i64: 1, 256, 32>}]} {
    %c256_i32 = arith.constant 256 : i32
    %0 = arith.muli %arg1, %c256_i32 : i32
    %1 = tpu.assume_multiple %0, 8 : i32
    %c0 = arith.constant 0 : index
    %c0_0 = arith.constant 0 : index
    %2 = vector.load %arg4[%c0, %c0_0] : memref<1x32xf32, #tpu.memory_space<vmem>>, vector<1x32xf32>
    %3 = vector.shape_cast %2 : vector<1x32xf32> to vector<1x32xf32>
    %4 = vector.broadcast %3 : vector<1x32xf32> to vector<256x32xf32>
    %c0_1 = arith.constant 0 : index
    %c0_2 = arith.constant 0 : index
    %5 = vector.load %arg6[%c0_1, %c0_2] : memref<256x32xf32, #tpu.memory_space<vmem>>, vector<256x32xf32>
    tpu.vector_store %arg6[%c0_1, %c0_2], %4 {strides = array<i32>} : memref<256x32xf32, #tpu.memory_space<vmem>>, vector<256x32xf32>,
    %c0_i32 = arith.constant 0 : i32
    %c25_i32 = arith.constant 25 : i32
    %6 = arith.addi %c0_i32, %c25_i32 : i32
    %c1_i32 = arith.constant 1 : i32
    scf.for %arg7 = %c0_i32 to %6 step %c1_i32  : i32 {
      %13 = arith.addi %1, %arg7 : i32
      %c0_9 = arith.constant 0 : index
      %14 = arith.index_cast %13 : i32 to index
      %c0_10 = arith.constant 0 : index
      %15 = vector.load %arg2[%c0_9, %14, %c0_10] : memref<1x280x32xf32, #tpu.memory_space<vmem>>, vector<1x256x32xf32>
      %16 = vector.shape_cast %15 : vector<1x256x32xf32> to vector<256x32xf32>
      %c0_11 = arith.constant 0 : index
      %c0_12 = arith.constant 0 : index
      %17 = vector.load %arg6[%c0_11, %c0_12] : memref<256x32xf32, #tpu.memory_space<vmem>>, vector<256x32xf32>
      %18 = arith.index_cast %arg7 : i32 to index
      %c0_13 = arith.constant 0 : index
      %c0_14 = arith.constant 0 : index
      %19 = vector.load %arg3[%18, %c0_13, %c0_14] : memref<25x32x32xf32, #tpu.memory_space<vmem>>, vector<1x32x32xf32>
      %20 = vector.shape_cast %19 : vector<1x32x32xf32> to vector<32x32xf32>
      %cst_15 = arith.constant dense<0.000000e+00> : vector<256x32xf32>
      %21 = tpu.matmul %16, %20, %cst_15 {dimension_numbers = #tpu.dot_dimension_numbers<[1], [0], [0], [1], [0, 0, 1, 1], [], []>} : vector<256x32xf32>, vector<32x32xf32>, vector<256x32xf32> -> vector<256x32xf32>
      %22 = arith.addf %17, %21 : vector<256x32xf32>
      %c0_16 = arith.constant 0 : index
      %c0_17 = arith.constant 0 : index
      %23 = vector.load %arg6[%c0_16, %c0_17] : memref<256x32xf32, #tpu.memory_space<vmem>>, vector<256x32xf32>
      tpu.vector_store %arg6[%c0_16, %c0_17], %22 {strides = array<i32>} : memref<256x32xf32, #tpu.memory_space<vmem>>, vector<256x32xf32>,
    }
    %c25_i32_3 = arith.constant 25 : i32
    %c0_4 = arith.constant 0 : index
    %c0_5 = arith.constant 0 : index
    %7 = vector.load %arg6[%c0_4, %c0_5] : memref<256x32xf32, #tpu.memory_space<vmem>>, vector<256x32xf32>
    %cst = arith.constant 0.000000e+00 : f32
    %8 = vector.broadcast %cst : f32 to vector<256x32xf32>
    %9 = arith.maximumf %7, %8 : vector<256x32xf32>
    %c0_6 = arith.constant 0 : index
    %c0_7 = arith.constant 0 : index
    %c0_8 = arith.constant 0 : index
    %10 = vector.load %arg5[%c0_6, %c0_7, %c0_8] : memref<1x256x32xf32, #tpu.memory_space<vmem>>, vector<1x256x32xf32>
    %11 = vector.shape_cast %10 : vector<1x256x32xf32> to vector<256x32xf32>
    %12 = vector.shape_cast %9 : vector<256x32xf32> to vector<1x256x32xf32>
    tpu.vector_store %arg5[%c0_6, %c0_7, %c0_8], %12 {strides = array<i32>} : memref<1x256x32xf32, #tpu.memory_space<vmem>>, vector<1x256x32xf32>,
    return
  }
  func.func @transform_0(%arg0: i32, %arg1: i32) -> (i32, i32, i32) {
    %c0_i32 = arith.constant 0 : i32
    %c0_i32_0 = arith.constant 0 : i32
    %c0_i32_1 = arith.constant 0 : i32
    return %arg0, %c0_i32, %c0_i32_0 : i32, i32, i32
  }
  func.func @transform_1(%arg0: i32, %arg1: i32) -> (i32, i32, i32) {
    %c0_i32 = arith.constant 0 : i32
    %c0_i32_0 = arith.constant 0 : i32
    %c0_i32_1 = arith.constant 0 : i32
    %c0_i32_2 = arith.constant 0 : i32
    return %c0_i32, %c0_i32_0, %c0_i32_1 : i32, i32, i32
  }
  func.func @transform_2(%arg0: i32, %arg1: i32) -> (i32, i32) {
    %c0_i32 = arith.constant 0 : i32
    %c0_i32_0 = arith.constant 0 : i32
    %c0_i32_1 = arith.constant 0 : i32
    return %c0_i32, %c0_i32_0 : i32, i32
  }
  func.func @transform_3(%arg0: i32, %arg1: i32) -> (i32, i32, i32) {
    %c0_i32 = arith.constant 0 : i32
    %c0_i32_0 = arith.constant 0 : i32
    return %arg0, %arg1, %c0_i32 : i32, i32, i32
  }
}

module attributes {stable_mosaic.version = 11 : i64} {
  func.func @_conv_relu_kernel(%arg0: i32, %arg1: i32, %arg2: memref<1x80x32xf32, #tpu.memory_space<vmem>>, %arg3: memref<25x32x32xf32, #tpu.memory_space<vmem>>, %arg4: memref<1x32xf32, #tpu.memory_space<vmem>>, %arg5: memref<1x56x32xf32, #tpu.memory_space<vmem>>, %arg6: memref<56x32xf32, #tpu.memory_space<vmem>>) attributes {dimension_semantics = [#tpu.dimension_semantics<parallel>, #tpu.dimension_semantics<parallel>], iteration_bounds = array<i64: 2, 1>, scalar_prefetch = 0 : i64, scratch_operands = 1 : i64, tpu.core_type = #tpu.core_type<tc>, window_params = [{transform_indices = @transform_0, window_bounds = array<i64: 1, 80, 32>}, {pipeline_mode = #tpu.pipeline_mode<synchronous>, transform_indices = @transform_1, window_bounds = array<i64: 25, 32, 32>}, {pipeline_mode = #tpu.pipeline_mode<synchronous>, transform_indices = @transform_2, window_bounds = array<i64: 1, 32>}, {transform_indices = @transform_3, window_bounds = array<i64: 1, 56, 32>}]} {
    %c56_i32 = arith.constant 56 : i32
    %0 = arith.muli %arg1, %c56_i32 : i32
    %1 = tpu.assume_multiple %0, 8 : i32
    %c0 = arith.constant 0 : index
    %c0_0 = arith.constant 0 : index
    %2 = vector.load %arg4[%c0, %c0_0] : memref<1x32xf32, #tpu.memory_space<vmem>>, vector<1x32xf32>
    %3 = vector.shape_cast %2 : vector<1x32xf32> to vector<1x32xf32>
    %4 = vector.broadcast %3 : vector<1x32xf32> to vector<56x32xf32>
    %c0_1 = arith.constant 0 : index
    %c0_2 = arith.constant 0 : index
    %5 = vector.load %arg6[%c0_1, %c0_2] : memref<56x32xf32, #tpu.memory_space<vmem>>, vector<56x32xf32>
    tpu.vector_store %arg6[%c0_1, %c0_2], %4 {strides = array<i32>} : memref<56x32xf32, #tpu.memory_space<vmem>>, vector<56x32xf32>,
    %c0_i32 = arith.constant 0 : i32
    %c25_i32 = arith.constant 25 : i32
    %6 = arith.addi %c0_i32, %c25_i32 : i32
    %c1_i32 = arith.constant 1 : i32
    scf.for %arg7 = %c0_i32 to %6 step %c1_i32  : i32 {
      %13 = arith.addi %1, %arg7 : i32
      %c0_9 = arith.constant 0 : index
      %14 = arith.index_cast %13 : i32 to index
      %c0_10 = arith.constant 0 : index
      %15 = vector.load %arg2[%c0_9, %14, %c0_10] : memref<1x80x32xf32, #tpu.memory_space<vmem>>, vector<1x56x32xf32>
      %16 = vector.shape_cast %15 : vector<1x56x32xf32> to vector<56x32xf32>
      %c0_11 = arith.constant 0 : index
      %c0_12 = arith.constant 0 : index
      %17 = vector.load %arg6[%c0_11, %c0_12] : memref<56x32xf32, #tpu.memory_space<vmem>>, vector<56x32xf32>
      %18 = arith.index_cast %arg7 : i32 to index
      %c0_13 = arith.constant 0 : index
      %c0_14 = arith.constant 0 : index
      %19 = vector.load %arg3[%18, %c0_13, %c0_14] : memref<25x32x32xf32, #tpu.memory_space<vmem>>, vector<1x32x32xf32>
      %20 = vector.shape_cast %19 : vector<1x32x32xf32> to vector<32x32xf32>
      %cst_15 = arith.constant dense<0.000000e+00> : vector<56x32xf32>
      %21 = tpu.matmul %16, %20, %cst_15 {dimension_numbers = #tpu.dot_dimension_numbers<[1], [0], [0], [1], [0, 0, 1, 1], [], []>} : vector<56x32xf32>, vector<32x32xf32>, vector<56x32xf32> -> vector<56x32xf32>
      %22 = arith.addf %17, %21 : vector<56x32xf32>
      %c0_16 = arith.constant 0 : index
      %c0_17 = arith.constant 0 : index
      %23 = vector.load %arg6[%c0_16, %c0_17] : memref<56x32xf32, #tpu.memory_space<vmem>>, vector<56x32xf32>
      tpu.vector_store %arg6[%c0_16, %c0_17], %22 {strides = array<i32>} : memref<56x32xf32, #tpu.memory_space<vmem>>, vector<56x32xf32>,
    }
    %c25_i32_3 = arith.constant 25 : i32
    %c0_4 = arith.constant 0 : index
    %c0_5 = arith.constant 0 : index
    %7 = vector.load %arg6[%c0_4, %c0_5] : memref<56x32xf32, #tpu.memory_space<vmem>>, vector<56x32xf32>
    %cst = arith.constant 0.000000e+00 : f32
    %8 = vector.broadcast %cst : f32 to vector<56x32xf32>
    %9 = arith.maximumf %7, %8 : vector<56x32xf32>
    %c0_6 = arith.constant 0 : index
    %c0_7 = arith.constant 0 : index
    %c0_8 = arith.constant 0 : index
    %10 = vector.load %arg5[%c0_6, %c0_7, %c0_8] : memref<1x56x32xf32, #tpu.memory_space<vmem>>, vector<1x56x32xf32>
    %11 = vector.shape_cast %10 : vector<1x56x32xf32> to vector<56x32xf32>
    %12 = vector.shape_cast %9 : vector<56x32xf32> to vector<1x56x32xf32>
    tpu.vector_store %arg5[%c0_6, %c0_7, %c0_8], %12 {strides = array<i32>} : memref<1x56x32xf32, #tpu.memory_space<vmem>>, vector<1x56x32xf32>,
    return
  }
  func.func @transform_0(%arg0: i32, %arg1: i32) -> (i32, i32, i32) {
    %c0_i32 = arith.constant 0 : i32
    %c0_i32_0 = arith.constant 0 : i32
    %c0_i32_1 = arith.constant 0 : i32
    return %arg0, %c0_i32, %c0_i32_0 : i32, i32, i32
  }
  func.func @transform_1(%arg0: i32, %arg1: i32) -> (i32, i32, i32) {
    %c0_i32 = arith.constant 0 : i32
    %c0_i32_0 = arith.constant 0 : i32
    %c0_i32_1 = arith.constant 0 : i32
    %c0_i32_2 = arith.constant 0 : i32
    return %c0_i32, %c0_i32_0, %c0_i32_1 : i32, i32, i32
  }
  func.func @transform_2(%arg0: i32, %arg1: i32) -> (i32, i32) {
    %c0_i32 = arith.constant 0 : i32
    %c0_i32_0 = arith.constant 0 : i32
    %c0_i32_1 = arith.constant 0 : i32
    return %c0_i32, %c0_i32_0 : i32, i32
  }
  func.func @transform_3(%arg0: i32, %arg1: i32) -> (i32, i32, i32) {
    %c0_i32 = arith.constant 0 : i32
    %c0_i32_0 = arith.constant 0 : i32
    return %arg0, %arg1, %c0_i32 : i32, i32, i32
  }
}

module attributes {stable_mosaic.version = 11 : i64} {
  func.func @_conv_relu_kernel(%arg0: i32, %arg1: i32, %arg2: memref<1x40x32xf32, #tpu.memory_space<vmem>>, %arg3: memref<25x32x32xf32, #tpu.memory_space<vmem>>, %arg4: memref<1x32xf32, #tpu.memory_space<vmem>>, %arg5: memref<1x16x32xf32, #tpu.memory_space<vmem>>, %arg6: memref<16x32xf32, #tpu.memory_space<vmem>>) attributes {dimension_semantics = [#tpu.dimension_semantics<parallel>, #tpu.dimension_semantics<parallel>], iteration_bounds = array<i64: 2, 1>, scalar_prefetch = 0 : i64, scratch_operands = 1 : i64, tpu.core_type = #tpu.core_type<tc>, window_params = [{transform_indices = @transform_0, window_bounds = array<i64: 1, 40, 32>}, {pipeline_mode = #tpu.pipeline_mode<synchronous>, transform_indices = @transform_1, window_bounds = array<i64: 25, 32, 32>}, {pipeline_mode = #tpu.pipeline_mode<synchronous>, transform_indices = @transform_2, window_bounds = array<i64: 1, 32>}, {transform_indices = @transform_3, window_bounds = array<i64: 1, 16, 32>}]} {
    %c16_i32 = arith.constant 16 : i32
    %0 = arith.muli %arg1, %c16_i32 : i32
    %1 = tpu.assume_multiple %0, 8 : i32
    %c0 = arith.constant 0 : index
    %c0_0 = arith.constant 0 : index
    %2 = vector.load %arg4[%c0, %c0_0] : memref<1x32xf32, #tpu.memory_space<vmem>>, vector<1x32xf32>
    %3 = vector.shape_cast %2 : vector<1x32xf32> to vector<1x32xf32>
    %4 = vector.broadcast %3 : vector<1x32xf32> to vector<16x32xf32>
    %c0_1 = arith.constant 0 : index
    %c0_2 = arith.constant 0 : index
    %5 = vector.load %arg6[%c0_1, %c0_2] : memref<16x32xf32, #tpu.memory_space<vmem>>, vector<16x32xf32>
    tpu.vector_store %arg6[%c0_1, %c0_2], %4 {strides = array<i32>} : memref<16x32xf32, #tpu.memory_space<vmem>>, vector<16x32xf32>,
    %c0_i32 = arith.constant 0 : i32
    %c25_i32 = arith.constant 25 : i32
    %6 = arith.addi %c0_i32, %c25_i32 : i32
    %c1_i32 = arith.constant 1 : i32
    scf.for %arg7 = %c0_i32 to %6 step %c1_i32  : i32 {
      %13 = arith.addi %1, %arg7 : i32
      %c0_9 = arith.constant 0 : index
      %14 = arith.index_cast %13 : i32 to index
      %c0_10 = arith.constant 0 : index
      %15 = vector.load %arg2[%c0_9, %14, %c0_10] : memref<1x40x32xf32, #tpu.memory_space<vmem>>, vector<1x16x32xf32>
      %16 = vector.shape_cast %15 : vector<1x16x32xf32> to vector<16x32xf32>
      %c0_11 = arith.constant 0 : index
      %c0_12 = arith.constant 0 : index
      %17 = vector.load %arg6[%c0_11, %c0_12] : memref<16x32xf32, #tpu.memory_space<vmem>>, vector<16x32xf32>
      %18 = arith.index_cast %arg7 : i32 to index
      %c0_13 = arith.constant 0 : index
      %c0_14 = arith.constant 0 : index
      %19 = vector.load %arg3[%18, %c0_13, %c0_14] : memref<25x32x32xf32, #tpu.memory_space<vmem>>, vector<1x32x32xf32>
      %20 = vector.shape_cast %19 : vector<1x32x32xf32> to vector<32x32xf32>
      %cst_15 = arith.constant dense<0.000000e+00> : vector<16x32xf32>
      %21 = tpu.matmul %16, %20, %cst_15 {dimension_numbers = #tpu.dot_dimension_numbers<[1], [0], [0], [1], [0, 0, 1, 1], [], []>} : vector<16x32xf32>, vector<32x32xf32>, vector<16x32xf32> -> vector<16x32xf32>
      %22 = arith.addf %17, %21 : vector<16x32xf32>
      %c0_16 = arith.constant 0 : index
      %c0_17 = arith.constant 0 : index
      %23 = vector.load %arg6[%c0_16, %c0_17] : memref<16x32xf32, #tpu.memory_space<vmem>>, vector<16x32xf32>
      tpu.vector_store %arg6[%c0_16, %c0_17], %22 {strides = array<i32>} : memref<16x32xf32, #tpu.memory_space<vmem>>, vector<16x32xf32>,
    }
    %c25_i32_3 = arith.constant 25 : i32
    %c0_4 = arith.constant 0 : index
    %c0_5 = arith.constant 0 : index
    %7 = vector.load %arg6[%c0_4, %c0_5] : memref<16x32xf32, #tpu.memory_space<vmem>>, vector<16x32xf32>
    %cst = arith.constant 0.000000e+00 : f32
    %8 = vector.broadcast %cst : f32 to vector<16x32xf32>
    %9 = arith.maximumf %7, %8 : vector<16x32xf32>
    %c0_6 = arith.constant 0 : index
    %c0_7 = arith.constant 0 : index
    %c0_8 = arith.constant 0 : index
    %10 = vector.load %arg5[%c0_6, %c0_7, %c0_8] : memref<1x16x32xf32, #tpu.memory_space<vmem>>, vector<1x16x32xf32>
    %11 = vector.shape_cast %10 : vector<1x16x32xf32> to vector<16x32xf32>
    %12 = vector.shape_cast %9 : vector<16x32xf32> to vector<1x16x32xf32>
    tpu.vector_store %arg5[%c0_6, %c0_7, %c0_8], %12 {strides = array<i32>} : memref<1x16x32xf32, #tpu.memory_space<vmem>>, vector<1x16x32xf32>,
    return
  }
  func.func @transform_0(%arg0: i32, %arg1: i32) -> (i32, i32, i32) {
    %c0_i32 = arith.constant 0 : i32
    %c0_i32_0 = arith.constant 0 : i32
    %c0_i32_1 = arith.constant 0 : i32
    return %arg0, %c0_i32, %c0_i32_0 : i32, i32, i32
  }
  func.func @transform_1(%arg0: i32, %arg1: i32) -> (i32, i32, i32) {
    %c0_i32 = arith.constant 0 : i32
    %c0_i32_0 = arith.constant 0 : i32
    %c0_i32_1 = arith.constant 0 : i32
    %c0_i32_2 = arith.constant 0 : i32
    return %c0_i32, %c0_i32_0, %c0_i32_1 : i32, i32, i32
  }
  func.func @transform_2(%arg0: i32, %arg1: i32) -> (i32, i32) {
    %c0_i32 = arith.constant 0 : i32
    %c0_i32_0 = arith.constant 0 : i32
    %c0_i32_1 = arith.constant 0 : i32
    return %c0_i32, %c0_i32_0 : i32, i32
  }
  func.func @transform_3(%arg0: i32, %arg1: i32) -> (i32, i32, i32) {
    %c0_i32 = arith.constant 0 : i32
    %c0_i32_0 = arith.constant 0 : i32
    return %arg0, %arg1, %c0_i32 : i32, i32, i32
  }
}

</mosaic_0001>

<llo_original>
// kernel: pose_encoder_style_forward.4
$region0: #{pose_encoder_style_forward.4}
  #allocation0 [shape = 'u32[]', space=smem, size = 0x4, offset = 0x4, fixed_abs, tag = 'smem constant byte address 0x4 - core index']
  #allocation1 [shape = 'u32[144,128]{1,0:T(1,128)}', space=vmem, size = 0x12000, scoped, tag = 'internal scratch']
  #allocation2 [shape = 'f32[640,32]{1,0:T(8,128)}', space=vmem, size = 0x50000, scoped, tag = 'scratch operand']
  %s0 = inlined_call_operand.vmem [shape: f32[2,1380,20], index: 0, kind: input, shape index: {}]
  %s1 = inlined_call_operand.vmem [shape: f32[101,20,32], index: 1, kind: input, shape index: {}]
  %s2 = inlined_call_operand.vmem [shape: f32[1,32], index: 2, kind: input, shape index: {}]
  %s3 = inlined_call_operand.vmem [shape: f32[2,1280,32], index: 3, kind: output, shape index: {}]
  %s4 = sld [smem:[#allocation0]]
  $region52: #{pose_encoder_style_forward.4} parent=0
    _
  %s6 = ssub.s32 1, %s4
  %s7 = scalar_select 0, %s6, %s4
  loop: start=0, step=1, limit=6
  $region2: #{pose_encoder_style_forward.4} parent=0 // loop_pre_header
    _
  $region3: #{pose_encoder_style_forward.4} parent=0 // loop_header
    %s9 = sphi 0, %s13
    %p10 = scmp.ge.s32.totalorder %s9, 6
    %s16 = sphi 0, %s28
    %s17 = sphi 0, %s24
    %s18 = sphi 0, %s16
    %s19 = sphi 0, %s17
    %s20 = sphi 0, %s18
    %s21 = sphi 0, %s19
    %s31 = sphi 0, %s33
    %s34 = sphi 0, %s31
    %s35 = sphi 0, %s34
    %s51 = sphi 0, %s35
    %s55 = sphi 0, %s55
    %s57 = sphi 0, %s55
    %s58 = sphi 0, %s57
    %s72 = sphi 0, %s58
    %s76 = sphi 0, %s76
    %s78 = sphi 0, %s76
    %s79 = sphi 0, %s78
    %s93 = sphi 0, %s79
    %s101 = sphi 0, %s103
    %s104 = sphi 0, %s101
    %s105 = sphi 0, %s104
    %s121 = sphi 0, %s105
  $region4: #{pose_encoder_style_forward.4} parent=0 // loop_header_branch
    %12 = sbr.rel (%p10) target = $region8
  $region5: #{pose_encoder_style_forward.4} parent=0 // loop_body
    %s14 = ssub.s32 %s9, 1
    %s15 = ssub.s32 %s9, 2
    %s22 = sadd.s32 1, %s17
    %p23 = scmp.ge.s32.totalorder %s22, 2
    %s24 = scalar_select %p23, 0, %s22
    %s25 = sadd.s32 1, %s16
    %s26 = scalar_select %p23, %s25, %s16
    %p27 = scmp.ge.s32.totalorder %s26, 2
    %s28 = scalar_select %p27, 0, %s26
    %s29 = ssub.s32 %s16, %s28
    %p30 = scmp.eq.s32.totalorder %s29, 0
    %s32 = sadd.s32 %s31, 1
    %s33 = scalar_select %p30, %s31, %s32
    %p36 = pneg %p30
    %p37 = scmp.eq.s32.totalorder %s9, 3
    %p38 = por %p36, %p37
    %p39 = scmp.ne.s32.totalorder %s31, %s34
    %p40 = scmp.eq.s32.totalorder %s9, 0
    %p41 = por %p39, %p40
    %p42 = scmp.ne.s32.totalorder %s31, %s34
    %p43 = scmp.eq.s32.totalorder %s14, 3
    %p44 = por %p42, %p43
    %p45 = scmp.ne.s32.totalorder %s34, %s35
    %p46 = scmp.eq.s32.totalorder %s14, 0
    %p47 = por %p45, %p46
    %p48 = scmp.ne.s32.totalorder %s34, %s35
    %p49 = scmp.eq.s32.totalorder %s15, 3
    %p50 = por %p48, %p49
    %p52 = scmp.ne.s32.totalorder %s35, %s51
    %p53 = scmp.eq.s32.totalorder %s15, 0
    %p54 = por %p52, %p53
    %s56 = sadd.s32 %s55, 1
    %p59 = scmp.eq.s32.totalorder %s9, 3
    %p60 = scmp.ne.s32.totalorder %s55, %s57
    %p61 = scmp.eq.s32.totalorder %s9, 0
    %p62 = por %p60, %p61
    %p63 = scmp.ne.s32.totalorder %s55, %s57
    %p64 = scmp.eq.s32.totalorder %s14, 3
    %p65 = por %p63, %p64
    %p66 = scmp.ne.s32.totalorder %s57, %s58
    %p67 = scmp.eq.s32.totalorder %s14, 0
    %p68 = por %p66, %p67
    %p69 = scmp.ne.s32.totalorder %s57, %s58
    %p70 = scmp.eq.s32.totalorder %s15, 3
    %p71 = por %p69, %p70
    %p73 = scmp.ne.s32.totalorder %s58, %s72
    %p74 = scmp.eq.s32.totalorder %s15, 0
    %p75 = por %p73, %p74
    %s77 = sadd.s32 %s76, 1
    %p80 = scmp.eq.s32.totalorder %s9, 3
    %p81 = scmp.ne.s32.totalorder %s76, %s78
    %p82 = scmp.eq.s32.totalorder %s9, 0
    %p83 = por %p81, %p82
    %p84 = scmp.ne.s32.totalorder %s76, %s78
    %p85 = scmp.eq.s32.totalorder %s14, 3
    %p86 = por %p84, %p85
    %p87 = scmp.ne.s32.totalorder %s78, %s79
    %p88 = scmp.eq.s32.totalorder %s14, 0
    %p89 = por %p87, %p88
    %p90 = scmp.ne.s32.totalorder %s78, %s79
    %p91 = scmp.eq.s32.totalorder %s15, 3
    %p92 = por %p90, %p91
    %p94 = scmp.ne.s32.totalorder %s79, %s93
    %p95 = scmp.eq.s32.totalorder %s15, 0
    %p96 = por %p94, %p95
    %s97 = ssub.s32 %s16, %s28
    %s98 = ssub.s32 %s17, %s24
    %s99 = sor.u32 %s97, %s98
    %p100 = scmp.eq.s32.totalorder %s99, 0
    %s102 = sadd.s32 %s101, 1
    %s103 = scalar_select %p100, %s101, %s102
    %p106 = pneg %p100
    %p107 = scmp.eq.s32.totalorder %s9, 3
    %p108 = por %p106, %p107
    %p109 = scmp.ne.s32.totalorder %s101, %s104
    %p110 = scmp.eq.s32.totalorder %s9, 0
    %p111 = por %p109, %p110
    %p112 = scmp.ne.s32.totalorder %s101, %s104
    %p113 = scmp.eq.s32.totalorder %s14, 3
    %p114 = por %p112, %p113
    %p115 = scmp.ne.s32.totalorder %s104, %s105
    %p116 = scmp.eq.s32.totalorder %s14, 0
    %p117 = por %p115, %p116
    %p118 = scmp.ne.s32.totalorder %s104, %s105
    %p119 = scmp.eq.s32.totalorder %s15, 3
    %p120 = por %p118, %p119
    %p122 = scmp.ne.s32.totalorder %s105, %s121
    %p123 = scmp.eq.s32.totalorder %s15, 0
    %p124 = por %p122, %p123
    %p125 = scmp.le.s32.totalorder 1, %s9
    %p126 = scmp.lt.s32.totalorder %s9, 5
    %p127 = pnand %p125, %p126
    %p128 = pneg %p127
    // Predicated region
    $region9: #{pose_encoder_style_forward.4} parent=5 // pred_check
      _
    $region10: #{pose_encoder_style_forward.4} parent=5 // pred_check_branch
      %130 = sbr.rel (%p127) target = $region12
    $region11: #{pose_encoder_style_forward.4} parent=5 // pred_region
      %s131 = ssub.s32 %s9, 1
      // Predicated region
      $region13: #{pose_encoder_style_forward.4} parent=11 // pred_check
        %p132 = pneg %p68
      $region14: #{pose_encoder_style_forward.4} parent=11 // pred_check_branch
        %134 = sbr.rel (%p132) target = $region16
      $region15: #{pose_encoder_style_forward.4} parent=11 // pred_region
        _
      $region16: #{pose_encoder_style_forward.4} parent=11 // pred_fallthru
        _
      // Predicated region
      $region17: #{pose_encoder_style_forward.4} parent=11 // pred_check
        %p135 = pneg %p89
      $region18: #{pose_encoder_style_forward.4} parent=11 // pred_check_branch
        %137 = sbr.rel (%p135) target = $region20
      $region19: #{pose_encoder_style_forward.4} parent=11 // pred_region
        _
      $region20: #{pose_encoder_style_forward.4} parent=11 // pred_fallthru
        _
    $region12: #{pose_encoder_style_forward.4} parent=5 // pred_fallthru
      _
    %p138 = scmp.lt.s32.totalorder %s9, 4
    // Predicated region
    $region21: #{pose_encoder_style_forward.4} parent=5 // pred_check
      %p139 = pneg %p138
    $region22: #{pose_encoder_style_forward.4} parent=5 // pred_check_branch
      %141 = sbr.rel (%p139) target = $region24
    $region23: #{pose_encoder_style_forward.4} parent=5 // pred_region
      // Predicated region
      $region25: #{pose_encoder_style_forward.4} parent=23 // pred_check
        %p142 = pneg %p41
      $region26: #{pose_encoder_style_forward.4} parent=23 // pred_check_branch
        %144 = sbr.rel (%p142) target = $region28
      $region27: #{pose_encoder_style_forward.4} parent=23 // pred_region
        %p145 = scmp.lt.s32.totalorder %s16, 1
        %s146 = scalar_select %p145, %s16, 1
        %s147 = smul.addr %s146, 173
        %s148 = smul.addr %s147, 8
        %s149 = scalar_lea.vmem %s0, %s148
      $region28: #{pose_encoder_style_forward.4} parent=23 // pred_fallthru
        _
    $region24: #{pose_encoder_style_forward.4} parent=5 // pred_fallthru
      _
    %p150 = scmp.le.s32.totalorder 1, %s9
    %p151 = scmp.lt.s32.totalorder %s9, 5
    %p152 = pnand %p150, %p151
    %p153 = pneg %p152
    // Predicated region
    $region29: #{pose_encoder_style_forward.4} parent=5 // pred_check
      _
    $region30: #{pose_encoder_style_forward.4} parent=5 // pred_check_branch
      %155 = sbr.rel (%p152) target = $region32
    $region31: #{pose_encoder_style_forward.4} parent=5 // pred_region
      %s156 = ssub.s32 %s9, 1
      %p157 = scmp.lt.s32.totalorder %s18, 1
      %s158 = scalar_select %p157, %s18, 1
      %s159 = smul.addr %s158, 173
      %s160 = smul.addr %s159, 8
      %s161 = scalar_lea.vmem %s0, %s160
      %p162 = pneg %p47
      %p163 = pneg %p44
      %p164 = pneg %p68
      %p165 = pneg %p65
      %p166 = pneg %p89
      %p167 = pneg %p86
      %p168 = pneg %p117
      %p169 = pneg %p114
      %s170 = smul.u32 80, %s19
      %p171 = scmp.lt.s32.totalorder %s18, 1
      %s172 = scalar_select %p171, %s18, 1
      %p173 = scmp.lt.s32.totalorder %s170, 159
      %s174 = scalar_select %p173, %s170, 159
      %s175 = smul.addr %s172, 160
      %s176 = sadd.s32 %s174, %s175
      %s177 = smul.addr %s176, 8
      %s178 = scalar_lea.vmem %s3, %s177
      %p179 = scmp.lt.s32.totalorder %s18, 1
      %s180 = scalar_select %p179, %s18, 1
      %s181 = smul.addr %s180, 173
      %s182 = smul.addr %s181, 8
      %s183 = scalar_lea.vmem %s0, %s182
      %s184 = smul.u32 80, %s19
      %p185 = scmp.lt.s32.totalorder %s18, 1
      %s186 = scalar_select %p185, %s18, 1
      %p187 = scmp.lt.s32.totalorder %s184, 159
      %s188 = scalar_select %p187, %s184, 159
      %s189 = smul.addr %s186, 160
      %s190 = sadd.s32 %s188, %s189
      %s191 = smul.addr %s190, 8
      %s192 = scalar_lea.vmem %s3, %s191
      %s193 = smul.u32 80, %s19
      %s194 = smul.u32 %s19, 640
      %v195 = vld [vmem:[%s2] sm:$0x1]
      %v197 = vlaneseq
      %v198 = vshrl.u32 %v197, 7
      %v199 = vsub.s32 0, %v198
      %v200 = vrot.slane %v195, %v199
      %vm202 = vcmask 261120
      %203 = vst.msk [vmem:[#allocation2] sm:$0xff] %vm202, %v200
      %204 = vst.msk [vmem:[#allocation2 + $0x8] sm:$0xff] %vm202, %v200
      %205 = vst.msk [vmem:[#allocation2 + $0x10] sm:$0xff] %vm202, %v200
      %206 = vst.msk [vmem:[#allocation2 + $0x18] sm:$0xff] %vm202, %v200
      %207 = vst.msk [vmem:[#allocation2 + $0x20] sm:$0xff] %vm202, %v200
      %208 = vst.msk [vmem:[#allocation2 + $0x28] sm:$0xff] %vm202, %v200
      %209 = vst.msk [vmem:[#allocation2 + $0x30] sm:$0xff] %vm202, %v200
      %210 = vst.msk [vmem:[#allocation2 + $0x38] sm:$0xff] %vm202, %v200
      %211 = vst.msk [vmem:[#allocation2 + $0x40] sm:$0xff] %vm202, %v200
      %212 = vst.msk [vmem:[#allocation2 + $0x48] sm:$0xff] %vm202, %v200
      %213 = vst.msk [vmem:[#allocation2 + $0x50] sm:$0xff] %vm202, %v200
      %214 = vst.msk [vmem:[#allocation2 + $0x58] sm:$0xff] %vm202, %v200
      %215 = vst.msk [vmem:[#allocation2 + $0x60] sm:$0xff] %vm202, %v200
      %216 = vst.msk [vmem:[#allocation2 + $0x68] sm:$0xff] %vm202, %v200
      %217 = vst.msk [vmem:[#allocation2 + $0x70] sm:$0xff] %vm202, %v200
      %218 = vst.msk [vmem:[#allocation2 + $0x78] sm:$0xff] %vm202, %v200
      %219 = vst.msk [vmem:[#allocation2 + $0x80] sm:$0xff] %vm202, %v200
      %220 = vst.msk [vmem:[#allocation2 + $0x88] sm:$0xff] %vm202, %v200
      %221 = vst.msk [vmem:[#allocation2 + $0x90] sm:$0xff] %vm202, %v200
      %222 = vst.msk [vmem:[#allocation2 + $0x98] sm:$0xff] %vm202, %v200
      %223 = vst.msk [vmem:[#allocation2 + $0xa0] sm:$0xff] %vm202, %v200
      %224 = vst.msk [vmem:[#allocation2 + $0xa8] sm:$0xff] %vm202, %v200
      %225 = vst.msk [vmem:[#allocation2 + $0xb0] sm:$0xff] %vm202, %v200
      %226 = vst.msk [vmem:[#allocation2 + $0xb8] sm:$0xff] %vm202, %v200
      %227 = vst.msk [vmem:[#allocation2 + $0xc0] sm:$0xff] %vm202, %v200
      %228 = vst.msk [vmem:[#allocation2 + $0xc8] sm:$0xff] %vm202, %v200
      %229 = vst.msk [vmem:[#allocation2 + $0xd0] sm:$0xff] %vm202, %v200
      %230 = vst.msk [vmem:[#allocation2 + $0xd8] sm:$0xff] %vm202, %v200
      %231 = vst.msk [vmem:[#allocation2 + $0xe0] sm:$0xff] %vm202, %v200
      %232 = vst.msk [vmem:[#allocation2 + $0xe8] sm:$0xff] %vm202, %v200
      %233 = vst.msk [vmem:[#allocation2 + $0xf0] sm:$0xff] %vm202, %v200
      %234 = vst.msk [vmem:[#allocation2 + $0xf8] sm:$0xff] %vm202, %v200
      %235 = vst.msk [vmem:[#allocation2 + $0x100] sm:$0xff] %vm202, %v200
      %236 = vst.msk [vmem:[#allocation2 + $0x108] sm:$0xff] %vm202, %v200
      %237 = vst.msk [vmem:[#allocation2 + $0x110] sm:$0xff] %vm202, %v200
      %238 = vst.msk [vmem:[#allocation2 + $0x118] sm:$0xff] %vm202, %v200
      %239 = vst.msk [vmem:[#allocation2 + $0x120] sm:$0xff] %vm202, %v200
      %240 = vst.msk [vmem:[#allocation2 + $0x128] sm:$0xff] %vm202, %v200
      %241 = vst.msk [vmem:[#allocation2 + $0x130] sm:$0xff] %vm202, %v200
      %242 = vst.msk [vmem:[#allocation2 + $0x138] sm:$0xff] %vm202, %v200
      %243 = vst.msk [vmem:[#allocation2 + $0x140] sm:$0xff] %vm202, %v200
      %244 = vst.msk [vmem:[#allocation2 + $0x148] sm:$0xff] %vm202, %v200
      %245 = vst.msk [vmem:[#allocation2 + $0x150] sm:$0xff] %vm202, %v200
      %246 = vst.msk [vmem:[#allocation2 + $0x158] sm:$0xff] %vm202, %v200
      %247 = vst.msk [vmem:[#allocation2 + $0x160] sm:$0xff] %vm202, %v200
      %248 = vst.msk [vmem:[#allocation2 + $0x168] sm:$0xff] %vm202, %v200
      %249 = vst.msk [vmem:[#allocation2 + $0x170] sm:$0xff] %vm202, %v200
      %250 = vst.msk [vmem:[#allocation2 + $0x178] sm:$0xff] %vm202, %v200
      %251 = vst.msk [vmem:[#allocation2 + $0x180] sm:$0xff] %vm202, %v200
      %252 = vst.msk [vmem:[#allocation2 + $0x188] sm:$0xff] %vm202, %v200
      %253 = vst.msk [vmem:[#allocation2 + $0x190] sm:$0xff] %vm202, %v200
      %254 = vst.msk [vmem:[#allocation2 + $0x198] sm:$0xff] %vm202, %v200
      %255 = vst.msk [vmem:[#allocation2 + $0x1a0] sm:$0xff] %vm202, %v200
      %256 = vst.msk [vmem:[#allocation2 + $0x1a8] sm:$0xff] %vm202, %v200
      %257 = vst.msk [vmem:[#allocation2 + $0x1b0] sm:$0xff] %vm202, %v200
      %258 = vst.msk [vmem:[#allocation2 + $0x1b8] sm:$0xff] %vm202, %v200
      %259 = vst.msk [vmem:[#allocation2 + $0x1c0] sm:$0xff] %vm202, %v200
      %260 = vst.msk [vmem:[#allocation2 + $0x1c8] sm:$0xff] %vm202, %v200
      %261 = vst.msk [vmem:[#allocation2 + $0x1d0] sm:$0xff] %vm202, %v200
      %262 = vst.msk [vmem:[#allocation2 + $0x1d8] sm:$0xff] %vm202, %v200
      %263 = vst.msk [vmem:[#allocation2 + $0x1e0] sm:$0xff] %vm202, %v200
      %264 = vst.msk [vmem:[#allocation2 + $0x1e8] sm:$0xff] %vm202, %v200
      %265 = vst.msk [vmem:[#allocation2 + $0x1f0] sm:$0xff] %vm202, %v200
      %266 = vst.msk [vmem:[#allocation2 + $0x1f8] sm:$0xff] %vm202, %v200
      %267 = vst.msk [vmem:[#allocation2 + $0x200] sm:$0xff] %vm202, %v200
      %268 = vst.msk [vmem:[#allocation2 + $0x208] sm:$0xff] %vm202, %v200
      %269 = vst.msk [vmem:[#allocation2 + $0x210] sm:$0xff] %vm202, %v200
      %270 = vst.msk [vmem:[#allocation2 + $0x218] sm:$0xff] %vm202, %v200
      %271 = vst.msk [vmem:[#allocation2 + $0x220] sm:$0xff] %vm202, %v200
      %272 = vst.msk [vmem:[#allocation2 + $0x228] sm:$0xff] %vm202, %v200
      %273 = vst.msk [vmem:[#allocation2 + $0x230] sm:$0xff] %vm202, %v200
      %274 = vst.msk [vmem:[#allocation2 + $0x238] sm:$0xff] %vm202, %v200
      %275 = vst.msk [vmem:[#allocation2 + $0x240] sm:$0xff] %vm202, %v200
      %276 = vst.msk [vmem:[#allocation2 + $0x248] sm:$0xff] %vm202, %v200
      %277 = vst.msk [vmem:[#allocation2 + $0x250] sm:$0xff] %vm202, %v200
      %278 = vst.msk [vmem:[#allocation2 + $0x258] sm:$0xff] %vm202, %v200
      %279 = vst.msk [vmem:[#allocation2 + $0x260] sm:$0xff] %vm202, %v200
      %280 = vst.msk [vmem:[#allocation2 + $0x268] sm:$0xff] %vm202, %v200
      %281 = vst.msk [vmem:[#allocation2 + $0x270] sm:$0xff] %vm202, %v200
      %282 = vst.msk [vmem:[#allocation2 + $0x278] sm:$0xff] %vm202, %v200
      loop: start=0, step=1, limit=101
      $region33: #{pose_encoder_style_forward.4} parent=31 // loop_pre_header
        _
      $region34: #{pose_encoder_style_forward.4} parent=31 // loop_header
        %s284 = sphi 0, %s288
        %p285 = scmp.ge.s32.totalorder %s284, 101
      $region35: #{pose_encoder_style_forward.4} parent=31 // loop_header_branch
        %287 = sbr.rel (%p285) target = $region39
      $region36: #{pose_encoder_style_forward.4} parent=31 // loop_body
        %s289 = sadd.s32 %s194, %s284
        %s290 = scalar_lea.vmem %s183, %s289
        %v291 = vld [vmem:[%s290] sm:$0xff]
        %v292 = vld [vmem:[%s290 + $0x8] sm:$0xff]
        %v293 = vld [vmem:[%s290 + $0x10] sm:$0xff]
        %v294 = vld [vmem:[%s290 + $0x18] sm:$0xff]
        %v295 = vld [vmem:[%s290 + $0x20] sm:$0xff]
        %v296 = vld [vmem:[%s290 + $0x28] sm:$0xff]
        %v297 = vld [vmem:[%s290 + $0x30] sm:$0xff]
        %v298 = vld [vmem:[%s290 + $0x38] sm:$0xff]
        %v299 = vld [vmem:[%s290 + $0x40] sm:$0xff]
        %v300 = vld [vmem:[%s290 + $0x48] sm:$0xff]
        %v301 = vld [vmem:[%s290 + $0x50] sm:$0xff]
        %v302 = vld [vmem:[%s290 + $0x58] sm:$0xff]
        %v303 = vld [vmem:[%s290 + $0x60] sm:$0xff]
        %v304 = vld [vmem:[%s290 + $0x68] sm:$0xff]
        %v305 = vld [vmem:[%s290 + $0x70] sm:$0xff]
        %v306 = vld [vmem:[%s290 + $0x78] sm:$0xff]
        %v307 = vld [vmem:[%s290 + $0x80] sm:$0xff]
        %v308 = vld [vmem:[%s290 + $0x88] sm:$0xff]
        %v309 = vld [vmem:[%s290 + $0x90] sm:$0xff]
        %v310 = vld [vmem:[%s290 + $0x98] sm:$0xff]
        %v311 = vld [vmem:[%s290 + $0xa0] sm:$0xff]
        %v312 = vld [vmem:[%s290 + $0xa8] sm:$0xff]
        %v313 = vld [vmem:[%s290 + $0xb0] sm:$0xff]
        %v314 = vld [vmem:[%s290 + $0xb8] sm:$0xff]
        %v315 = vld [vmem:[%s290 + $0xc0] sm:$0xff]
        %v316 = vld [vmem:[%s290 + $0xc8] sm:$0xff]
        %v317 = vld [vmem:[%s290 + $0xd0] sm:$0xff]
        %v318 = vld [vmem:[%s290 + $0xd8] sm:$0xff]
        %v319 = vld [vmem:[%s290 + $0xe0] sm:$0xff]
        %v320 = vld [vmem:[%s290 + $0xe8] sm:$0xff]
        %v321 = vld [vmem:[%s290 + $0xf0] sm:$0xff]
        %v322 = vld [vmem:[%s290 + $0xf8] sm:$0xff]
        %v323 = vld [vmem:[%s290 + $0x100] sm:$0xff]
        %v324 = vld [vmem:[%s290 + $0x108] sm:$0xff]
        %v325 = vld [vmem:[%s290 + $0x110] sm:$0xff]
        %v326 = vld [vmem:[%s290 + $0x118] sm:$0xff]
        %v327 = vld [vmem:[%s290 + $0x120] sm:$0xff]
        %v328 = vld [vmem:[%s290 + $0x128] sm:$0xff]
        %v329 = vld [vmem:[%s290 + $0x130] sm:$0xff]
        %v330 = vld [vmem:[%s290 + $0x138] sm:$0xff]
        %v331 = vld [vmem:[%s290 + $0x140] sm:$0xff]
        %v332 = vld [vmem:[%s290 + $0x148] sm:$0xff]
        %v333 = vld [vmem:[%s290 + $0x150] sm:$0xff]
        %v334 = vld [vmem:[%s290 + $0x158] sm:$0xff]
        %v335 = vld [vmem:[%s290 + $0x160] sm:$0xff]
        %v336 = vld [vmem:[%s290 + $0x168] sm:$0xff]
        %v337 = vld [vmem:[%s290 + $0x170] sm:$0xff]
        %v338 = vld [vmem:[%s290 + $0x178] sm:$0xff]
        %v339 = vld [vmem:[%s290 + $0x180] sm:$0xff]
        %v340 = vld [vmem:[%s290 + $0x188] sm:$0xff]
        %v341 = vld [vmem:[%s290 + $0x190] sm:$0xff]
        %v342 = vld [vmem:[%s290 + $0x198] sm:$0xff]
        %v343 = vld [vmem:[%s290 + $0x1a0] sm:$0xff]
        %v344 = vld [vmem:[%s290 + $0x1a8] sm:$0xff]
        %v345 = vld [vmem:[%s290 + $0x1b0] sm:$0xff]
        %v346 = vld [vmem:[%s290 + $0x1b8] sm:$0xff]
        %v347 = vld [vmem:[%s290 + $0x1c0] sm:$0xff]
        %v348 = vld [vmem:[%s290 + $0x1c8] sm:$0xff]
        %v349 = vld [vmem:[%s290 + $0x1d0] sm:$0xff]
        %v350 = vld [vmem:[%s290 + $0x1d8] sm:$0xff]
        %v351 = vld [vmem:[%s290 + $0x1e0] sm:$0xff]
        %v352 = vld [vmem:[%s290 + $0x1e8] sm:$0xff]
        %v353 = vld [vmem:[%s290 + $0x1f0] sm:$0xff]
        %v354 = vld [vmem:[%s290 + $0x1f8] sm:$0xff]
        %v355 = vld [vmem:[%s290 + $0x200] sm:$0xff]
        %v356 = vld [vmem:[%s290 + $0x208] sm:$0xff]
        %v357 = vld [vmem:[%s290 + $0x210] sm:$0xff]
        %v358 = vld [vmem:[%s290 + $0x218] sm:$0xff]
        %v359 = vld [vmem:[%s290 + $0x220] sm:$0xff]
        %v360 = vld [vmem:[%s290 + $0x228] sm:$0xff]
        %v361 = vld [vmem:[%s290 + $0x230] sm:$0xff]
        %v362 = vld [vmem:[%s290 + $0x238] sm:$0xff]
        %v363 = vld [vmem:[%s290 + $0x240] sm:$0xff]
        %v364 = vld [vmem:[%s290 + $0x248] sm:$0xff]
        %v365 = vld [vmem:[%s290 + $0x250] sm:$0xff]
        %v366 = vld [vmem:[%s290 + $0x258] sm:$0xff]
        %v367 = vld [vmem:[%s290 + $0x260] sm:$0xff]
        %v368 = vld [vmem:[%s290 + $0x268] sm:$0xff]
        %v369 = vld [vmem:[%s290 + $0x270] sm:$0xff]
        %v370 = vld [vmem:[%s290 + $0x278] sm:$0xff]
        %v371 = vld [vmem:[#allocation2] sm:$0xff]
        %v372 = vld [vmem:[#allocation2 + $0x8] sm:$0xff]
        %v373 = vld [vmem:[#allocation2 + $0x10] sm:$0xff]
        %v374 = vld [vmem:[#allocation2 + $0x18] sm:$0xff]
        %v375 = vld [vmem:[#allocation2 + $0x20] sm:$0xff]
        %v376 = vld [vmem:[#allocation2 + $0x28] sm:$0xff]
        %v377 = vld [vmem:[#allocation2 + $0x30] sm:$0xff]
        %v378 = vld [vmem:[#allocation2 + $0x38] sm:$0xff]
        %v379 = vld [vmem:[#allocation2 + $0x40] sm:$0xff]
        %v380 = vld [vmem:[#allocation2 + $0x48] sm:$0xff]
        %v381 = vld [vmem:[#allocation2 + $0x50] sm:$0xff]
        %v382 = vld [vmem:[#allocation2 + $0x58] sm:$0xff]
        %v383 = vld [vmem:[#allocation2 + $0x60] sm:$0xff]
        %v384 = vld [vmem:[#allocation2 + $0x68] sm:$0xff]
        %v385 = vld [vmem:[#allocation2 + $0x70] sm:$0xff]
        %v386 = vld [vmem:[#allocation2 + $0x78] sm:$0xff]
        %v387 = vld [vmem:[#allocation2 + $0x80] sm:$0xff]
        %v388 = vld [vmem:[#allocation2 + $0x88] sm:$0xff]
        %v389 = vld [vmem:[#allocation2 + $0x90] sm:$0xff]
        %v390 = vld [vmem:[#allocation2 + $0x98] sm:$0xff]
        %v391 = vld [vmem:[#allocation2 + $0xa0] sm:$0xff]
        %v392 = vld [vmem:[#allocation2 + $0xa8] sm:$0xff]
        %v393 = vld [vmem:[#allocation2 + $0xb0] sm:$0xff]
        %v394 = vld [vmem:[#allocation2 + $0xb8] sm:$0xff]
        %v395 = vld [vmem:[#allocation2 + $0xc0] sm:$0xff]
        %v396 = vld [vmem:[#allocation2 + $0xc8] sm:$0xff]
        %v397 = vld [vmem:[#allocation2 + $0xd0] sm:$0xff]
        %v398 = vld [vmem:[#allocation2 + $0xd8] sm:$0xff]
        %v399 = vld [vmem:[#allocation2 + $0xe0] sm:$0xff]
        %v400 = vld [vmem:[#allocation2 + $0xe8] sm:$0xff]
        %v401 = vld [vmem:[#allocation2 + $0xf0] sm:$0xff]
        %v402 = vld [vmem:[#allocation2 + $0xf8] sm:$0xff]
        %v403 = vld [vmem:[#allocation2 + $0x100] sm:$0xff]
        %v404 = vld [vmem:[#allocation2 + $0x108] sm:$0xff]
        %v405 = vld [vmem:[#allocation2 + $0x110] sm:$0xff]
        %v406 = vld [vmem:[#allocation2 + $0x118] sm:$0xff]
        %v407 = vld [vmem:[#allocation2 + $0x120] sm:$0xff]
        %v408 = vld [vmem:[#allocation2 + $0x128] sm:$0xff]
        %v409 = vld [vmem:[#allocation2 + $0x130] sm:$0xff]
        %v410 = vld [vmem:[#allocation2 + $0x138] sm:$0xff]
        %v411 = vld [vmem:[#allocation2 + $0x140] sm:$0xff]
        %v412 = vld [vmem:[#allocation2 + $0x148] sm:$0xff]
        %v413 = vld [vmem:[#allocation2 + $0x150] sm:$0xff]
        %v414 = vld [vmem:[#allocation2 + $0x158] sm:$0xff]
        %v415 = vld [vmem:[#allocation2 + $0x160] sm:$0xff]
        %v416 = vld [vmem:[#allocation2 + $0x168] sm:$0xff]
        %v417 = vld [vmem:[#allocation2 + $0x170] sm:$0xff]
        %v418 = vld [vmem:[#allocation2 + $0x178] sm:$0xff]
        %v419 = vld [vmem:[#allocation2 + $0x180] sm:$0xff]
        %v420 = vld [vmem:[#allocation2 + $0x188] sm:$0xff]
        %v421 = vld [vmem:[#allocation2 + $0x190] sm:$0xff]
        %v422 = vld [vmem:[#allocation2 + $0x198] sm:$0xff]
        %v423 = vld [vmem:[#allocation2 + $0x1a0] sm:$0xff]
        %v424 = vld [vmem:[#allocation2 + $0x1a8] sm:$0xff]
        %v425 = vld [vmem:[#allocation2 + $0x1b0] sm:$0xff]
        %v426 = vld [vmem:[#allocation2 + $0x1b8] sm:$0xff]
        %v427 = vld [vmem:[#allocation2 + $0x1c0] sm:$0xff]
        %v428 = vld [vmem:[#allocation2 + $0x1c8] sm:$0xff]
        %v429 = vld [vmem:[#allocation2 + $0x1d0] sm:$0xff]
        %v430 = vld [vmem:[#allocation2 + $0x1d8] sm:$0xff]
        %v431 = vld [vmem:[#allocation2 + $0x1e0] sm:$0xff]
        %v432 = vld [vmem:[#allocation2 + $0x1e8] sm:$0xff]
        %v433 = vld [vmem:[#allocation2 + $0x1f0] sm:$0xff]
        %v434 = vld [vmem:[#allocation2 + $0x1f8] sm:$0xff]
        %v435 = vld [vmem:[#allocation2 + $0x200] sm:$0xff]
        %v436 = vld [vmem:[#allocation2 + $0x208] sm:$0xff]
        %v437 = vld [vmem:[#allocation2 + $0x210] sm:$0xff]
        %v438 = vld [vmem:[#allocation2 + $0x218] sm:$0xff]
        %v439 = vld [vmem:[#allocation2 + $0x220] sm:$0xff]
        %v440 = vld [vmem:[#allocation2 + $0x228] sm:$0xff]
        %v441 = vld [vmem:[#allocation2 + $0x230] sm:$0xff]
        %v442 = vld [vmem:[#allocation2 + $0x238] sm:$0xff]
        %v443 = vld [vmem:[#allocation2 + $0x240] sm:$0xff]
        %v444 = vld [vmem:[#allocation2 + $0x248] sm:$0xff]
        %v445 = vld [vmem:[#allocation2 + $0x250] sm:$0xff]
        %v446 = vld [vmem:[#allocation2 + $0x258] sm:$0xff]
        %v447 = vld [vmem:[#allocation2 + $0x260] sm:$0xff]
        %v448 = vld [vmem:[#allocation2 + $0x268] sm:$0xff]
        %v449 = vld [vmem:[#allocation2 + $0x270] sm:$0xff]
        %v450 = vld [vmem:[#allocation2 + $0x278] sm:$0xff]
        %s451 = smul.u32 %s284, 24
        %s452 = scalar_lea.vmem %s1, %s451
        %v453 = vld [vmem:[%s452] sm:$0xff]
        %v454 = vld [vmem:[%s452 + $0x8] sm:$0xff]
        %v455 = vld [vmem:[%s452 + $0x10] sm:$0xf]
        %vm456 = vcmask 162816
        %v458 = vsel %vm456, %v291, 0
        %v461 = vsel %vm456, %v292, 0
        %v464 = vsel %vm456, %v293, 0
        %v467 = vsel %vm456, %v294, 0
        %v470 = vsel %vm456, %v295, 0
        %v473 = vsel %vm456, %v296, 0
        %v476 = vsel %vm456, %v297, 0
        %v479 = vsel %vm456, %v298, 0
        %v482 = vsel %vm456, %v299, 0
        %v485 = vsel %vm456, %v300, 0
        %v488 = vsel %vm456, %v301, 0
        %v491 = vsel %vm456, %v302, 0
        %v494 = vsel %vm456, %v303, 0
        %v497 = vsel %vm456, %v304, 0
        %v500 = vsel %vm456, %v305, 0
        %v503 = vsel %vm456, %v306, 0
        %v506 = vsel %vm456, %v307, 0
        %v509 = vsel %vm456, %v308, 0
        %v512 = vsel %vm456, %v309, 0
        %v515 = vsel %vm456, %v310, 0
        %v518 = vsel %vm456, %v311, 0
        %v521 = vsel %vm456, %v312, 0
        %v524 = vsel %vm456, %v313, 0
        %v527 = vsel %vm456, %v314, 0
        %v530 = vsel %vm456, %v315, 0
        %v533 = vsel %vm456, %v316, 0
        %v536 = vsel %vm456, %v317, 0
        %v539 = vsel %vm456, %v318, 0
        %v542 = vsel %vm456, %v319, 0
        %v545 = vsel %vm456, %v320, 0
        %v548 = vsel %vm456, %v321, 0
        %v551 = vsel %vm456, %v322, 0
        %v554 = vsel %vm456, %v323, 0
        %v557 = vsel %vm456, %v324, 0
        %v560 = vsel %vm456, %v325, 0
        %v563 = vsel %vm456, %v326, 0
        %v566 = vsel %vm456, %v327, 0
        %v569 = vsel %vm456, %v328, 0
        %v572 = vsel %vm456, %v329, 0
        %v575 = vsel %vm456, %v330, 0
        %v578 = vsel %vm456, %v331, 0
        %v581 = vsel %vm456, %v332, 0
        %v584 = vsel %vm456, %v333, 0
        %v587 = vsel %vm456, %v334, 0
        %v590 = vsel %vm456, %v335, 0
        %v593 = vsel %vm456, %v336, 0
        %v596 = vsel %vm456, %v337, 0
        %v599 = vsel %vm456, %v338, 0
        %v602 = vsel %vm456, %v339, 0
        %v605 = vsel %vm456, %v340, 0
        %v608 = vsel %vm456, %v341, 0
        %v611 = vsel %vm456, %v342, 0
        %v614 = vsel %vm456, %v343, 0
        %v617 = vsel %vm456, %v344, 0
        %v620 = vsel %vm456, %v345, 0
        %v623 = vsel %vm456, %v346, 0
        %v626 = vsel %vm456, %v347, 0
        %v629 = vsel %vm456, %v348, 0
        %v632 = vsel %vm456, %v349, 0
        %v635 = vsel %vm456, %v350, 0
        %v638 = vsel %vm456, %v351, 0
        %v641 = vsel %vm456, %v352, 0
        %v644 = vsel %vm456, %v353, 0
        %v647 = vsel %vm456, %v354, 0
        %v650 = vsel %vm456, %v355, 0
        %v653 = vsel %vm456, %v356, 0
        %v656 = vsel %vm456, %v357, 0
        %v659 = vsel %vm456, %v358, 0
        %v662 = vsel %vm456, %v359, 0
        %v665 = vsel %vm456, %v360, 0
        %v668 = vsel %vm456, %v361, 0
        %v671 = vsel %vm456, %v362, 0
        %v674 = vsel %vm456, %v363, 0
        %v677 = vsel %vm456, %v364, 0
        %v680 = vsel %vm456, %v365, 0
        %v683 = vsel %vm456, %v366, 0
        %v686 = vsel %vm456, %v367, 0
        %v689 = vsel %vm456, %v368, 0
        %v692 = vsel %vm456, %v369, 0
        %v695 = vsel %vm456, %v370, 0
        %vm697 = vcmask 1043456
        %v699 = vsel %vm697, %v455, 0
        %701 = vmatprep.subr.mxu0 0.0
        %702 = vmatpush1.msra.mxu0 %v453
        %703 = vmatprep.subr.mxu0 0.0
        %704 = vmatpush1.msra.mxu0 %v454
        %705 = vmatprep.subr.mxu0 0.0
        %706 = vmatpush1.msra.mxu0 %v699
        %707 = vmatprep.subr.mxu0 0.0
        %708 = vmatpush1.msra.mxu0 0.0
        %709 = vmatprep.subr.mxu0 0.0
        %710 = vmatpush1.msra.mxu0 0.0
        %711 = vmatprep.subr.mxu0 0.0
        %712 = vmatpush1.msra.mxu0 0.0
        %713 = vmatprep.subr.mxu0 0.0
        %714 = vmatpush1.msra.mxu0 0.0
        %715 = vmatprep.subr.mxu0 0.0
        %716 = vmatpush1.msra.mxu0 0.0
        %717 = vmatprep.subr.mxu0 0.0
        %718 = vmatpush1.msra.mxu0 0.0
        %719 = vmatprep.subr.mxu0 0.0
        %720 = vmatpush1.msra.mxu0 0.0
        %721 = vmatprep.subr.mxu0 0.0
        %722 = vmatpush1.msra.mxu0 0.0
        %723 = vmatprep.subr.mxu0 0.0
        %724 = vmatpush1.msra.mxu0 0.0
        %725 = vmatprep.subr.mxu0 0.0
        %726 = vmatpush1.msra.mxu0 0.0
        %727 = vmatprep.subr.mxu0 0.0
        %728 = vmatpush1.msra.mxu0 0.0
        %729 = vmatprep.subr.mxu0 0.0
        %730 = vmatpush1.msra.mxu0 0.0
        %731 = vmatprep.subr.mxu0 0.0
        %732 = vmatpush1.msra.mxu0 0.0
        %733 = vmatprep.subr.mxu0 0.0
        %734 = vmatpush1.msra.mxu0 0.0
        %735 = vmatprep.subr.mxu0 0.0
        %736 = vmatpush1.msra.mxu0 0.0
        %737 = vmatprep.subr.mxu0 0.0
        %738 = vmatpush1.msra.mxu0 0.0
        %739 = vmatprep.subr.mxu0 0.0
        %740 = vmatpush1.msra.mxu0 0.0
        %741 = vmatprep.subr.mxu0 0.0
        %742 = vmatpush1.msra.mxu0 0.0
        %743 = vmatprep.subr.mxu0 0.0
        %744 = vmatpush1.msra.mxu0 0.0
        %745 = vmatprep.subr.mxu0 0.0
        %746 = vmatpush1.msra.mxu0 0.0
        %747 = vmatprep.subr.mxu0 0.0
        %748 = vmatpush1.msra.mxu0 0.0
        %749 = vmatprep.subr.mxu0 0.0
        %750 = vmatpush1.msra.mxu0 0.0
        %751 = vmatprep.subr.mxu0 0.0
        %752 = vmatpush1.msra.mxu0 0.0
        %753 = vmatprep.subr.mxu0 0.0
        %754 = vmatpush1.msra.mxu0 0.0
        %755 = vmatprep.subr.mxu0 0.0
        %756 = vmatpush1.msra.mxu0 0.0
        %757 = vmatprep.subr.mxu0 0.0
        %758 = vmatpush1.msra.mxu0 0.0
        %759 = vmatprep.subr.mxu0 0.0
        %760 = vmatpush1.msra.mxu0 0.0
        %761 = vmatprep.subr.mxu0 0.0
        %762 = vmatpush1.msra.mxu0 0.0
        %763 = vmatprep.subr.mxu0 0.0
        %764 = vmatpush1.msra.mxu0 0.0
        %765 = vmatprep.mubr.f32.mxu0 0.0
        %766 = vmatmul.mubr.f32.gmra.mrb[0].mxu0 %v458
        %v767 = vpop.f32.mrb[0].mxu0
        %v768 = vadd.f32 0.0, %v767
        %v769 = vpop.f32.mrb[0].mxu0
        %770 = vmatprep.mubr.f32.mxu0 0.0
        %771 = vmatmul.mubr.f32.gmra.mrb[0].mxu0 %v461
        %v772 = vpop.f32.mrb[0].mxu0
        %v773 = vadd.f32 0.0, %v772
        %v774 = vpop.f32.mrb[0].mxu0
        %775 = vmatprep.mubr.f32.mxu0 0.0
        %776 = vmatmul.mubr.f32.gmra.mrb[0].mxu0 %v464
        %v777 = vpop.f32.mrb[0].mxu0
        %v778 = vadd.f32 0.0, %v777
        %v779 = vpop.f32.mrb[0].mxu0
        %780 = vmatprep.mubr.f32.mxu0 0.0
        %781 = vmatmul.mubr.f32.gmra.mrb[0].mxu0 %v467
        %v782 = vpop.f32.mrb[0].mxu0
        %v783 = vadd.f32 0.0, %v782
        %v784 = vpop.f32.mrb[0].mxu0
        %785 = vmatprep.mubr.f32.mxu0 0.0
        %786 = vmatmul.mubr.f32.gmra.mrb[0].mxu0 %v470
        %v787 = vpop.f32.mrb[0].mxu0
        %v788 = vadd.f32 0.0, %v787
        %v789 = vpop.f32.mrb[0].mxu0
        %790 = vmatprep.mubr.f32.mxu0 0.0
        %791 = vmatmul.mubr.f32.gmra.mrb[0].mxu0 %v473
        %v792 = vpop.f32.mrb[0].mxu0
        %v793 = vadd.f32 0.0, %v792
        %v794 = vpop.f32.mrb[0].mxu0
        %795 = vmatprep.mubr.f32.mxu0 0.0
        %796 = vmatmul.mubr.f32.gmra.mrb[0].mxu0 %v476
        %v797 = vpop.f32.mrb[0].mxu0
        %v798 = vadd.f32 0.0, %v797
        %v799 = vpop.f32.mrb[0].mxu0
        %800 = vmatprep.mubr.f32.mxu0 0.0
        %801 = vmatmul.mubr.f32.gmra.mrb[0].mxu0 %v479
        %v802 = vpop.f32.mrb[0].mxu0
        %v803 = vadd.f32 0.0, %v802
        %v804 = vpop.f32.mrb[0].mxu0
        %805 = vmatprep.mubr.f32.mxu0 0.0
        %806 = vmatmul.mubr.f32.gmra.mrb[0].mxu0 %v482
        %v807 = vpop.f32.mrb[0].mxu0
        %v808 = vadd.f32 0.0, %v807
        %v809 = vpop.f32.mrb[0].mxu0
        %810 = vmatprep.mubr.f32.mxu0 0.0
        %811 = vmatmul.mubr.f32.gmra.mrb[0].mxu0 %v485
        %v812 = vpop.f32.mrb[0].mxu0
        %v813 = vadd.f32 0.0, %v812
        %v814 = vpop.f32.mrb[0].mxu0
        %815 = vmatprep.mubr.f32.mxu0 0.0
        %816 = vmatmul.mubr.f32.gmra.mrb[0].mxu0 %v488
        %v817 = vpop.f32.mrb[0].mxu0
        %v818 = vadd.f32 0.0, %v817
        %v819 = vpop.f32.mrb[0].mxu0
        %820 = vmatprep.mubr.f32.mxu0 0.0
        %821 = vmatmul.mubr.f32.gmra.mrb[0].mxu0 %v491
        %v822 = vpop.f32.mrb[0].mxu0
        %v823 = vadd.f32 0.0, %v822
        %v824 = vpop.f32.mrb[0].mxu0
        %825 = vmatprep.mubr.f32.mxu0 0.0
        %826 = vmatmul.mubr.f32.gmra.mrb[0].mxu0 %v494
        %v827 = vpop.f32.mrb[0].mxu0
        %v828 = vadd.f32 0.0, %v827
        %v829 = vpop.f32.mrb[0].mxu0
        %830 = vmatprep.mubr.f32.mxu0 0.0
        %831 = vmatmul.mubr.f32.gmra.mrb[0].mxu0 %v497
        %v832 = vpop.f32.mrb[0].mxu0
        %v833 = vadd.f32 0.0, %v832
        %v834 = vpop.f32.mrb[0].mxu0
        %835 = vmatprep.mubr.f32.mxu0 0.0
        %836 = vmatmul.mubr.f32.gmra.mrb[0].mxu0 %v500
        %v837 = vpop.f32.mrb[0].mxu0
        %v838 = vadd.f32 0.0, %v837
        %v839 = vpop.f32.mrb[0].mxu0
        %840 = vmatprep.mubr.f32.mxu0 0.0
        %841 = vmatmul.mubr.f32.gmra.mrb[0].mxu0 %v503
        %v842 = vpop.f32.mrb[0].mxu0
        %v843 = vadd.f32 0.0, %v842
        %v844 = vpop.f32.mrb[0].mxu0
        %845 = vmatprep.mubr.f32.mxu0 0.0
        %846 = vmatmul.mubr.f32.gmra.mrb[0].mxu0 %v506
        %v847 = vpop.f32.mrb[0].mxu0
        %v848 = vadd.f32 0.0, %v847
        %v849 = vpop.f32.mrb[0].mxu0
        %850 = vmatprep.mubr.f32.mxu0 0.0
        %851 = vmatmul.mubr.f32.gmra.mrb[0].mxu0 %v509
        %v852 = vpop.f32.mrb[0].mxu0
        %v853 = vadd.f32 0.0, %v852
        %v854 = vpop.f32.mrb[0].mxu0
        %855 = vmatprep.mubr.f32.mxu0 0.0
        %856 = vmatmul.mubr.f32.gmra.mrb[0].mxu0 %v512
        %v857 = vpop.f32.mrb[0].mxu0
        %v858 = vadd.f32 0.0, %v857
        %v859 = vpop.f32.mrb[0].mxu0
        %860 = vmatprep.mubr.f32.mxu0 0.0
        %861 = vmatmul.mubr.f32.gmra.mrb[0].mxu0 %v515
        %v862 = vpop.f32.mrb[0].mxu0
        %v863 = vadd.f32 0.0, %v862
        %v864 = vpop.f32.mrb[0].mxu0
        %865 = vmatprep.mubr.f32.mxu0 0.0
        %866 = vmatmul.mubr.f32.gmra.mrb[0].mxu0 %v518
        %v867 = vpop.f32.mrb[0].mxu0
        %v868 = vadd.f32 0.0, %v867
        %v869 = vpop.f32.mrb[0].mxu0
        %870 = vmatprep.mubr.f32.mxu0 0.0
        %871 = vmatmul.mubr.f32.gmra.mrb[0].mxu0 %v521
        %v872 = vpop.f32.mrb[0].mxu0
        %v873 = vadd.f32 0.0, %v872
        %v874 = vpop.f32.mrb[0].mxu0
        %875 = vmatprep.mubr.f32.mxu0 0.0
        %876 = vmatmul.mubr.f32.gmra.mrb[0].mxu0 %v524
        %v877 = vpop.f32.mrb[0].mxu0
        %v878 = vadd.f32 0.0, %v877
        %v879 = vpop.f32.mrb[0].mxu0
        %880 = vmatprep.mubr.f32.mxu0 0.0
        %881 = vmatmul.mubr.f32.gmra.mrb[0].mxu0 %v527
        %v882 = vpop.f32.mrb[0].mxu0
        %v883 = vadd.f32 0.0, %v882
        %v884 = vpop.f32.mrb[0].mxu0
        %885 = vmatprep.mubr.f32.mxu0 0.0
        %886 = vmatmul.mubr.f32.gmra.mrb[0].mxu0 %v530
        %v887 = vpop.f32.mrb[0].mxu0
        %v888 = vadd.f32 0.0, %v887
        %v889 = vpop.f32.mrb[0].mxu0
        %890 = vmatprep.mubr.f32.mxu0 0.0
        %891 = vmatmul.mubr.f32.gmra.mrb[0].mxu0 %v533
        %v892 = vpop.f32.mrb[0].mxu0
        %v893 = vadd.f32 0.0, %v892
        %v894 = vpop.f32.mrb[0].mxu0
        %895 = vmatprep.mubr.f32.mxu0 0.0
        %896 = vmatmul.mubr.f32.gmra.mrb[0].mxu0 %v536
        %v897 = vpop.f32.mrb[0].mxu0
        %v898 = vadd.f32 0.0, %v897
        %v899 = vpop.f32.mrb[0].mxu0
        %900 = vmatprep.mubr.f32.mxu0 0.0
        %901 = vmatmul.mubr.f32.gmra.mrb[0].mxu0 %v539
        %v902 = vpop.f32.mrb[0].mxu0
        %v903 = vadd.f32 0.0, %v902
        %v904 = vpop.f32.mrb[0].mxu0
        %905 = vmatprep.mubr.f32.mxu0 0.0
        %906 = vmatmul.mubr.f32.gmra.mrb[0].mxu0 %v542
        %v907 = vpop.f32.mrb[0].mxu0
        %v908 = vadd.f32 0.0, %v907
        %v909 = vpop.f32.mrb[0].mxu0
        %910 = vmatprep.mubr.f32.mxu0 0.0
        %911 = vmatmul.mubr.f32.gmra.mrb[0].mxu0 %v545
        %v912 = vpop.f32.mrb[0].mxu0
        %v913 = vadd.f32 0.0, %v912
        %v914 = vpop.f32.mrb[0].mxu0
        %915 = vmatprep.mubr.f32.mxu0 0.0
        %916 = vmatmul.mubr.f32.gmra.mrb[0].mxu0 %v548
        %v917 = vpop.f32.mrb[0].mxu0
        %v918 = vadd.f32 0.0, %v917
        %v919 = vpop.f32.mrb[0].mxu0
        %920 = vmatprep.mubr.f32.mxu0 0.0
        %921 = vmatmul.mubr.f32.gmra.mrb[0].mxu0 %v551
        %v922 = vpop.f32.mrb[0].mxu0
        %v923 = vadd.f32 0.0, %v922
        %v924 = vpop.f32.mrb[0].mxu0
        %925 = vmatprep.mubr.f32.mxu0 0.0
        %926 = vmatmul.mubr.f32.gmra.mrb[0].mxu0 %v554
        %v927 = vpop.f32.mrb[0].mxu0
        %v928 = vadd.f32 0.0, %v927
        %v929 = vpop.f32.mrb[0].mxu0
        %930 = vmatprep.mubr.f32.mxu0 0.0
        %931 = vmatmul.mubr.f32.gmra.mrb[0].mxu0 %v557
        %v932 = vpop.f32.mrb[0].mxu0
        %v933 = vadd.f32 0.0, %v932
        %v934 = vpop.f32.mrb[0].mxu0
        %935 = vmatprep.mubr.f32.mxu0 0.0
        %936 = vmatmul.mubr.f32.gmra.mrb[0].mxu0 %v560
        %v937 = vpop.f32.mrb[0].mxu0
        %v938 = vadd.f32 0.0, %v937
        %v939 = vpop.f32.mrb[0].mxu0
        %940 = vmatprep.mubr.f32.mxu0 0.0
        %941 = vmatmul.mubr.f32.gmra.mrb[0].mxu0 %v563
        %v942 = vpop.f32.mrb[0].mxu0
        %v943 = vadd.f32 0.0, %v942
        %v944 = vpop.f32.mrb[0].mxu0
        %945 = vmatprep.mubr.f32.mxu0 0.0
        %946 = vmatmul.mubr.f32.gmra.mrb[0].mxu0 %v566
        %v947 = vpop.f32.mrb[0].mxu0
        %v948 = vadd.f32 0.0, %v947
        %v949 = vpop.f32.mrb[0].mxu0
        %950 = vmatprep.mubr.f32.mxu0 0.0
        %951 = vmatmul.mubr.f32.gmra.mrb[0].mxu0 %v569
        %v952 = vpop.f32.mrb[0].mxu0
        %v953 = vadd.f32 0.0, %v952
        %v954 = vpop.f32.mrb[0].mxu0
        %955 = vmatprep.mubr.f32.mxu0 0.0
        %956 = vmatmul.mubr.f32.gmra.mrb[0].mxu0 %v572
        %v957 = vpop.f32.mrb[0].mxu0
        %v958 = vadd.f32 0.0, %v957
        %v959 = vpop.f32.mrb[0].mxu0
        %960 = vmatprep.mubr.f32.mxu0 0.0
        %961 = vmatmul.mubr.f32.gmra.mrb[0].mxu0 %v575
        %v962 = vpop.f32.mrb[0].mxu0
        %v963 = vadd.f32 0.0, %v962
        %v964 = vpop.f32.mrb[0].mxu0
        %965 = vmatprep.mubr.f32.mxu0 0.0
        %966 = vmatmul.mubr.f32.gmra.mrb[0].mxu0 %v578
        %v967 = vpop.f32.mrb[0].mxu0
        %v968 = vadd.f32 0.0, %v967
        %v969 = vpop.f32.mrb[0].mxu0
        %970 = vmatprep.mubr.f32.mxu0 0.0
        %971 = vmatmul.mubr.f32.gmra.mrb[0].mxu0 %v581
        %v972 = vpop.f32.mrb[0].mxu0
        %v973 = vadd.f32 0.0, %v972
        %v974 = vpop.f32.mrb[0].mxu0
        %975 = vmatprep.mubr.f32.mxu0 0.0
        %976 = vmatmul.mubr.f32.gmra.mrb[0].mxu0 %v584
        %v977 = vpop.f32.mrb[0].mxu0
        %v978 = vadd.f32 0.0, %v977
        %v979 = vpop.f32.mrb[0].mxu0
        %980 = vmatprep.mubr.f32.mxu0 0.0
        %981 = vmatmul.mubr.f32.gmra.mrb[0].mxu0 %v587
        %v982 = vpop.f32.mrb[0].mxu0
        %v983 = vadd.f32 0.0, %v982
        %v984 = vpop.f32.mrb[0].mxu0
        %985 = vmatprep.mubr.f32.mxu0 0.0
        %986 = vmatmul.mubr.f32.gmra.mrb[0].mxu0 %v590
        %v987 = vpop.f32.mrb[0].mxu0
        %v988 = vadd.f32 0.0, %v987
        %v989 = vpop.f32.mrb[0].mxu0
        %990 = vmatprep.mubr.f32.mxu0 0.0
        %991 = vmatmul.mubr.f32.gmra.mrb[0].mxu0 %v593
        %v992 = vpop.f32.mrb[0].mxu0
        %v993 = vadd.f32 0.0, %v992
        %v994 = vpop.f32.mrb[0].mxu0
        %995 = vmatprep.mubr.f32.mxu0 0.0
        %996 = vmatmul.mubr.f32.gmra.mrb[0].mxu0 %v596
        %v997 = vpop.f32.mrb[0].mxu0
        %v998 = vadd.f32 0.0, %v997
        %v999 = vpop.f32.mrb[0].mxu0
        %1000 = vmatprep.mubr.f32.mxu0 0.0
        %1001 = vmatmul.mubr.f32.gmra.mrb[0].mxu0 %v599
        %v1002 = vpop.f32.mrb[0].mxu0
        %v1003 = vadd.f32 0.0, %v1002
        %v1004 = vpop.f32.mrb[0].mxu0
        %1005 = vmatprep.mubr.f32.mxu0 0.0
        %1006 = vmatmul.mubr.f32.gmra.mrb[0].mxu0 %v602
        %v1007 = vpop.f32.mrb[0].mxu0
        %v1008 = vadd.f32 0.0, %v1007
        %v1009 = vpop.f32.mrb[0].mxu0
        %1010 = vmatprep.mubr.f32.mxu0 0.0
        %1011 = vmatmul.mubr.f32.gmra.mrb[0].mxu0 %v605
        %v1012 = vpop.f32.mrb[0].mxu0
        %v1013 = vadd.f32 0.0, %v1012
        %v1014 = vpop.f32.mrb[0].mxu0
        %1015 = vmatprep.mubr.f32.mxu0 0.0
        %1016 = vmatmul.mubr.f32.gmra.mrb[0].mxu0 %v608
        %v1017 = vpop.f32.mrb[0].mxu0
        %v1018 = vadd.f32 0.0, %v1017
        %v1019 = vpop.f32.mrb[0].mxu0
        %1020 = vmatprep.mubr.f32.mxu0 0.0
        %1021 = vmatmul.mubr.f32.gmra.mrb[0].mxu0 %v611
        %v1022 = vpop.f32.mrb[0].mxu0
        %v1023 = vadd.f32 0.0, %v1022
        %v1024 = vpop.f32.mrb[0].mxu0
        %1025 = vmatprep.mubr.f32.mxu0 0.0
        %1026 = vmatmul.mubr.f32.gmra.mrb[0].mxu0 %v614
        %v1027 = vpop.f32.mrb[0].mxu0
        %v1028 = vadd.f32 0.0, %v1027
        %v1029 = vpop.f32.mrb[0].mxu0
        %1030 = vmatprep.mubr.f32.mxu0 0.0
        %1031 = vmatmul.mubr.f32.gmra.mrb[0].mxu0 %v617
        %v1032 = vpop.f32.mrb[0].mxu0
        %v1033 = vadd.f32 0.0, %v1032
        %v1034 = vpop.f32.mrb[0].mxu0
        %1035 = vmatprep.mubr.f32.mxu0 0.0
        %1036 = vmatmul.mubr.f32.gmra.mrb[0].mxu0 %v620
        %v1037 = vpop.f32.mrb[0].mxu0
        %v1038 = vadd.f32 0.0, %v1037
        %v1039 = vpop.f32.mrb[0].mxu0
        %1040 = vmatprep.mubr.f32.mxu0 0.0
        %1041 = vmatmul.mubr.f32.gmra.mrb[0].mxu0 %v623
        %v1042 = vpop.f32.mrb[0].mxu0
        %v1043 = vadd.f32 0.0, %v1042
        %v1044 = vpop.f32.mrb[0].mxu0
        %1045 = vmatprep.mubr.f32.mxu0 0.0
        %1046 = vmatmul.mubr.f32.gmra.mrb[0].mxu0 %v626
        %v1047 = vpop.f32.mrb[0].mxu0
        %v1048 = vadd.f32 0.0, %v1047
        %v1049 = vpop.f32.mrb[0].mxu0
        %1050 = vmatprep.mubr.f32.mxu0 0.0
        %1051 = vmatmul.mubr.f32.gmra.mrb[0].mxu0 %v629
        %v1052 = vpop.f32.mrb[0].mxu0
        %v1053 = vadd.f32 0.0, %v1052
        %v1054 = vpop.f32.mrb[0].mxu0
        %1055 = vmatprep.mubr.f32.mxu0 0.0
        %1056 = vmatmul.mubr.f32.gmra.mrb[0].mxu0 %v632
        %v1057 = vpop.f32.mrb[0].mxu0
        %v1058 = vadd.f32 0.0, %v1057
        %v1059 = vpop.f32.mrb[0].mxu0
        %1060 = vmatprep.mubr.f32.mxu0 0.0
        %1061 = vmatmul.mubr.f32.gmra.mrb[0].mxu0 %v635
        %v1062 = vpop.f32.mrb[0].mxu0
        %v1063 = vadd.f32 0.0, %v1062
        %v1064 = vpop.f32.mrb[0].mxu0
        %1065 = vmatprep.mubr.f32.mxu0 0.0
        %1066 = vmatmul.mubr.f32.gmra.mrb[0].mxu0 %v638
        %v1067 = vpop.f32.mrb[0].mxu0
        %v1068 = vadd.f32 0.0, %v1067
        %v1069 = vpop.f32.mrb[0].mxu0
        %1070 = vmatprep.mubr.f32.mxu0 0.0
        %1071 = vmatmul.mubr.f32.gmra.mrb[0].mxu0 %v641
        %v1072 = vpop.f32.mrb[0].mxu0
        %v1073 = vadd.f32 0.0, %v1072
        %v1074 = vpop.f32.mrb[0].mxu0
        %1075 = vmatprep.mubr.f32.mxu0 0.0
        %1076 = vmatmul.mubr.f32.gmra.mrb[0].mxu0 %v644
        %v1077 = vpop.f32.mrb[0].mxu0
        %v1078 = vadd.f32 0.0, %v1077
        %v1079 = vpop.f32.mrb[0].mxu0
        %1080 = vmatprep.mubr.f32.mxu0 0.0
        %1081 = vmatmul.mubr.f32.gmra.mrb[0].mxu0 %v647
        %v1082 = vpop.f32.mrb[0].mxu0
        %v1083 = vadd.f32 0.0, %v1082
        %v1084 = vpop.f32.mrb[0].mxu0
        %1085 = vmatprep.mubr.f32.mxu0 0.0
        %1086 = vmatmul.mubr.f32.gmra.mrb[0].mxu0 %v650
        %v1087 = vpop.f32.mrb[0].mxu0
        %v1088 = vadd.f32 0.0, %v1087
        %v1089 = vpop.f32.mrb[0].mxu0
        %1090 = vmatprep.mubr.f32.mxu0 0.0
        %1091 = vmatmul.mubr.f32.gmra.mrb[0].mxu0 %v653
        %v1092 = vpop.f32.mrb[0].mxu0
        %v1093 = vadd.f32 0.0, %v1092
        %v1094 = vpop.f32.mrb[0].mxu0
        %1095 = vmatprep.mubr.f32.mxu0 0.0
        %1096 = vmatmul.mubr.f32.gmra.mrb[0].mxu0 %v656
        %v1097 = vpop.f32.mrb[0].mxu0
        %v1098 = vadd.f32 0.0, %v1097
        %v1099 = vpop.f32.mrb[0].mxu0
        %1100 = vmatprep.mubr.f32.mxu0 0.0
        %1101 = vmatmul.mubr.f32.gmra.mrb[0].mxu0 %v659
        %v1102 = vpop.f32.mrb[0].mxu0
        %v1103 = vadd.f32 0.0, %v1102
        %v1104 = vpop.f32.mrb[0].mxu0
        %1105 = vmatprep.mubr.f32.mxu0 0.0
        %1106 = vmatmul.mubr.f32.gmra.mrb[0].mxu0 %v662
        %v1107 = vpop.f32.mrb[0].mxu0
        %v1108 = vadd.f32 0.0, %v1107
        %v1109 = vpop.f32.mrb[0].mxu0
        %1110 = vmatprep.mubr.f32.mxu0 0.0
        %1111 = vmatmul.mubr.f32.gmra.mrb[0].mxu0 %v665
        %v1112 = vpop.f32.mrb[0].mxu0
        %v1113 = vadd.f32 0.0, %v1112
        %v1114 = vpop.f32.mrb[0].mxu0
        %1115 = vmatprep.mubr.f32.mxu0 0.0
        %1116 = vmatmul.mubr.f32.gmra.mrb[0].mxu0 %v668
        %v1117 = vpop.f32.mrb[0].mxu0
        %v1118 = vadd.f32 0.0, %v1117
        %v1119 = vpop.f32.mrb[0].mxu0
        %1120 = vmatprep.mubr.f32.mxu0 0.0
        %1121 = vmatmul.mubr.f32.gmra.mrb[0].mxu0 %v671
        %v1122 = vpop.f32.mrb[0].mxu0
        %v1123 = vadd.f32 0.0, %v1122
        %v1124 = vpop.f32.mrb[0].mxu0
        %1125 = vmatprep.mubr.f32.mxu0 0.0
        %1126 = vmatmul.mubr.f32.gmra.mrb[0].mxu0 %v674
        %v1127 = vpop.f32.mrb[0].mxu0
        %v1128 = vadd.f32 0.0, %v1127
        %v1129 = vpop.f32.mrb[0].mxu0
        %1130 = vmatprep.mubr.f32.mxu0 0.0
        %1131 = vmatmul.mubr.f32.gmra.mrb[0].mxu0 %v677
        %v1132 = vpop.f32.mrb[0].mxu0
        %v1133 = vadd.f32 0.0, %v1132
        %v1134 = vpop.f32.mrb[0].mxu0
        %1135 = vmatprep.mubr.f32.mxu0 0.0
        %1136 = vmatmul.mubr.f32.gmra.mrb[0].mxu0 %v680
        %v1137 = vpop.f32.mrb[0].mxu0
        %v1138 = vadd.f32 0.0, %v1137
        %v1139 = vpop.f32.mrb[0].mxu0
        %1140 = vmatprep.mubr.f32.mxu0 0.0
        %1141 = vmatmul.mubr.f32.gmra.mrb[0].mxu0 %v683
        %v1142 = vpop.f32.mrb[0].mxu0
        %v1143 = vadd.f32 0.0, %v1142
        %v1144 = vpop.f32.mrb[0].mxu0
        %1145 = vmatprep.mubr.f32.mxu0 0.0
        %1146 = vmatmul.mubr.f32.gmra.mrb[0].mxu0 %v686
        %v1147 = vpop.f32.mrb[0].mxu0
        %v1148 = vadd.f32 0.0, %v1147
        %v1149 = vpop.f32.mrb[0].mxu0
        %1150 = vmatprep.mubr.f32.mxu0 0.0
        %1151 = vmatmul.mubr.f32.gmra.mrb[0].mxu0 %v689
        %v1152 = vpop.f32.mrb[0].mxu0
        %v1153 = vadd.f32 0.0, %v1152
        %v1154 = vpop.f32.mrb[0].mxu0
        %1155 = vmatprep.mubr.f32.mxu0 0.0
        %1156 = vmatmul.mubr.f32.gmra.mrb[0].mxu0 %v692
        %v1157 = vpop.f32.mrb[0].mxu0
        %v1158 = vadd.f32 0.0, %v1157
        %v1159 = vpop.f32.mrb[0].mxu0
        %1160 = vmatprep.mubr.f32.mxu0 0.0
        %1161 = vmatmul.mubr.f32.gmra.mrb[0].mxu0 %v695
        %v1162 = vpop.f32.mrb[0].mxu0
        %v1163 = vadd.f32 0.0, %v1162
        %v1164 = vpop.f32.mrb[0].mxu0
        %1165 = vdwg.mxu0
        %v1166 = vadd.f32 %v371, %v768
        %v1167 = vadd.f32 %v372, %v773
        %v1168 = vadd.f32 %v373, %v778
        %v1169 = vadd.f32 %v374, %v783
        %v1170 = vadd.f32 %v375, %v788
        %v1171 = vadd.f32 %v376, %v793
        %v1172 = vadd.f32 %v377, %v798
        %v1173 = vadd.f32 %v378, %v803
        %v1174 = vadd.f32 %v379, %v808
        %v1175 = vadd.f32 %v380, %v813
        %v1176 = vadd.f32 %v381, %v818
        %v1177 = vadd.f32 %v382, %v823
        %v1178 = vadd.f32 %v383, %v828
        %v1179 = vadd.f32 %v384, %v833
        %v1180 = vadd.f32 %v385, %v838
        %v1181 = vadd.f32 %v386, %v843
        %v1182 = vadd.f32 %v387, %v848
        %v1183 = vadd.f32 %v388, %v853
        %v1184 = vadd.f32 %v389, %v858
        %v1185 = vadd.f32 %v390, %v863
        %v1186 = vadd.f32 %v391, %v868
        %v1187 = vadd.f32 %v392, %v873
        %v1188 = vadd.f32 %v393, %v878
        %v1189 = vadd.f32 %v394, %v883
        %v1190 = vadd.f32 %v395, %v888
        %v1191 = vadd.f32 %v396, %v893
        %v1192 = vadd.f32 %v397, %v898
        %v1193 = vadd.f32 %v398, %v903
        %v1194 = vadd.f32 %v399, %v908
        %v1195 = vadd.f32 %v400, %v913
        %v1196 = vadd.f32 %v401, %v918
        %v1197 = vadd.f32 %v402, %v923
        %v1198 = vadd.f32 %v403, %v928
        %v1199 = vadd.f32 %v404, %v933
        %v1200 = vadd.f32 %v405, %v938
        %v1201 = vadd.f32 %v406, %v943
        %v1202 = vadd.f32 %v407, %v948
        %v1203 = vadd.f32 %v408, %v953
        %v1204 = vadd.f32 %v409, %v958
        %v1205 = vadd.f32 %v410, %v963
        %v1206 = vadd.f32 %v411, %v968
        %v1207 = vadd.f32 %v412, %v973
        %v1208 = vadd.f32 %v413, %v978
        %v1209 = vadd.f32 %v414, %v983
        %v1210 = vadd.f32 %v415, %v988
        %v1211 = vadd.f32 %v416, %v993
        %v1212 = vadd.f32 %v417, %v998
        %v1213 = vadd.f32 %v418, %v1003
        %v1214 = vadd.f32 %v419, %v1008
        %v1215 = vadd.f32 %v420, %v1013
        %v1216 = vadd.f32 %v421, %v1018
        %v1217 = vadd.f32 %v422, %v1023
        %v1218 = vadd.f32 %v423, %v1028
        %v1219 = vadd.f32 %v424, %v1033
        %v1220 = vadd.f32 %v425, %v1038
        %v1221 = vadd.f32 %v426, %v1043
        %v1222 = vadd.f32 %v427, %v1048
        %v1223 = vadd.f32 %v428, %v1053
        %v1224 = vadd.f32 %v429, %v1058
        %v1225 = vadd.f32 %v430, %v1063
        %v1226 = vadd.f32 %v431, %v1068
        %v1227 = vadd.f32 %v432, %v1073
        %v1228 = vadd.f32 %v433, %v1078
        %v1229 = vadd.f32 %v434, %v1083
        %v1230 = vadd.f32 %v435, %v1088
        %v1231 = vadd.f32 %v436, %v1093
        %v1232 = vadd.f32 %v437, %v1098
        %v1233 = vadd.f32 %v438, %v1103
        %v1234 = vadd.f32 %v439, %v1108
        %v1235 = vadd.f32 %v440, %v1113
        %v1236 = vadd.f32 %v441, %v1118
        %v1237 = vadd.f32 %v442, %v1123
        %v1238 = vadd.f32 %v443, %v1128
        %v1239 = vadd.f32 %v444, %v1133
        %v1240 = vadd.f32 %v445, %v1138
        %v1241 = vadd.f32 %v446, %v1143
        %v1242 = vadd.f32 %v447, %v1148
        %v1243 = vadd.f32 %v448, %v1153
        %v1244 = vadd.f32 %v449, %v1158
        %v1245 = vadd.f32 %v450, %v1163
        %1246 = vst.msk [vmem:[#allocation2] sm:$0xff] %vm202, %v1166
        %1247 = vst.msk [vmem:[#allocation2 + $0x8] sm:$0xff] %vm202, %v1167
        %1248 = vst.msk [vmem:[#allocation2 + $0x10] sm:$0xff] %vm202, %v1168
        %1249 = vst.msk [vmem:[#allocation2 + $0x18] sm:$0xff] %vm202, %v1169
        %1250 = vst.msk [vmem:[#allocation2 + $0x20] sm:$0xff] %vm202, %v1170
        %1251 = vst.msk [vmem:[#allocation2 + $0x28] sm:$0xff] %vm202, %v1171
        %1252 = vst.msk [vmem:[#allocation2 + $0x30] sm:$0xff] %vm202, %v1172
        %1253 = vst.msk [vmem:[#allocation2 + $0x38] sm:$0xff] %vm202, %v1173
        %1254 = vst.msk [vmem:[#allocation2 + $0x40] sm:$0xff] %vm202, %v1174
        %1255 = vst.msk [vmem:[#allocation2 + $0x48] sm:$0xff] %vm202, %v1175
        %1256 = vst.msk [vmem:[#allocation2 + $0x50] sm:$0xff] %vm202, %v1176
        %1257 = vst.msk [vmem:[#allocation2 + $0x58] sm:$0xff] %vm202, %v1177
        %1258 = vst.msk [vmem:[#allocation2 + $0x60] sm:$0xff] %vm202, %v1178
        %1259 = vst.msk [vmem:[#allocation2 + $0x68] sm:$0xff] %vm202, %v1179
        %1260 = vst.msk [vmem:[#allocation2 + $0x70] sm:$0xff] %vm202, %v1180
        %1261 = vst.msk [vmem:[#allocation2 + $0x78] sm:$0xff] %vm202, %v1181
        %1262 = vst.msk [vmem:[#allocation2 + $0x80] sm:$0xff] %vm202, %v1182
        %1263 = vst.msk [vmem:[#allocation2 + $0x88] sm:$0xff] %vm202, %v1183
        %1264 = vst.msk [vmem:[#allocation2 + $0x90] sm:$0xff] %vm202, %v1184
        %1265 = vst.msk [vmem:[#allocation2 + $0x98] sm:$0xff] %vm202, %v1185
        %1266 = vst.msk [vmem:[#allocation2 + $0xa0] sm:$0xff] %vm202, %v1186
        %1267 = vst.msk [vmem:[#allocation2 + $0xa8] sm:$0xff] %vm202, %v1187
        %1268 = vst.msk [vmem:[#allocation2 + $0xb0] sm:$0xff] %vm202, %v1188
        %1269 = vst.msk [vmem:[#allocation2 + $0xb8] sm:$0xff] %vm202, %v1189
        %1270 = vst.msk [vmem:[#allocation2 + $0xc0] sm:$0xff] %vm202, %v1190
        %1271 = vst.msk [vmem:[#allocation2 + $0xc8] sm:$0xff] %vm202, %v1191
        %1272 = vst.msk [vmem:[#allocation2 + $0xd0] sm:$0xff] %vm202, %v1192
        %1273 = vst.msk [vmem:[#allocation2 + $0xd8] sm:$0xff] %vm202, %v1193
        %1274 = vst.msk [vmem:[#allocation2 + $0xe0] sm:$0xff] %vm202, %v1194
        %1275 = vst.msk [vmem:[#allocation2 + $0xe8] sm:$0xff] %vm202, %v1195
        %1276 = vst.msk [vmem:[#allocation2 + $0xf0] sm:$0xff] %vm202, %v1196
        %1277 = vst.msk [vmem:[#allocation2 + $0xf8] sm:$0xff] %vm202, %v1197
        %1278 = vst.msk [vmem:[#allocation2 + $0x100] sm:$0xff] %vm202, %v1198
        %1279 = vst.msk [vmem:[#allocation2 + $0x108] sm:$0xff] %vm202, %v1199
        %1280 = vst.msk [vmem:[#allocation2 + $0x110] sm:$0xff] %vm202, %v1200
        %1281 = vst.msk [vmem:[#allocation2 + $0x118] sm:$0xff] %vm202, %v1201
        %1282 = vst.msk [vmem:[#allocation2 + $0x120] sm:$0xff] %vm202, %v1202
        %1283 = vst.msk [vmem:[#allocation2 + $0x128] sm:$0xff] %vm202, %v1203
        %1284 = vst.msk [vmem:[#allocation2 + $0x130] sm:$0xff] %vm202, %v1204
        %1285 = vst.msk [vmem:[#allocation2 + $0x138] sm:$0xff] %vm202, %v1205
        %1286 = vst.msk [vmem:[#allocation2 + $0x140] sm:$0xff] %vm202, %v1206
        %1287 = vst.msk [vmem:[#allocation2 + $0x148] sm:$0xff] %vm202, %v1207
        %1288 = vst.msk [vmem:[#allocation2 + $0x150] sm:$0xff] %vm202, %v1208
        %1289 = vst.msk [vmem:[#allocation2 + $0x158] sm:$0xff] %vm202, %v1209
        %1290 = vst.msk [vmem:[#allocation2 + $0x160] sm:$0xff] %vm202, %v1210
        %1291 = vst.msk [vmem:[#allocation2 + $0x168] sm:$0xff] %vm202, %v1211
        %1292 = vst.msk [vmem:[#allocation2 + $0x170] sm:$0xff] %vm202, %v1212
        %1293 = vst.msk [vmem:[#allocation2 + $0x178] sm:$0xff] %vm202, %v1213
        %1294 = vst.msk [vmem:[#allocation2 + $0x180] sm:$0xff] %vm202, %v1214
        %1295 = vst.msk [vmem:[#allocation2 + $0x188] sm:$0xff] %vm202, %v1215
        %1296 = vst.msk [vmem:[#allocation2 + $0x190] sm:$0xff] %vm202, %v1216
        %1297 = vst.msk [vmem:[#allocation2 + $0x198] sm:$0xff] %vm202, %v1217
        %1298 = vst.msk [vmem:[#allocation2 + $0x1a0] sm:$0xff] %vm202, %v1218
        %1299 = vst.msk [vmem:[#allocation2 + $0x1a8] sm:$0xff] %vm202, %v1219
        %1300 = vst.msk [vmem:[#allocation2 + $0x1b0] sm:$0xff] %vm202, %v1220
        %1301 = vst.msk [vmem:[#allocation2 + $0x1b8] sm:$0xff] %vm202, %v1221
        %1302 = vst.msk [vmem:[#allocation2 + $0x1c0] sm:$0xff] %vm202, %v1222
        %1303 = vst.msk [vmem:[#allocation2 + $0x1c8] sm:$0xff] %vm202, %v1223
        %1304 = vst.msk [vmem:[#allocation2 + $0x1d0] sm:$0xff] %vm202, %v1224
        %1305 = vst.msk [vmem:[#allocation2 + $0x1d8] sm:$0xff] %vm202, %v1225
        %1306 = vst.msk [vmem:[#allocation2 + $0x1e0] sm:$0xff] %vm202, %v1226
        %1307 = vst.msk [vmem:[#allocation2 + $0x1e8] sm:$0xff] %vm202, %v1227
        %1308 = vst.msk [vmem:[#allocation2 + $0x1f0] sm:$0xff] %vm202, %v1228
        %1309 = vst.msk [vmem:[#allocation2 + $0x1f8] sm:$0xff] %vm202, %v1229
        %1310 = vst.msk [vmem:[#allocation2 + $0x200] sm:$0xff] %vm202, %v1230
        %1311 = vst.msk [vmem:[#allocation2 + $0x208] sm:$0xff] %vm202, %v1231
        %1312 = vst.msk [vmem:[#allocation2 + $0x210] sm:$0xff] %vm202, %v1232
        %1313 = vst.msk [vmem:[#allocation2 + $0x218] sm:$0xff] %vm202, %v1233
        %1314 = vst.msk [vmem:[#allocation2 + $0x220] sm:$0xff] %vm202, %v1234
        %1315 = vst.msk [vmem:[#allocation2 + $0x228] sm:$0xff] %vm202, %v1235
        %1316 = vst.msk [vmem:[#allocation2 + $0x230] sm:$0xff] %vm202, %v1236
        %1317 = vst.msk [vmem:[#allocation2 + $0x238] sm:$0xff] %vm202, %v1237
        %1318 = vst.msk [vmem:[#allocation2 + $0x240] sm:$0xff] %vm202, %v1238
        %1319 = vst.msk [vmem:[#allocation2 + $0x248] sm:$0xff] %vm202, %v1239
        %1320 = vst.msk [vmem:[#allocation2 + $0x250] sm:$0xff] %vm202, %v1240
        %1321 = vst.msk [vmem:[#allocation2 + $0x258] sm:$0xff] %vm202, %v1241
        %1322 = vst.msk [vmem:[#allocation2 + $0x260] sm:$0xff] %vm202, %v1242
        %1323 = vst.msk [vmem:[#allocation2 + $0x268] sm:$0xff] %vm202, %v1243
        %1324 = vst.msk [vmem:[#allocation2 + $0x270] sm:$0xff] %vm202, %v1244
        %1325 = vst.msk [vmem:[#allocation2 + $0x278] sm:$0xff] %vm202, %v1245
      $region37: #{pose_encoder_style_forward.4} parent=31 // loop_footer
        %s288 = sadd.s32 1, %s284
      $region38: #{pose_encoder_style_forward.4} parent=31 // loop_footer_branch
        %283 = sbr.rel target = $region34
      $region39: #{pose_encoder_style_forward.4} parent=31 // loop_exit
        _
      %v1326 = vld [vmem:[#allocation2] sm:$0xff]
      %v1327 = vld [vmem:[#allocation2 + $0x8] sm:$0xff]
      %v1328 = vld [vmem:[#allocation2 + $0x10] sm:$0xff]
      %v1329 = vld [vmem:[#allocation2 + $0x18] sm:$0xff]
      %v1330 = vld [vmem:[#allocation2 + $0x20] sm:$0xff]
      %v1331 = vld [vmem:[#allocation2 + $0x28] sm:$0xff]
      %v1332 = vld [vmem:[#allocation2 + $0x30] sm:$0xff]
      %v1333 = vld [vmem:[#allocation2 + $0x38] sm:$0xff]
      %v1334 = vld [vmem:[#allocation2 + $0x40] sm:$0xff]
      %v1335 = vld [vmem:[#allocation2 + $0x48] sm:$0xff]
      %v1336 = vld [vmem:[#allocation2 + $0x50] sm:$0xff]
      %v1337 = vld [vmem:[#allocation2 + $0x58] sm:$0xff]
      %v1338 = vld [vmem:[#allocation2 + $0x60] sm:$0xff]
      %v1339 = vld [vmem:[#allocation2 + $0x68] sm:$0xff]
      %v1340 = vld [vmem:[#allocation2 + $0x70] sm:$0xff]
      %v1341 = vld [vmem:[#allocation2 + $0x78] sm:$0xff]
      %v1342 = vld [vmem:[#allocation2 + $0x80] sm:$0xff]
      %v1343 = vld [vmem:[#allocation2 + $0x88] sm:$0xff]
      %v1344 = vld [vmem:[#allocation2 + $0x90] sm:$0xff]
      %v1345 = vld [vmem:[#allocation2 + $0x98] sm:$0xff]
      %v1346 = vld [vmem:[#allocation2 + $0xa0] sm:$0xff]
      %v1347 = vld [vmem:[#allocation2 + $0xa8] sm:$0xff]
      %v1348 = vld [vmem:[#allocation2 + $0xb0] sm:$0xff]
      %v1349 = vld [vmem:[#allocation2 + $0xb8] sm:$0xff]
      %v1350 = vld [vmem:[#allocation2 + $0xc0] sm:$0xff]
      %v1351 = vld [vmem:[#allocation2 + $0xc8] sm:$0xff]
      %v1352 = vld [vmem:[#allocation2 + $0xd0] sm:$0xff]
      %v1353 = vld [vmem:[#allocation2 + $0xd8] sm:$0xff]
      %v1354 = vld [vmem:[#allocation2 + $0xe0] sm:$0xff]
      %v1355 = vld [vmem:[#allocation2 + $0xe8] sm:$0xff]
      %v1356 = vld [vmem:[#allocation2 + $0xf0] sm:$0xff]
      %v1357 = vld [vmem:[#allocation2 + $0xf8] sm:$0xff]
      %v1358 = vld [vmem:[#allocation2 + $0x100] sm:$0xff]
      %v1359 = vld [vmem:[#allocation2 + $0x108] sm:$0xff]
      %v1360 = vld [vmem:[#allocation2 + $0x110] sm:$0xff]
      %v1361 = vld [vmem:[#allocation2 + $0x118] sm:$0xff]
      %v1362 = vld [vmem:[#allocation2 + $0x120] sm:$0xff]
      %v1363 = vld [vmem:[#allocation2 + $0x128] sm:$0xff]
      %v1364 = vld [vmem:[#allocation2 + $0x130] sm:$0xff]
      %v1365 = vld [vmem:[#allocation2 + $0x138] sm:$0xff]
      %v1366 = vld [vmem:[#allocation2 + $0x140] sm:$0xff]
      %v1367 = vld [vmem:[#allocation2 + $0x148] sm:$0xff]
      %v1368 = vld [vmem:[#allocation2 + $0x150] sm:$0xff]
      %v1369 = vld [vmem:[#allocation2 + $0x158] sm:$0xff]
      %v1370 = vld [vmem:[#allocation2 + $0x160] sm:$0xff]
      %v1371 = vld [vmem:[#allocation2 + $0x168] sm:$0xff]
      %v1372 = vld [vmem:[#allocation2 + $0x170] sm:$0xff]
      %v1373 = vld [vmem:[#allocation2 + $0x178] sm:$0xff]
      %v1374 = vld [vmem:[#allocation2 + $0x180] sm:$0xff]
      %v1375 = vld [vmem:[#allocation2 + $0x188] sm:$0xff]
      %v1376 = vld [vmem:[#allocation2 + $0x190] sm:$0xff]
      %v1377 = vld [vmem:[#allocation2 + $0x198] sm:$0xff]
      %v1378 = vld [vmem:[#allocation2 + $0x1a0] sm:$0xff]
      %v1379 = vld [vmem:[#allocation2 + $0x1a8] sm:$0xff]
      %v1380 = vld [vmem:[#allocation2 + $0x1b0] sm:$0xff]
      %v1381 = vld [vmem:[#allocation2 + $0x1b8] sm:$0xff]
      %v1382 = vld [vmem:[#allocation2 + $0x1c0] sm:$0xff]
      %v1383 = vld [vmem:[#allocation2 + $0x1c8] sm:$0xff]
      %v1384 = vld [vmem:[#allocation2 + $0x1d0] sm:$0xff]
      %v1385 = vld [vmem:[#allocation2 + $0x1d8] sm:$0xff]
      %v1386 = vld [vmem:[#allocation2 + $0x1e0] sm:$0xff]
      %v1387 = vld [vmem:[#allocation2 + $0x1e8] sm:$0xff]
      %v1388 = vld [vmem:[#allocation2 + $0x1f0] sm:$0xff]
      %v1389 = vld [vmem:[#allocation2 + $0x1f8] sm:$0xff]
      %v1390 = vld [vmem:[#allocation2 + $0x200] sm:$0xff]
      %v1391 = vld [vmem:[#allocation2 + $0x208] sm:$0xff]
      %v1392 = vld [vmem:[#allocation2 + $0x210] sm:$0xff]
      %v1393 = vld [vmem:[#allocation2 + $0x218] sm:$0xff]
      %v1394 = vld [vmem:[#allocation2 + $0x220] sm:$0xff]
      %v1395 = vld [vmem:[#allocation2 + $0x228] sm:$0xff]
      %v1396 = vld [vmem:[#allocation2 + $0x230] sm:$0xff]
      %v1397 = vld [vmem:[#allocation2 + $0x238] sm:$0xff]
      %v1398 = vld [vmem:[#allocation2 + $0x240] sm:$0xff]
      %v1399 = vld [vmem:[#allocation2 + $0x248] sm:$0xff]
      %v1400 = vld [vmem:[#allocation2 + $0x250] sm:$0xff]
      %v1401 = vld [vmem:[#allocation2 + $0x258] sm:$0xff]
      %v1402 = vld [vmem:[#allocation2 + $0x260] sm:$0xff]
      %v1403 = vld [vmem:[#allocation2 + $0x268] sm:$0xff]
      %v1404 = vld [vmem:[#allocation2 + $0x270] sm:$0xff]
      %v1405 = vld [vmem:[#allocation2 + $0x278] sm:$0xff]
      %v1406 = vmax.f32 %v1326, 0.0
      %v1407 = vmax.f32 %v1327, 0.0
      %v1408 = vmax.f32 %v1328, 0.0
      %v1409 = vmax.f32 %v1329, 0.0
      %v1410 = vmax.f32 %v1330, 0.0
      %v1411 = vmax.f32 %v1331, 0.0
      %v1412 = vmax.f32 %v1332, 0.0
      %v1413 = vmax.f32 %v1333, 0.0
      %v1414 = vmax.f32 %v1334, 0.0
      %v1415 = vmax.f32 %v1335, 0.0
      %v1416 = vmax.f32 %v1336, 0.0
      %v1417 = vmax.f32 %v1337, 0.0
      %v1418 = vmax.f32 %v1338, 0.0
      %v1419 = vmax.f32 %v1339, 0.0
      %v1420 = vmax.f32 %v1340, 0.0
      %v1421 = vmax.f32 %v1341, 0.0
      %v1422 = vmax.f32 %v1342, 0.0
      %v1423 = vmax.f32 %v1343, 0.0
      %v1424 = vmax.f32 %v1344, 0.0
      %v1425 = vmax.f32 %v1345, 0.0
      %v1426 = vmax.f32 %v1346, 0.0
      %v1427 = vmax.f32 %v1347, 0.0
      %v1428 = vmax.f32 %v1348, 0.0
      %v1429 = vmax.f32 %v1349, 0.0
      %v1430 = vmax.f32 %v1350, 0.0
      %v1431 = vmax.f32 %v1351, 0.0
      %v1432 = vmax.f32 %v1352, 0.0
      %v1433 = vmax.f32 %v1353, 0.0
      %v1434 = vmax.f32 %v1354, 0.0
      %v1435 = vmax.f32 %v1355, 0.0
      %v1436 = vmax.f32 %v1356, 0.0
      %v1437 = vmax.f32 %v1357, 0.0
      %v1438 = vmax.f32 %v1358, 0.0
      %v1439 = vmax.f32 %v1359, 0.0
      %v1440 = vmax.f32 %v1360, 0.0
      %v1441 = vmax.f32 %v1361, 0.0
      %v1442 = vmax.f32 %v1362, 0.0
      %v1443 = vmax.f32 %v1363, 0.0
      %v1444 = vmax.f32 %v1364, 0.0
      %v1445 = vmax.f32 %v1365, 0.0
      %v1446 = vmax.f32 %v1366, 0.0
      %v1447 = vmax.f32 %v1367, 0.0
      %v1448 = vmax.f32 %v1368, 0.0
      %v1449 = vmax.f32 %v1369, 0.0
      %v1450 = vmax.f32 %v1370, 0.0
      %v1451 = vmax.f32 %v1371, 0.0
      %v1452 = vmax.f32 %v1372, 0.0
      %v1453 = vmax.f32 %v1373, 0.0
      %v1454 = vmax.f32 %v1374, 0.0
      %v1455 = vmax.f32 %v1375, 0.0
      %v1456 = vmax.f32 %v1376, 0.0
      %v1457 = vmax.f32 %v1377, 0.0
      %v1458 = vmax.f32 %v1378, 0.0
      %v1459 = vmax.f32 %v1379, 0.0
      %v1460 = vmax.f32 %v1380, 0.0
      %v1461 = vmax.f32 %v1381, 0.0
      %v1462 = vmax.f32 %v1382, 0.0
      %v1463 = vmax.f32 %v1383, 0.0
      %v1464 = vmax.f32 %v1384, 0.0
      %v1465 = vmax.f32 %v1385, 0.0
      %v1466 = vmax.f32 %v1386, 0.0
      %v1467 = vmax.f32 %v1387, 0.0
      %v1468 = vmax.f32 %v1388, 0.0
      %v1469 = vmax.f32 %v1389, 0.0
      %v1470 = vmax.f32 %v1390, 0.0
      %v1471 = vmax.f32 %v1391, 0.0
      %v1472 = vmax.f32 %v1392, 0.0
      %v1473 = vmax.f32 %v1393, 0.0
      %v1474 = vmax.f32 %v1394, 0.0
      %v1475 = vmax.f32 %v1395, 0.0
      %v1476 = vmax.f32 %v1396, 0.0
      %v1477 = vmax.f32 %v1397, 0.0
      %v1478 = vmax.f32 %v1398, 0.0
      %v1479 = vmax.f32 %v1399, 0.0
      %v1480 = vmax.f32 %v1400, 0.0
      %v1481 = vmax.f32 %v1401, 0.0
      %v1482 = vmax.f32 %v1402, 0.0
      %v1483 = vmax.f32 %v1403, 0.0
      %v1484 = vmax.f32 %v1404, 0.0
      %v1485 = vmax.f32 %v1405, 0.0
      %1486 = vst.msk [vmem:[%s192] sm:$0xff] %vm202, %v1406
      %1487 = vst.msk [vmem:[%s192 + $0x8] sm:$0xff] %vm202, %v1407
      %1488 = vst.msk [vmem:[%s192 + $0x10] sm:$0xff] %vm202, %v1408
      %1489 = vst.msk [vmem:[%s192 + $0x18] sm:$0xff] %vm202, %v1409
      %1490 = vst.msk [vmem:[%s192 + $0x20] sm:$0xff] %vm202, %v1410
      %1491 = vst.msk [vmem:[%s192 + $0x28] sm:$0xff] %vm202, %v1411
      %1492 = vst.msk [vmem:[%s192 + $0x30] sm:$0xff] %vm202, %v1412
      %1493 = vst.msk [vmem:[%s192 + $0x38] sm:$0xff] %vm202, %v1413
      %1494 = vst.msk [vmem:[%s192 + $0x40] sm:$0xff] %vm202, %v1414
      %1495 = vst.msk [vmem:[%s192 + $0x48] sm:$0xff] %vm202, %v1415
      %1496 = vst.msk [vmem:[%s192 + $0x50] sm:$0xff] %vm202, %v1416
      %1497 = vst.msk [vmem:[%s192 + $0x58] sm:$0xff] %vm202, %v1417
      %1498 = vst.msk [vmem:[%s192 + $0x60] sm:$0xff] %vm202, %v1418
      %1499 = vst.msk [vmem:[%s192 + $0x68] sm:$0xff] %vm202, %v1419
      %1500 = vst.msk [vmem:[%s192 + $0x70] sm:$0xff] %vm202, %v1420
      %1501 = vst.msk [vmem:[%s192 + $0x78] sm:$0xff] %vm202, %v1421
      %1502 = vst.msk [vmem:[%s192 + $0x80] sm:$0xff] %vm202, %v1422
      %1503 = vst.msk [vmem:[%s192 + $0x88] sm:$0xff] %vm202, %v1423
      %1504 = vst.msk [vmem:[%s192 + $0x90] sm:$0xff] %vm202, %v1424
      %1505 = vst.msk [vmem:[%s192 + $0x98] sm:$0xff] %vm202, %v1425
      %1506 = vst.msk [vmem:[%s192 + $0xa0] sm:$0xff] %vm202, %v1426
      %1507 = vst.msk [vmem:[%s192 + $0xa8] sm:$0xff] %vm202, %v1427
      %1508 = vst.msk [vmem:[%s192 + $0xb0] sm:$0xff] %vm202, %v1428
      %1509 = vst.msk [vmem:[%s192 + $0xb8] sm:$0xff] %vm202, %v1429
      %1510 = vst.msk [vmem:[%s192 + $0xc0] sm:$0xff] %vm202, %v1430
      %1511 = vst.msk [vmem:[%s192 + $0xc8] sm:$0xff] %vm202, %v1431
      %1512 = vst.msk [vmem:[%s192 + $0xd0] sm:$0xff] %vm202, %v1432
      %1513 = vst.msk [vmem:[%s192 + $0xd8] sm:$0xff] %vm202, %v1433
      %1514 = vst.msk [vmem:[%s192 + $0xe0] sm:$0xff] %vm202, %v1434
      %1515 = vst.msk [vmem:[%s192 + $0xe8] sm:$0xff] %vm202, %v1435
      %1516 = vst.msk [vmem:[%s192 + $0xf0] sm:$0xff] %vm202, %v1436
      %1517 = vst.msk [vmem:[%s192 + $0xf8] sm:$0xff] %vm202, %v1437
      %1518 = vst.msk [vmem:[%s192 + $0x100] sm:$0xff] %vm202, %v1438
      %1519 = vst.msk [vmem:[%s192 + $0x108] sm:$0xff] %vm202, %v1439
      %1520 = vst.msk [vmem:[%s192 + $0x110] sm:$0xff] %vm202, %v1440
      %1521 = vst.msk [vmem:[%s192 + $0x118] sm:$0xff] %vm202, %v1441
      %1522 = vst.msk [vmem:[%s192 + $0x120] sm:$0xff] %vm202, %v1442
      %1523 = vst.msk [vmem:[%s192 + $0x128] sm:$0xff] %vm202, %v1443
      %1524 = vst.msk [vmem:[%s192 + $0x130] sm:$0xff] %vm202, %v1444
      %1525 = vst.msk [vmem:[%s192 + $0x138] sm:$0xff] %vm202, %v1445
      %1526 = vst.msk [vmem:[%s192 + $0x140] sm:$0xff] %vm202, %v1446
      %1527 = vst.msk [vmem:[%s192 + $0x148] sm:$0xff] %vm202, %v1447
      %1528 = vst.msk [vmem:[%s192 + $0x150] sm:$0xff] %vm202, %v1448
      %1529 = vst.msk [vmem:[%s192 + $0x158] sm:$0xff] %vm202, %v1449
      %1530 = vst.msk [vmem:[%s192 + $0x160] sm:$0xff] %vm202, %v1450
      %1531 = vst.msk [vmem:[%s192 + $0x168] sm:$0xff] %vm202, %v1451
      %1532 = vst.msk [vmem:[%s192 + $0x170] sm:$0xff] %vm202, %v1452
      %1533 = vst.msk [vmem:[%s192 + $0x178] sm:$0xff] %vm202, %v1453
      %1534 = vst.msk [vmem:[%s192 + $0x180] sm:$0xff] %vm202, %v1454
      %1535 = vst.msk [vmem:[%s192 + $0x188] sm:$0xff] %vm202, %v1455
      %1536 = vst.msk [vmem:[%s192 + $0x190] sm:$0xff] %vm202, %v1456
      %1537 = vst.msk [vmem:[%s192 + $0x198] sm:$0xff] %vm202, %v1457
      %1538 = vst.msk [vmem:[%s192 + $0x1a0] sm:$0xff] %vm202, %v1458
      %1539 = vst.msk [vmem:[%s192 + $0x1a8] sm:$0xff] %vm202, %v1459
      %1540 = vst.msk [vmem:[%s192 + $0x1b0] sm:$0xff] %vm202, %v1460
      %1541 = vst.msk [vmem:[%s192 + $0x1b8] sm:$0xff] %vm202, %v1461
      %1542 = vst.msk [vmem:[%s192 + $0x1c0] sm:$0xff] %vm202, %v1462
      %1543 = vst.msk [vmem:[%s192 + $0x1c8] sm:$0xff] %vm202, %v1463
      %1544 = vst.msk [vmem:[%s192 + $0x1d0] sm:$0xff] %vm202, %v1464
      %1545 = vst.msk [vmem:[%s192 + $0x1d8] sm:$0xff] %vm202, %v1465
      %1546 = vst.msk [vmem:[%s192 + $0x1e0] sm:$0xff] %vm202, %v1466
      %1547 = vst.msk [vmem:[%s192 + $0x1e8] sm:$0xff] %vm202, %v1467
      %1548 = vst.msk [vmem:[%s192 + $0x1f0] sm:$0xff] %vm202, %v1468
      %1549 = vst.msk [vmem:[%s192 + $0x1f8] sm:$0xff] %vm202, %v1469
      %1550 = vst.msk [vmem:[%s192 + $0x200] sm:$0xff] %vm202, %v1470
      %1551 = vst.msk [vmem:[%s192 + $0x208] sm:$0xff] %vm202, %v1471
      %1552 = vst.msk [vmem:[%s192 + $0x210] sm:$0xff] %vm202, %v1472
      %1553 = vst.msk [vmem:[%s192 + $0x218] sm:$0xff] %vm202, %v1473
      %1554 = vst.msk [vmem:[%s192 + $0x220] sm:$0xff] %vm202, %v1474
      %1555 = vst.msk [vmem:[%s192 + $0x228] sm:$0xff] %vm202, %v1475
      %1556 = vst.msk [vmem:[%s192 + $0x230] sm:$0xff] %vm202, %v1476
      %1557 = vst.msk [vmem:[%s192 + $0x238] sm:$0xff] %vm202, %v1477
      %1558 = vst.msk [vmem:[%s192 + $0x240] sm:$0xff] %vm202, %v1478
      %1559 = vst.msk [vmem:[%s192 + $0x248] sm:$0xff] %vm202, %v1479
      %1560 = vst.msk [vmem:[%s192 + $0x250] sm:$0xff] %vm202, %v1480
      %1561 = vst.msk [vmem:[%s192 + $0x258] sm:$0xff] %vm202, %v1481
      %1562 = vst.msk [vmem:[%s192 + $0x260] sm:$0xff] %vm202, %v1482
      %1563 = vst.msk [vmem:[%s192 + $0x268] sm:$0xff] %vm202, %v1483
      %1564 = vst.msk [vmem:[%s192 + $0x270] sm:$0xff] %vm202, %v1484
      %1565 = vst.msk [vmem:[%s192 + $0x278] sm:$0xff] %vm202, %v1485
      %s1566 = smul.u32 80, %s19
      %p1567 = scmp.lt.s32.totalorder %s18, 1
      %s1568 = scalar_select %p1567, %s18, 1
      %p1569 = scmp.lt.s32.totalorder %s1566, 159
      %s1570 = scalar_select %p1569, %s1566, 159
      %s1571 = smul.addr %s1568, 160
      %s1572 = sadd.s32 %s1570, %s1571
      %s1573 = smul.addr %s1572, 8
      %s1574 = scalar_lea.vmem %s3, %s1573
      // Predicated region
      $region40: #{pose_encoder_style_forward.4} parent=31 // pred_check
        %p1575 = pneg %p114
      $region41: #{pose_encoder_style_forward.4} parent=31 // pred_check_branch
        %1577 = sbr.rel (%p1575) target = $region43
      $region42: #{pose_encoder_style_forward.4} parent=31 // pred_region
        %s1578 = smul.u32 80, %s19
      $region43: #{pose_encoder_style_forward.4} parent=31 // pred_fallthru
        _
    $region32: #{pose_encoder_style_forward.4} parent=5 // pred_fallthru
      _
    %p1579 = scmp.le.s32.totalorder 2, %s9
    // Predicated region
    $region44: #{pose_encoder_style_forward.4} parent=5 // pred_check
      %p1580 = pneg %p1579
    $region45: #{pose_encoder_style_forward.4} parent=5 // pred_check_branch
      %1582 = sbr.rel (%p1580) target = $region47
    $region46: #{pose_encoder_style_forward.4} parent=5 // pred_region
      %s1583 = ssub.s32 %s9, 2
      // Predicated region
      $region48: #{pose_encoder_style_forward.4} parent=46 // pred_check
        %p1584 = pneg %p120
      $region49: #{pose_encoder_style_forward.4} parent=46 // pred_check_branch
        %1586 = sbr.rel (%p1584) target = $region51
      $region50: #{pose_encoder_style_forward.4} parent=46 // pred_region
        %s1587 = smul.u32 80, %s21
        %p1588 = scmp.lt.s32.totalorder %s20, 1
        %s1589 = scalar_select %p1588, %s20, 1
        %p1590 = scmp.lt.s32.totalorder %s1587, 159
        %s1591 = scalar_select %p1590, %s1587, 159
        %s1592 = smul.addr %s1589, 160
        %s1593 = sadd.s32 %s1591, %s1592
        %s1594 = smul.addr %s1593, 8
        %s1595 = scalar_lea.vmem %s3, %s1594
      $region51: #{pose_encoder_style_forward.4} parent=46 // pred_fallthru
        _
    $region47: #{pose_encoder_style_forward.4} parent=5 // pred_fallthru
      _
  $region6: #{pose_encoder_style_forward.4} parent=0 // loop_footer
    %s13 = sadd.s32 1, %s9
  $region7: #{pose_encoder_style_forward.4} parent=0 // loop_footer_branch
    %8 = sbr.rel target = $region3
  $region8: #{pose_encoder_style_forward.4} parent=0 // loop_exit
    _

// kernel: pose_encoder_style_forward.5
$region0: #{pose_encoder_style_forward.5}
  #allocation0 [shape = 'u32[]', space=smem, size = 0x4, offset = 0x4, fixed_abs, tag = 'smem constant byte address 0x4 - core index']
  #allocation1 [shape = 'u32[144,128]{1,0:T(1,128)}', space=vmem, size = 0x12000, scoped, tag = 'internal scratch']
  #allocation2 [shape = 'f32[256,32]{1,0:T(8,128)}', space=vmem, size = 0x20000, scoped, tag = 'scratch operand']
  %s0 = inlined_call_operand.vmem [shape: f32[2,280,32], index: 0, kind: input, shape index: {}]
  %s1 = inlined_call_operand.vmem [shape: f32[25,32,32], index: 1, kind: input, shape index: {}]
  %s2 = inlined_call_operand.vmem [shape: f32[1,32], index: 2, kind: input, shape index: {}]
  %s3 = inlined_call_operand.vmem [shape: f32[2,256,32], index: 3, kind: output, shape index: {}]
  %s4 = sld [smem:[#allocation0]]
  $region52: #{pose_encoder_style_forward.5} parent=0
    _
  %s6 = ssub.s32 1, %s4
  %s7 = scalar_select 0, %s6, %s4
  loop: start=0, step=1, limit=4
  $region2: #{pose_encoder_style_forward.5} parent=0 // loop_pre_header
    _
  $region3: #{pose_encoder_style_forward.5} parent=0 // loop_header
    %s9 = sphi 0, %s13
    %p10 = scmp.ge.s32.totalorder %s9, 4
    %s16 = sphi 0, %s28
    %s17 = sphi 0, %s24
    %s18 = sphi 0, %s16
    %s19 = sphi 0, %s17
    %s20 = sphi 0, %s18
    %s21 = sphi 0, %s19
    %s31 = sphi 0, %s33
    %s34 = sphi 0, %s31
    %s35 = sphi 0, %s34
    %s51 = sphi 0, %s35
    %s55 = sphi 0, %s55
    %s57 = sphi 0, %s55
    %s58 = sphi 0, %s57
    %s72 = sphi 0, %s58
    %s76 = sphi 0, %s76
    %s78 = sphi 0, %s76
    %s79 = sphi 0, %s78
    %s93 = sphi 0, %s79
    %s101 = sphi 0, %s103
    %s104 = sphi 0, %s101
    %s105 = sphi 0, %s104
    %s121 = sphi 0, %s105
  $region4: #{pose_encoder_style_forward.5} parent=0 // loop_header_branch
    %12 = sbr.rel (%p10) target = $region8
  $region5: #{pose_encoder_style_forward.5} parent=0 // loop_body
    %s14 = ssub.s32 %s9, 1
    %s15 = ssub.s32 %s9, 2
    %s22 = sadd.s32 1, %s17
    %p23 = scmp.ge.s32.totalorder %s22, 1
    %s24 = scalar_select %p23, 0, %s22
    %s25 = sadd.s32 1, %s16
    %s26 = scalar_select %p23, %s25, %s16
    %p27 = scmp.ge.s32.totalorder %s26, 2
    %s28 = scalar_select %p27, 0, %s26
    %s29 = ssub.s32 %s16, %s28
    %p30 = scmp.eq.s32.totalorder %s29, 0
    %s32 = sadd.s32 %s31, 1
    %s33 = scalar_select %p30, %s31, %s32
    %p36 = pneg %p30
    %p37 = scmp.eq.s32.totalorder %s9, 1
    %p38 = por %p36, %p37
    %p39 = scmp.ne.s32.totalorder %s31, %s34
    %p40 = scmp.eq.s32.totalorder %s9, 0
    %p41 = por %p39, %p40
    %p42 = scmp.ne.s32.totalorder %s31, %s34
    %p43 = scmp.eq.s32.totalorder %s14, 1
    %p44 = por %p42, %p43
    %p45 = scmp.ne.s32.totalorder %s34, %s35
    %p46 = scmp.eq.s32.totalorder %s14, 0
    %p47 = por %p45, %p46
    %p48 = scmp.ne.s32.totalorder %s34, %s35
    %p49 = scmp.eq.s32.totalorder %s15, 1
    %p50 = por %p48, %p49
    %p52 = scmp.ne.s32.totalorder %s35, %s51
    %p53 = scmp.eq.s32.totalorder %s15, 0
    %p54 = por %p52, %p53
    %s56 = sadd.s32 %s55, 1
    %p59 = scmp.eq.s32.totalorder %s9, 1
    %p60 = scmp.ne.s32.totalorder %s55, %s57
    %p61 = scmp.eq.s32.totalorder %s9, 0
    %p62 = por %p60, %p61
    %p63 = scmp.ne.s32.totalorder %s55, %s57
    %p64 = scmp.eq.s32.totalorder %s14, 1
    %p65 = por %p63, %p64
    %p66 = scmp.ne.s32.totalorder %s57, %s58
    %p67 = scmp.eq.s32.totalorder %s14, 0
    %p68 = por %p66, %p67
    %p69 = scmp.ne.s32.totalorder %s57, %s58
    %p70 = scmp.eq.s32.totalorder %s15, 1
    %p71 = por %p69, %p70
    %p73 = scmp.ne.s32.totalorder %s58, %s72
    %p74 = scmp.eq.s32.totalorder %s15, 0
    %p75 = por %p73, %p74
    %s77 = sadd.s32 %s76, 1
    %p80 = scmp.eq.s32.totalorder %s9, 1
    %p81 = scmp.ne.s32.totalorder %s76, %s78
    %p82 = scmp.eq.s32.totalorder %s9, 0
    %p83 = por %p81, %p82
    %p84 = scmp.ne.s32.totalorder %s76, %s78
    %p85 = scmp.eq.s32.totalorder %s14, 1
    %p86 = por %p84, %p85
    %p87 = scmp.ne.s32.totalorder %s78, %s79
    %p88 = scmp.eq.s32.totalorder %s14, 0
    %p89 = por %p87, %p88
    %p90 = scmp.ne.s32.totalorder %s78, %s79
    %p91 = scmp.eq.s32.totalorder %s15, 1
    %p92 = por %p90, %p91
    %p94 = scmp.ne.s32.totalorder %s79, %s93
    %p95 = scmp.eq.s32.totalorder %s15, 0
    %p96 = por %p94, %p95
    %s97 = ssub.s32 %s16, %s28
    %s98 = ssub.s32 %s17, %s24
    %s99 = sor.u32 %s97, %s98
    %p100 = scmp.eq.s32.totalorder %s99, 0
    %s102 = sadd.s32 %s101, 1
    %s103 = scalar_select %p100, %s101, %s102
    %p106 = pneg %p100
    %p107 = scmp.eq.s32.totalorder %s9, 1
    %p108 = por %p106, %p107
    %p109 = scmp.ne.s32.totalorder %s101, %s104
    %p110 = scmp.eq.s32.totalorder %s9, 0
    %p111 = por %p109, %p110
    %p112 = scmp.ne.s32.totalorder %s101, %s104
    %p113 = scmp.eq.s32.totalorder %s14, 1
    %p114 = por %p112, %p113
    %p115 = scmp.ne.s32.totalorder %s104, %s105
    %p116 = scmp.eq.s32.totalorder %s14, 0
    %p117 = por %p115, %p116
    %p118 = scmp.ne.s32.totalorder %s104, %s105
    %p119 = scmp.eq.s32.totalorder %s15, 1
    %p120 = por %p118, %p119
    %p122 = scmp.ne.s32.totalorder %s105, %s121
    %p123 = scmp.eq.s32.totalorder %s15, 0
    %p124 = por %p122, %p123
    %p125 = scmp.le.s32.totalorder 1, %s9
    %p126 = scmp.lt.s32.totalorder %s9, 3
    %p127 = pnand %p125, %p126
    %p128 = pneg %p127
    // Predicated region
    $region9: #{pose_encoder_style_forward.5} parent=5 // pred_check
      _
    $region10: #{pose_encoder_style_forward.5} parent=5 // pred_check_branch
      %130 = sbr.rel (%p127) target = $region12
    $region11: #{pose_encoder_style_forward.5} parent=5 // pred_region
      %s131 = ssub.s32 %s9, 1
      // Predicated region
      $region13: #{pose_encoder_style_forward.5} parent=11 // pred_check
        %p132 = pneg %p68
      $region14: #{pose_encoder_style_forward.5} parent=11 // pred_check_branch
        %134 = sbr.rel (%p132) target = $region16
      $region15: #{pose_encoder_style_forward.5} parent=11 // pred_region
        _
      $region16: #{pose_encoder_style_forward.5} parent=11 // pred_fallthru
        _
      // Predicated region
      $region17: #{pose_encoder_style_forward.5} parent=11 // pred_check
        %p135 = pneg %p89
      $region18: #{pose_encoder_style_forward.5} parent=11 // pred_check_branch
        %137 = sbr.rel (%p135) target = $region20
      $region19: #{pose_encoder_style_forward.5} parent=11 // pred_region
        _
      $region20: #{pose_encoder_style_forward.5} parent=11 // pred_fallthru
        _
    $region12: #{pose_encoder_style_forward.5} parent=5 // pred_fallthru
      _
    %p138 = scmp.lt.s32.totalorder %s9, 2
    // Predicated region
    $region21: #{pose_encoder_style_forward.5} parent=5 // pred_check
      %p139 = pneg %p138
    $region22: #{pose_encoder_style_forward.5} parent=5 // pred_check_branch
      %141 = sbr.rel (%p139) target = $region24
    $region23: #{pose_encoder_style_forward.5} parent=5 // pred_region
      // Predicated region
      $region25: #{pose_encoder_style_forward.5} parent=23 // pred_check
        %p142 = pneg %p41
      $region26: #{pose_encoder_style_forward.5} parent=23 // pred_check_branch
        %144 = sbr.rel (%p142) target = $region28
      $region27: #{pose_encoder_style_forward.5} parent=23 // pred_region
        %p145 = scmp.lt.s32.totalorder %s16, 1
        %s146 = scalar_select %p145, %s16, 1
        %s147 = smul.addr %s146, 35
        %s148 = smul.addr %s147, 8
        %s149 = scalar_lea.vmem %s0, %s148
      $region28: #{pose_encoder_style_forward.5} parent=23 // pred_fallthru
        _
    $region24: #{pose_encoder_style_forward.5} parent=5 // pred_fallthru
      _
    %p150 = scmp.le.s32.totalorder 1, %s9
    %p151 = scmp.lt.s32.totalorder %s9, 3
    %p152 = pnand %p150, %p151
    %p153 = pneg %p152
    // Predicated region
    $region29: #{pose_encoder_style_forward.5} parent=5 // pred_check
      _
    $region30: #{pose_encoder_style_forward.5} parent=5 // pred_check_branch
      %155 = sbr.rel (%p152) target = $region32
    $region31: #{pose_encoder_style_forward.5} parent=5 // pred_region
      %s156 = ssub.s32 %s9, 1
      %p157 = scmp.lt.s32.totalorder %s18, 1
      %s158 = scalar_select %p157, %s18, 1
      %s159 = smul.addr %s158, 35
      %s160 = smul.addr %s159, 8
      %s161 = scalar_lea.vmem %s0, %s160
      %p162 = pneg %p47
      %p163 = pneg %p44
      %p164 = pneg %p68
      %p165 = pneg %p65
      %p166 = pneg %p89
      %p167 = pneg %p86
      %p168 = pneg %p117
      %p169 = pneg %p114
      %s170 = smul.u32 32, %s19
      %p171 = scmp.lt.s32.totalorder %s18, 1
      %s172 = scalar_select %p171, %s18, 1
      %p173 = scmp.lt.s32.totalorder %s170, 31
      %s174 = scalar_select %p173, %s170, 31
      %s175 = smul.addr %s172, 32
      %s176 = sadd.s32 %s174, %s175
      %s177 = smul.addr %s176, 8
      %s178 = scalar_lea.vmem %s3, %s177
      %p179 = scmp.lt.s32.totalorder %s18, 1
      %s180 = scalar_select %p179, %s18, 1
      %s181 = smul.addr %s180, 35
      %s182 = smul.addr %s181, 8
      %s183 = scalar_lea.vmem %s0, %s182
      %s184 = smul.u32 32, %s19
      %p185 = scmp.lt.s32.totalorder %s18, 1
      %s186 = scalar_select %p185, %s18, 1
      %p187 = scmp.lt.s32.totalorder %s184, 31
      %s188 = scalar_select %p187, %s184, 31
      %s189 = smul.addr %s186, 32
      %s190 = sadd.s32 %s188, %s189
      %s191 = smul.addr %s190, 8
      %s192 = scalar_lea.vmem %s3, %s191
      %s193 = smul.u32 32, %s19
      %s194 = smul.u32 %s19, 256
      %v195 = vld [vmem:[%s2] sm:$0x1]
      %v197 = vlaneseq
      %v198 = vshrl.u32 %v197, 7
      %v199 = vsub.s32 0, %v198
      %v200 = vrot.slane %v195, %v199
      %vm202 = vcmask 261120
      %203 = vst.msk [vmem:[#allocation2] sm:$0xff] %vm202, %v200
      %204 = vst.msk [vmem:[#allocation2 + $0x8] sm:$0xff] %vm202, %v200
      %205 = vst.msk [vmem:[#allocation2 + $0x10] sm:$0xff] %vm202, %v200
      %206 = vst.msk [vmem:[#allocation2 + $0x18] sm:$0xff] %vm202, %v200
      %207 = vst.msk [vmem:[#allocation2 + $0x20] sm:$0xff] %vm202, %v200
      %208 = vst.msk [vmem:[#allocation2 + $0x28] sm:$0xff] %vm202, %v200
      %209 = vst.msk [vmem:[#allocation2 + $0x30] sm:$0xff] %vm202, %v200
      %210 = vst.msk [vmem:[#allocation2 + $0x38] sm:$0xff] %vm202, %v200
      %211 = vst.msk [vmem:[#allocation2 + $0x40] sm:$0xff] %vm202, %v200
      %212 = vst.msk [vmem:[#allocation2 + $0x48] sm:$0xff] %vm202, %v200
      %213 = vst.msk [vmem:[#allocation2 + $0x50] sm:$0xff] %vm202, %v200
      %214 = vst.msk [vmem:[#allocation2 + $0x58] sm:$0xff] %vm202, %v200
      %215 = vst.msk [vmem:[#allocation2 + $0x60] sm:$0xff] %vm202, %v200
      %216 = vst.msk [vmem:[#allocation2 + $0x68] sm:$0xff] %vm202, %v200
      %217 = vst.msk [vmem:[#allocation2 + $0x70] sm:$0xff] %vm202, %v200
      %218 = vst.msk [vmem:[#allocation2 + $0x78] sm:$0xff] %vm202, %v200
      %219 = vst.msk [vmem:[#allocation2 + $0x80] sm:$0xff] %vm202, %v200
      %220 = vst.msk [vmem:[#allocation2 + $0x88] sm:$0xff] %vm202, %v200
      %221 = vst.msk [vmem:[#allocation2 + $0x90] sm:$0xff] %vm202, %v200
      %222 = vst.msk [vmem:[#allocation2 + $0x98] sm:$0xff] %vm202, %v200
      %223 = vst.msk [vmem:[#allocation2 + $0xa0] sm:$0xff] %vm202, %v200
      %224 = vst.msk [vmem:[#allocation2 + $0xa8] sm:$0xff] %vm202, %v200
      %225 = vst.msk [vmem:[#allocation2 + $0xb0] sm:$0xff] %vm202, %v200
      %226 = vst.msk [vmem:[#allocation2 + $0xb8] sm:$0xff] %vm202, %v200
      %227 = vst.msk [vmem:[#allocation2 + $0xc0] sm:$0xff] %vm202, %v200
      %228 = vst.msk [vmem:[#allocation2 + $0xc8] sm:$0xff] %vm202, %v200
      %229 = vst.msk [vmem:[#allocation2 + $0xd0] sm:$0xff] %vm202, %v200
      %230 = vst.msk [vmem:[#allocation2 + $0xd8] sm:$0xff] %vm202, %v200
      %231 = vst.msk [vmem:[#allocation2 + $0xe0] sm:$0xff] %vm202, %v200
      %232 = vst.msk [vmem:[#allocation2 + $0xe8] sm:$0xff] %vm202, %v200
      %233 = vst.msk [vmem:[#allocation2 + $0xf0] sm:$0xff] %vm202, %v200
      %234 = vst.msk [vmem:[#allocation2 + $0xf8] sm:$0xff] %vm202, %v200
      loop: start=0, step=1, limit=25
      $region33: #{pose_encoder_style_forward.5} parent=31 // loop_pre_header
        _
      $region34: #{pose_encoder_style_forward.5} parent=31 // loop_header
        %s236 = sphi 0, %s240
        %p237 = scmp.ge.s32.totalorder %s236, 25
      $region35: #{pose_encoder_style_forward.5} parent=31 // loop_header_branch
        %239 = sbr.rel (%p237) target = $region39
      $region36: #{pose_encoder_style_forward.5} parent=31 // loop_body
        %s241 = sadd.s32 %s194, %s236
        %s242 = scalar_lea.vmem %s183, %s241
        %v243 = vld [vmem:[%s242] sm:$0xff]
        %v244 = vld [vmem:[%s242 + $0x8] sm:$0xff]
        %v245 = vld [vmem:[%s242 + $0x10] sm:$0xff]
        %v246 = vld [vmem:[%s242 + $0x18] sm:$0xff]
        %v247 = vld [vmem:[%s242 + $0x20] sm:$0xff]
        %v248 = vld [vmem:[%s242 + $0x28] sm:$0xff]
        %v249 = vld [vmem:[%s242 + $0x30] sm:$0xff]
        %v250 = vld [vmem:[%s242 + $0x38] sm:$0xff]
        %v251 = vld [vmem:[%s242 + $0x40] sm:$0xff]
        %v252 = vld [vmem:[%s242 + $0x48] sm:$0xff]
        %v253 = vld [vmem:[%s242 + $0x50] sm:$0xff]
        %v254 = vld [vmem:[%s242 + $0x58] sm:$0xff]
        %v255 = vld [vmem:[%s242 + $0x60] sm:$0xff]
        %v256 = vld [vmem:[%s242 + $0x68] sm:$0xff]
        %v257 = vld [vmem:[%s242 + $0x70] sm:$0xff]
        %v258 = vld [vmem:[%s242 + $0x78] sm:$0xff]
        %v259 = vld [vmem:[%s242 + $0x80] sm:$0xff]
        %v260 = vld [vmem:[%s242 + $0x88] sm:$0xff]
        %v261 = vld [vmem:[%s242 + $0x90] sm:$0xff]
        %v262 = vld [vmem:[%s242 + $0x98] sm:$0xff]
        %v263 = vld [vmem:[%s242 + $0xa0] sm:$0xff]
        %v264 = vld [vmem:[%s242 + $0xa8] sm:$0xff]
        %v265 = vld [vmem:[%s242 + $0xb0] sm:$0xff]
        %v266 = vld [vmem:[%s242 + $0xb8] sm:$0xff]
        %v267 = vld [vmem:[%s242 + $0xc0] sm:$0xff]
        %v268 = vld [vmem:[%s242 + $0xc8] sm:$0xff]
        %v269 = vld [vmem:[%s242 + $0xd0] sm:$0xff]
        %v270 = vld [vmem:[%s242 + $0xd8] sm:$0xff]
        %v271 = vld [vmem:[%s242 + $0xe0] sm:$0xff]
        %v272 = vld [vmem:[%s242 + $0xe8] sm:$0xff]
        %v273 = vld [vmem:[%s242 + $0xf0] sm:$0xff]
        %v274 = vld [vmem:[%s242 + $0xf8] sm:$0xff]
        %v275 = vld [vmem:[#allocation2] sm:$0xff]
        %v276 = vld [vmem:[#allocation2 + $0x8] sm:$0xff]
        %v277 = vld [vmem:[#allocation2 + $0x10] sm:$0xff]
        %v278 = vld [vmem:[#allocation2 + $0x18] sm:$0xff]
        %v279 = vld [vmem:[#allocation2 + $0x20] sm:$0xff]
        %v280 = vld [vmem:[#allocation2 + $0x28] sm:$0xff]
        %v281 = vld [vmem:[#allocation2 + $0x30] sm:$0xff]
        %v282 = vld [vmem:[#allocation2 + $0x38] sm:$0xff]
        %v283 = vld [vmem:[#allocation2 + $0x40] sm:$0xff]
        %v284 = vld [vmem:[#allocation2 + $0x48] sm:$0xff]
        %v285 = vld [vmem:[#allocation2 + $0x50] sm:$0xff]
        %v286 = vld [vmem:[#allocation2 + $0x58] sm:$0xff]
        %v287 = vld [vmem:[#allocation2 + $0x60] sm:$0xff]
        %v288 = vld [vmem:[#allocation2 + $0x68] sm:$0xff]
        %v289 = vld [vmem:[#allocation2 + $0x70] sm:$0xff]
        %v290 = vld [vmem:[#allocation2 + $0x78] sm:$0xff]
        %v291 = vld [vmem:[#allocation2 + $0x80] sm:$0xff]
        %v292 = vld [vmem:[#allocation2 + $0x88] sm:$0xff]
        %v293 = vld [vmem:[#allocation2 + $0x90] sm:$0xff]
        %v294 = vld [vmem:[#allocation2 + $0x98] sm:$0xff]
        %v295 = vld [vmem:[#allocation2 + $0xa0] sm:$0xff]
        %v296 = vld [vmem:[#allocation2 + $0xa8] sm:$0xff]
        %v297 = vld [vmem:[#allocation2 + $0xb0] sm:$0xff]
        %v298 = vld [vmem:[#allocation2 + $0xb8] sm:$0xff]
        %v299 = vld [vmem:[#allocation2 + $0xc0] sm:$0xff]
        %v300 = vld [vmem:[#allocation2 + $0xc8] sm:$0xff]
        %v301 = vld [vmem:[#allocation2 + $0xd0] sm:$0xff]
        %v302 = vld [vmem:[#allocation2 + $0xd8] sm:$0xff]
        %v303 = vld [vmem:[#allocation2 + $0xe0] sm:$0xff]
        %v304 = vld [vmem:[#allocation2 + $0xe8] sm:$0xff]
        %v305 = vld [vmem:[#allocation2 + $0xf0] sm:$0xff]
        %v306 = vld [vmem:[#allocation2 + $0xf8] sm:$0xff]
        %s307 = smul.u32 %s236, 32
        %s308 = scalar_lea.vmem %s1, %s307
        %v309 = vld [vmem:[%s308] sm:$0xff]
        %v310 = vld [vmem:[%s308 + $0x8] sm:$0xff]
        %v311 = vld [vmem:[%s308 + $0x10] sm:$0xff]
        %v312 = vld [vmem:[%s308 + $0x18] sm:$0xff]
        %v314 = vsel %vm202, %v243, 0
        %v317 = vsel %vm202, %v244, 0
        %v320 = vsel %vm202, %v245, 0
        %v323 = vsel %vm202, %v246, 0
        %v326 = vsel %vm202, %v247, 0
        %v329 = vsel %vm202, %v248, 0
        %v332 = vsel %vm202, %v249, 0
        %v335 = vsel %vm202, %v250, 0
        %v338 = vsel %vm202, %v251, 0
        %v341 = vsel %vm202, %v252, 0
        %v344 = vsel %vm202, %v253, 0
        %v347 = vsel %vm202, %v254, 0
        %v350 = vsel %vm202, %v255, 0
        %v353 = vsel %vm202, %v256, 0
        %v356 = vsel %vm202, %v257, 0
        %v359 = vsel %vm202, %v258, 0
        %v362 = vsel %vm202, %v259, 0
        %v365 = vsel %vm202, %v260, 0
        %v368 = vsel %vm202, %v261, 0
        %v371 = vsel %vm202, %v262, 0
        %v374 = vsel %vm202, %v263, 0
        %v377 = vsel %vm202, %v264, 0
        %v380 = vsel %vm202, %v265, 0
        %v383 = vsel %vm202, %v266, 0
        %v386 = vsel %vm202, %v267, 0
        %v389 = vsel %vm202, %v268, 0
        %v392 = vsel %vm202, %v269, 0
        %v395 = vsel %vm202, %v270, 0
        %v398 = vsel %vm202, %v271, 0
        %v401 = vsel %vm202, %v272, 0
        %v404 = vsel %vm202, %v273, 0
        %v407 = vsel %vm202, %v274, 0
        %409 = vmatprep.subr.mxu0 0.0
        %410 = vmatpush1.msra.mxu0 %v309
        %411 = vmatprep.subr.mxu0 0.0
        %412 = vmatpush1.msra.mxu0 %v310
        %413 = vmatprep.subr.mxu0 0.0
        %414 = vmatpush1.msra.mxu0 %v311
        %415 = vmatprep.subr.mxu0 0.0
        %416 = vmatpush1.msra.mxu0 %v312
        %417 = vmatprep.subr.mxu0 0.0
        %418 = vmatpush1.msra.mxu0 0.0
        %419 = vmatprep.subr.mxu0 0.0
        %420 = vmatpush1.msra.mxu0 0.0
        %421 = vmatprep.subr.mxu0 0.0
        %422 = vmatpush1.msra.mxu0 0.0
        %423 = vmatprep.subr.mxu0 0.0
        %424 = vmatpush1.msra.mxu0 0.0
        %425 = vmatprep.subr.mxu0 0.0
        %426 = vmatpush1.msra.mxu0 0.0
        %427 = vmatprep.subr.mxu0 0.0
        %428 = vmatpush1.msra.mxu0 0.0
        %429 = vmatprep.subr.mxu0 0.0
        %430 = vmatpush1.msra.mxu0 0.0
        %431 = vmatprep.subr.mxu0 0.0
        %432 = vmatpush1.msra.mxu0 0.0
        %433 = vmatprep.subr.mxu0 0.0
        %434 = vmatpush1.msra.mxu0 0.0
        %435 = vmatprep.subr.mxu0 0.0
        %436 = vmatpush1.msra.mxu0 0.0
        %437 = vmatprep.subr.mxu0 0.0
        %438 = vmatpush1.msra.mxu0 0.0
        %439 = vmatprep.subr.mxu0 0.0
        %440 = vmatpush1.msra.mxu0 0.0
        %441 = vmatprep.subr.mxu0 0.0
        %442 = vmatpush1.msra.mxu0 0.0
        %443 = vmatprep.subr.mxu0 0.0
        %444 = vmatpush1.msra.mxu0 0.0
        %445 = vmatprep.subr.mxu0 0.0
        %446 = vmatpush1.msra.mxu0 0.0
        %447 = vmatprep.subr.mxu0 0.0
        %448 = vmatpush1.msra.mxu0 0.0
        %449 = vmatprep.subr.mxu0 0.0
        %450 = vmatpush1.msra.mxu0 0.0
        %451 = vmatprep.subr.mxu0 0.0
        %452 = vmatpush1.msra.mxu0 0.0
        %453 = vmatprep.subr.mxu0 0.0
        %454 = vmatpush1.msra.mxu0 0.0
        %455 = vmatprep.subr.mxu0 0.0
        %456 = vmatpush1.msra.mxu0 0.0
        %457 = vmatprep.subr.mxu0 0.0
        %458 = vmatpush1.msra.mxu0 0.0
        %459 = vmatprep.subr.mxu0 0.0
        %460 = vmatpush1.msra.mxu0 0.0
        %461 = vmatprep.subr.mxu0 0.0
        %462 = vmatpush1.msra.mxu0 0.0
        %463 = vmatprep.subr.mxu0 0.0
        %464 = vmatpush1.msra.mxu0 0.0
        %465 = vmatprep.subr.mxu0 0.0
        %466 = vmatpush1.msra.mxu0 0.0
        %467 = vmatprep.subr.mxu0 0.0
        %468 = vmatpush1.msra.mxu0 0.0
        %469 = vmatprep.subr.mxu0 0.0
        %470 = vmatpush1.msra.mxu0 0.0
        %471 = vmatprep.subr.mxu0 0.0
        %472 = vmatpush1.msra.mxu0 0.0
        %473 = vmatprep.mubr.f32.mxu0 0.0
        %474 = vmatmul.mubr.f32.gmra.mrb[0].mxu0 %v314
        %v475 = vpop.f32.mrb[0].mxu0
        %v476 = vadd.f32 0.0, %v475
        %v477 = vpop.f32.mrb[0].mxu0
        %478 = vmatprep.mubr.f32.mxu0 0.0
        %479 = vmatmul.mubr.f32.gmra.mrb[0].mxu0 %v317
        %v480 = vpop.f32.mrb[0].mxu0
        %v481 = vadd.f32 0.0, %v480
        %v482 = vpop.f32.mrb[0].mxu0
        %483 = vmatprep.mubr.f32.mxu0 0.0
        %484 = vmatmul.mubr.f32.gmra.mrb[0].mxu0 %v320
        %v485 = vpop.f32.mrb[0].mxu0
        %v486 = vadd.f32 0.0, %v485
        %v487 = vpop.f32.mrb[0].mxu0
        %488 = vmatprep.mubr.f32.mxu0 0.0
        %489 = vmatmul.mubr.f32.gmra.mrb[0].mxu0 %v323
        %v490 = vpop.f32.mrb[0].mxu0
        %v491 = vadd.f32 0.0, %v490
        %v492 = vpop.f32.mrb[0].mxu0
        %493 = vmatprep.mubr.f32.mxu0 0.0
        %494 = vmatmul.mubr.f32.gmra.mrb[0].mxu0 %v326
        %v495 = vpop.f32.mrb[0].mxu0
        %v496 = vadd.f32 0.0, %v495
        %v497 = vpop.f32.mrb[0].mxu0
        %498 = vmatprep.mubr.f32.mxu0 0.0
        %499 = vmatmul.mubr.f32.gmra.mrb[0].mxu0 %v329
        %v500 = vpop.f32.mrb[0].mxu0
        %v501 = vadd.f32 0.0, %v500
        %v502 = vpop.f32.mrb[0].mxu0
        %503 = vmatprep.mubr.f32.mxu0 0.0
        %504 = vmatmul.mubr.f32.gmra.mrb[0].mxu0 %v332
        %v505 = vpop.f32.mrb[0].mxu0
        %v506 = vadd.f32 0.0, %v505
        %v507 = vpop.f32.mrb[0].mxu0
        %508 = vmatprep.mubr.f32.mxu0 0.0
        %509 = vmatmul.mubr.f32.gmra.mrb[0].mxu0 %v335
        %v510 = vpop.f32.mrb[0].mxu0
        %v511 = vadd.f32 0.0, %v510
        %v512 = vpop.f32.mrb[0].mxu0
        %513 = vmatprep.mubr.f32.mxu0 0.0
        %514 = vmatmul.mubr.f32.gmra.mrb[0].mxu0 %v338
        %v515 = vpop.f32.mrb[0].mxu0
        %v516 = vadd.f32 0.0, %v515
        %v517 = vpop.f32.mrb[0].mxu0
        %518 = vmatprep.mubr.f32.mxu0 0.0
        %519 = vmatmul.mubr.f32.gmra.mrb[0].mxu0 %v341
        %v520 = vpop.f32.mrb[0].mxu0
        %v521 = vadd.f32 0.0, %v520
        %v522 = vpop.f32.mrb[0].mxu0
        %523 = vmatprep.mubr.f32.mxu0 0.0
        %524 = vmatmul.mubr.f32.gmra.mrb[0].mxu0 %v344
        %v525 = vpop.f32.mrb[0].mxu0
        %v526 = vadd.f32 0.0, %v525
        %v527 = vpop.f32.mrb[0].mxu0
        %528 = vmatprep.mubr.f32.mxu0 0.0
        %529 = vmatmul.mubr.f32.gmra.mrb[0].mxu0 %v347
        %v530 = vpop.f32.mrb[0].mxu0
        %v531 = vadd.f32 0.0, %v530
        %v532 = vpop.f32.mrb[0].mxu0
        %533 = vmatprep.mubr.f32.mxu0 0.0
        %534 = vmatmul.mubr.f32.gmra.mrb[0].mxu0 %v350
        %v535 = vpop.f32.mrb[0].mxu0
        %v536 = vadd.f32 0.0, %v535
        %v537 = vpop.f32.mrb[0].mxu0
        %538 = vmatprep.mubr.f32.mxu0 0.0
        %539 = vmatmul.mubr.f32.gmra.mrb[0].mxu0 %v353
        %v540 = vpop.f32.mrb[0].mxu0
        %v541 = vadd.f32 0.0, %v540
        %v542 = vpop.f32.mrb[0].mxu0
        %543 = vmatprep.mubr.f32.mxu0 0.0
        %544 = vmatmul.mubr.f32.gmra.mrb[0].mxu0 %v356
        %v545 = vpop.f32.mrb[0].mxu0
        %v546 = vadd.f32 0.0, %v545
        %v547 = vpop.f32.mrb[0].mxu0
        %548 = vmatprep.mubr.f32.mxu0 0.0
        %549 = vmatmul.mubr.f32.gmra.mrb[0].mxu0 %v359
        %v550 = vpop.f32.mrb[0].mxu0
        %v551 = vadd.f32 0.0, %v550
        %v552 = vpop.f32.mrb[0].mxu0
        %553 = vmatprep.mubr.f32.mxu0 0.0
        %554 = vmatmul.mubr.f32.gmra.mrb[0].mxu0 %v362
        %v555 = vpop.f32.mrb[0].mxu0
        %v556 = vadd.f32 0.0, %v555
        %v557 = vpop.f32.mrb[0].mxu0
        %558 = vmatprep.mubr.f32.mxu0 0.0
        %559 = vmatmul.mubr.f32.gmra.mrb[0].mxu0 %v365
        %v560 = vpop.f32.mrb[0].mxu0
        %v561 = vadd.f32 0.0, %v560
        %v562 = vpop.f32.mrb[0].mxu0
        %563 = vmatprep.mubr.f32.mxu0 0.0
        %564 = vmatmul.mubr.f32.gmra.mrb[0].mxu0 %v368
        %v565 = vpop.f32.mrb[0].mxu0
        %v566 = vadd.f32 0.0, %v565
        %v567 = vpop.f32.mrb[0].mxu0
        %568 = vmatprep.mubr.f32.mxu0 0.0
        %569 = vmatmul.mubr.f32.gmra.mrb[0].mxu0 %v371
        %v570 = vpop.f32.mrb[0].mxu0
        %v571 = vadd.f32 0.0, %v570
        %v572 = vpop.f32.mrb[0].mxu0
        %573 = vmatprep.mubr.f32.mxu0 0.0
        %574 = vmatmul.mubr.f32.gmra.mrb[0].mxu0 %v374
        %v575 = vpop.f32.mrb[0].mxu0
        %v576 = vadd.f32 0.0, %v575
        %v577 = vpop.f32.mrb[0].mxu0
        %578 = vmatprep.mubr.f32.mxu0 0.0
        %579 = vmatmul.mubr.f32.gmra.mrb[0].mxu0 %v377
        %v580 = vpop.f32.mrb[0].mxu0
        %v581 = vadd.f32 0.0, %v580
        %v582 = vpop.f32.mrb[0].mxu0
        %583 = vmatprep.mubr.f32.mxu0 0.0
        %584 = vmatmul.mubr.f32.gmra.mrb[0].mxu0 %v380
        %v585 = vpop.f32.mrb[0].mxu0
        %v586 = vadd.f32 0.0, %v585
        %v587 = vpop.f32.mrb[0].mxu0
        %588 = vmatprep.mubr.f32.mxu0 0.0
        %589 = vmatmul.mubr.f32.gmra.mrb[0].mxu0 %v383
        %v590 = vpop.f32.mrb[0].mxu0
        %v591 = vadd.f32 0.0, %v590
        %v592 = vpop.f32.mrb[0].mxu0
        %593 = vmatprep.mubr.f32.mxu0 0.0
        %594 = vmatmul.mubr.f32.gmra.mrb[0].mxu0 %v386
        %v595 = vpop.f32.mrb[0].mxu0
        %v596 = vadd.f32 0.0, %v595
        %v597 = vpop.f32.mrb[0].mxu0
        %598 = vmatprep.mubr.f32.mxu0 0.0
        %599 = vmatmul.mubr.f32.gmra.mrb[0].mxu0 %v389
        %v600 = vpop.f32.mrb[0].mxu0
        %v601 = vadd.f32 0.0, %v600
        %v602 = vpop.f32.mrb[0].mxu0
        %603 = vmatprep.mubr.f32.mxu0 0.0
        %604 = vmatmul.mubr.f32.gmra.mrb[0].mxu0 %v392
        %v605 = vpop.f32.mrb[0].mxu0
        %v606 = vadd.f32 0.0, %v605
        %v607 = vpop.f32.mrb[0].mxu0
        %608 = vmatprep.mubr.f32.mxu0 0.0
        %609 = vmatmul.mubr.f32.gmra.mrb[0].mxu0 %v395
        %v610 = vpop.f32.mrb[0].mxu0
        %v611 = vadd.f32 0.0, %v610
        %v612 = vpop.f32.mrb[0].mxu0
        %613 = vmatprep.mubr.f32.mxu0 0.0
        %614 = vmatmul.mubr.f32.gmra.mrb[0].mxu0 %v398
        %v615 = vpop.f32.mrb[0].mxu0
        %v616 = vadd.f32 0.0, %v615
        %v617 = vpop.f32.mrb[0].mxu0
        %618 = vmatprep.mubr.f32.mxu0 0.0
        %619 = vmatmul.mubr.f32.gmra.mrb[0].mxu0 %v401
        %v620 = vpop.f32.mrb[0].mxu0
        %v621 = vadd.f32 0.0, %v620
        %v622 = vpop.f32.mrb[0].mxu0
        %623 = vmatprep.mubr.f32.mxu0 0.0
        %624 = vmatmul.mubr.f32.gmra.mrb[0].mxu0 %v404
        %v625 = vpop.f32.mrb[0].mxu0
        %v626 = vadd.f32 0.0, %v625
        %v627 = vpop.f32.mrb[0].mxu0
        %628 = vmatprep.mubr.f32.mxu0 0.0
        %629 = vmatmul.mubr.f32.gmra.mrb[0].mxu0 %v407
        %v630 = vpop.f32.mrb[0].mxu0
        %v631 = vadd.f32 0.0, %v630
        %v632 = vpop.f32.mrb[0].mxu0
        %633 = vdwg.mxu0
        %v634 = vadd.f32 %v275, %v476
        %v635 = vadd.f32 %v276, %v481
        %v636 = vadd.f32 %v277, %v486
        %v637 = vadd.f32 %v278, %v491
        %v638 = vadd.f32 %v279, %v496
        %v639 = vadd.f32 %v280, %v501
        %v640 = vadd.f32 %v281, %v506
        %v641 = vadd.f32 %v282, %v511
        %v642 = vadd.f32 %v283, %v516
        %v643 = vadd.f32 %v284, %v521
        %v644 = vadd.f32 %v285, %v526
        %v645 = vadd.f32 %v286, %v531
        %v646 = vadd.f32 %v287, %v536
        %v647 = vadd.f32 %v288, %v541
        %v648 = vadd.f32 %v289, %v546
        %v649 = vadd.f32 %v290, %v551
        %v650 = vadd.f32 %v291, %v556
        %v651 = vadd.f32 %v292, %v561
        %v652 = vadd.f32 %v293, %v566
        %v653 = vadd.f32 %v294, %v571
        %v654 = vadd.f32 %v295, %v576
        %v655 = vadd.f32 %v296, %v581
        %v656 = vadd.f32 %v297, %v586
        %v657 = vadd.f32 %v298, %v591
        %v658 = vadd.f32 %v299, %v596
        %v659 = vadd.f32 %v300, %v601
        %v660 = vadd.f32 %v301, %v606
        %v661 = vadd.f32 %v302, %v611
        %v662 = vadd.f32 %v303, %v616
        %v663 = vadd.f32 %v304, %v621
        %v664 = vadd.f32 %v305, %v626
        %v665 = vadd.f32 %v306, %v631
        %666 = vst.msk [vmem:[#allocation2] sm:$0xff] %vm202, %v634
        %667 = vst.msk [vmem:[#allocation2 + $0x8] sm:$0xff] %vm202, %v635
        %668 = vst.msk [vmem:[#allocation2 + $0x10] sm:$0xff] %vm202, %v636
        %669 = vst.msk [vmem:[#allocation2 + $0x18] sm:$0xff] %vm202, %v637
        %670 = vst.msk [vmem:[#allocation2 + $0x20] sm:$0xff] %vm202, %v638
        %671 = vst.msk [vmem:[#allocation2 + $0x28] sm:$0xff] %vm202, %v639
        %672 = vst.msk [vmem:[#allocation2 + $0x30] sm:$0xff] %vm202, %v640
        %673 = vst.msk [vmem:[#allocation2 + $0x38] sm:$0xff] %vm202, %v641
        %674 = vst.msk [vmem:[#allocation2 + $0x40] sm:$0xff] %vm202, %v642
        %675 = vst.msk [vmem:[#allocation2 + $0x48] sm:$0xff] %vm202, %v643
        %676 = vst.msk [vmem:[#allocation2 + $0x50] sm:$0xff] %vm202, %v644
        %677 = vst.msk [vmem:[#allocation2 + $0x58] sm:$0xff] %vm202, %v645
        %678 = vst.msk [vmem:[#allocation2 + $0x60] sm:$0xff] %vm202, %v646
        %679 = vst.msk [vmem:[#allocation2 + $0x68] sm:$0xff] %vm202, %v647
        %680 = vst.msk [vmem:[#allocation2 + $0x70] sm:$0xff] %vm202, %v648
        %681 = vst.msk [vmem:[#allocation2 + $0x78] sm:$0xff] %vm202, %v649
        %682 = vst.msk [vmem:[#allocation2 + $0x80] sm:$0xff] %vm202, %v650
        %683 = vst.msk [vmem:[#allocation2 + $0x88] sm:$0xff] %vm202, %v651
        %684 = vst.msk [vmem:[#allocation2 + $0x90] sm:$0xff] %vm202, %v652
        %685 = vst.msk [vmem:[#allocation2 + $0x98] sm:$0xff] %vm202, %v653
        %686 = vst.msk [vmem:[#allocation2 + $0xa0] sm:$0xff] %vm202, %v654
        %687 = vst.msk [vmem:[#allocation2 + $0xa8] sm:$0xff] %vm202, %v655
        %688 = vst.msk [vmem:[#allocation2 + $0xb0] sm:$0xff] %vm202, %v656
        %689 = vst.msk [vmem:[#allocation2 + $0xb8] sm:$0xff] %vm202, %v657
        %690 = vst.msk [vmem:[#allocation2 + $0xc0] sm:$0xff] %vm202, %v658
        %691 = vst.msk [vmem:[#allocation2 + $0xc8] sm:$0xff] %vm202, %v659
        %692 = vst.msk [vmem:[#allocation2 + $0xd0] sm:$0xff] %vm202, %v660
        %693 = vst.msk [vmem:[#allocation2 + $0xd8] sm:$0xff] %vm202, %v661
        %694 = vst.msk [vmem:[#allocation2 + $0xe0] sm:$0xff] %vm202, %v662
        %695 = vst.msk [vmem:[#allocation2 + $0xe8] sm:$0xff] %vm202, %v663
        %696 = vst.msk [vmem:[#allocation2 + $0xf0] sm:$0xff] %vm202, %v664
        %697 = vst.msk [vmem:[#allocation2 + $0xf8] sm:$0xff] %vm202, %v665
      $region37: #{pose_encoder_style_forward.5} parent=31 // loop_footer
        %s240 = sadd.s32 1, %s236
      $region38: #{pose_encoder_style_forward.5} parent=31 // loop_footer_branch
        %235 = sbr.rel target = $region34
      $region39: #{pose_encoder_style_forward.5} parent=31 // loop_exit
        _
      %v698 = vld [vmem:[#allocation2] sm:$0xff]
      %v699 = vld [vmem:[#allocation2 + $0x8] sm:$0xff]
      %v700 = vld [vmem:[#allocation2 + $0x10] sm:$0xff]
      %v701 = vld [vmem:[#allocation2 + $0x18] sm:$0xff]
      %v702 = vld [vmem:[#allocation2 + $0x20] sm:$0xff]
      %v703 = vld [vmem:[#allocation2 + $0x28] sm:$0xff]
      %v704 = vld [vmem:[#allocation2 + $0x30] sm:$0xff]
      %v705 = vld [vmem:[#allocation2 + $0x38] sm:$0xff]
      %v706 = vld [vmem:[#allocation2 + $0x40] sm:$0xff]
      %v707 = vld [vmem:[#allocation2 + $0x48] sm:$0xff]
      %v708 = vld [vmem:[#allocation2 + $0x50] sm:$0xff]
      %v709 = vld [vmem:[#allocation2 + $0x58] sm:$0xff]
      %v710 = vld [vmem:[#allocation2 + $0x60] sm:$0xff]
      %v711 = vld [vmem:[#allocation2 + $0x68] sm:$0xff]
      %v712 = vld [vmem:[#allocation2 + $0x70] sm:$0xff]
      %v713 = vld [vmem:[#allocation2 + $0x78] sm:$0xff]
      %v714 = vld [vmem:[#allocation2 + $0x80] sm:$0xff]
      %v715 = vld [vmem:[#allocation2 + $0x88] sm:$0xff]
      %v716 = vld [vmem:[#allocation2 + $0x90] sm:$0xff]
      %v717 = vld [vmem:[#allocation2 + $0x98] sm:$0xff]
      %v718 = vld [vmem:[#allocation2 + $0xa0] sm:$0xff]
      %v719 = vld [vmem:[#allocation2 + $0xa8] sm:$0xff]
      %v720 = vld [vmem:[#allocation2 + $0xb0] sm:$0xff]
      %v721 = vld [vmem:[#allocation2 + $0xb8] sm:$0xff]
      %v722 = vld [vmem:[#allocation2 + $0xc0] sm:$0xff]
      %v723 = vld [vmem:[#allocation2 + $0xc8] sm:$0xff]
      %v724 = vld [vmem:[#allocation2 + $0xd0] sm:$0xff]
      %v725 = vld [vmem:[#allocation2 + $0xd8] sm:$0xff]
      %v726 = vld [vmem:[#allocation2 + $0xe0] sm:$0xff]
      %v727 = vld [vmem:[#allocation2 + $0xe8] sm:$0xff]
      %v728 = vld [vmem:[#allocation2 + $0xf0] sm:$0xff]
      %v729 = vld [vmem:[#allocation2 + $0xf8] sm:$0xff]
      %v730 = vmax.f32 %v698, 0.0
      %v731 = vmax.f32 %v699, 0.0
      %v732 = vmax.f32 %v700, 0.0
      %v733 = vmax.f32 %v701, 0.0
      %v734 = vmax.f32 %v702, 0.0
      %v735 = vmax.f32 %v703, 0.0
      %v736 = vmax.f32 %v704, 0.0
      %v737 = vmax.f32 %v705, 0.0
      %v738 = vmax.f32 %v706, 0.0
      %v739 = vmax.f32 %v707, 0.0
      %v740 = vmax.f32 %v708, 0.0
      %v741 = vmax.f32 %v709, 0.0
      %v742 = vmax.f32 %v710, 0.0
      %v743 = vmax.f32 %v711, 0.0
      %v744 = vmax.f32 %v712, 0.0
      %v745 = vmax.f32 %v713, 0.0
      %v746 = vmax.f32 %v714, 0.0
      %v747 = vmax.f32 %v715, 0.0
      %v748 = vmax.f32 %v716, 0.0
      %v749 = vmax.f32 %v717, 0.0
      %v750 = vmax.f32 %v718, 0.0
      %v751 = vmax.f32 %v719, 0.0
      %v752 = vmax.f32 %v720, 0.0
      %v753 = vmax.f32 %v721, 0.0
      %v754 = vmax.f32 %v722, 0.0
      %v755 = vmax.f32 %v723, 0.0
      %v756 = vmax.f32 %v724, 0.0
      %v757 = vmax.f32 %v725, 0.0
      %v758 = vmax.f32 %v726, 0.0
      %v759 = vmax.f32 %v727, 0.0
      %v760 = vmax.f32 %v728, 0.0
      %v761 = vmax.f32 %v729, 0.0
      %762 = vst.msk [vmem:[%s192] sm:$0xff] %vm202, %v730
      %763 = vst.msk [vmem:[%s192 + $0x8] sm:$0xff] %vm202, %v731
      %764 = vst.msk [vmem:[%s192 + $0x10] sm:$0xff] %vm202, %v732
      %765 = vst.msk [vmem:[%s192 + $0x18] sm:$0xff] %vm202, %v733
      %766 = vst.msk [vmem:[%s192 + $0x20] sm:$0xff] %vm202, %v734
      %767 = vst.msk [vmem:[%s192 + $0x28] sm:$0xff] %vm202, %v735
      %768 = vst.msk [vmem:[%s192 + $0x30] sm:$0xff] %vm202, %v736
      %769 = vst.msk [vmem:[%s192 + $0x38] sm:$0xff] %vm202, %v737
      %770 = vst.msk [vmem:[%s192 + $0x40] sm:$0xff] %vm202, %v738
      %771 = vst.msk [vmem:[%s192 + $0x48] sm:$0xff] %vm202, %v739
      %772 = vst.msk [vmem:[%s192 + $0x50] sm:$0xff] %vm202, %v740
      %773 = vst.msk [vmem:[%s192 + $0x58] sm:$0xff] %vm202, %v741
      %774 = vst.msk [vmem:[%s192 + $0x60] sm:$0xff] %vm202, %v742
      %775 = vst.msk [vmem:[%s192 + $0x68] sm:$0xff] %vm202, %v743
      %776 = vst.msk [vmem:[%s192 + $0x70] sm:$0xff] %vm202, %v744
      %777 = vst.msk [vmem:[%s192 + $0x78] sm:$0xff] %vm202, %v745
      %778 = vst.msk [vmem:[%s192 + $0x80] sm:$0xff] %vm202, %v746
      %779 = vst.msk [vmem:[%s192 + $0x88] sm:$0xff] %vm202, %v747
      %780 = vst.msk [vmem:[%s192 + $0x90] sm:$0xff] %vm202, %v748
      %781 = vst.msk [vmem:[%s192 + $0x98] sm:$0xff] %vm202, %v749
      %782 = vst.msk [vmem:[%s192 + $0xa0] sm:$0xff] %vm202, %v750
      %783 = vst.msk [vmem:[%s192 + $0xa8] sm:$0xff] %vm202, %v751
      %784 = vst.msk [vmem:[%s192 + $0xb0] sm:$0xff] %vm202, %v752
      %785 = vst.msk [vmem:[%s192 + $0xb8] sm:$0xff] %vm202, %v753
      %786 = vst.msk [vmem:[%s192 + $0xc0] sm:$0xff] %vm202, %v754
      %787 = vst.msk [vmem:[%s192 + $0xc8] sm:$0xff] %vm202, %v755
      %788 = vst.msk [vmem:[%s192 + $0xd0] sm:$0xff] %vm202, %v756
      %789 = vst.msk [vmem:[%s192 + $0xd8] sm:$0xff] %vm202, %v757
      %790 = vst.msk [vmem:[%s192 + $0xe0] sm:$0xff] %vm202, %v758
      %791 = vst.msk [vmem:[%s192 + $0xe8] sm:$0xff] %vm202, %v759
      %792 = vst.msk [vmem:[%s192 + $0xf0] sm:$0xff] %vm202, %v760
      %793 = vst.msk [vmem:[%s192 + $0xf8] sm:$0xff] %vm202, %v761
      %s794 = smul.u32 32, %s19
      %p795 = scmp.lt.s32.totalorder %s18, 1
      %s796 = scalar_select %p795, %s18, 1
      %p797 = scmp.lt.s32.totalorder %s794, 31
      %s798 = scalar_select %p797, %s794, 31
      %s799 = smul.addr %s796, 32
      %s800 = sadd.s32 %s798, %s799
      %s801 = smul.addr %s800, 8
      %s802 = scalar_lea.vmem %s3, %s801
      // Predicated region
      $region40: #{pose_encoder_style_forward.5} parent=31 // pred_check
        %p803 = pneg %p114
      $region41: #{pose_encoder_style_forward.5} parent=31 // pred_check_branch
        %805 = sbr.rel (%p803) target = $region43
      $region42: #{pose_encoder_style_forward.5} parent=31 // pred_region
        %s806 = smul.u32 32, %s19
      $region43: #{pose_encoder_style_forward.5} parent=31 // pred_fallthru
        _
    $region32: #{pose_encoder_style_forward.5} parent=5 // pred_fallthru
      _
    %p807 = scmp.le.s32.totalorder 2, %s9
    // Predicated region
    $region44: #{pose_encoder_style_forward.5} parent=5 // pred_check
      %p808 = pneg %p807
    $region45: #{pose_encoder_style_forward.5} parent=5 // pred_check_branch
      %810 = sbr.rel (%p808) target = $region47
    $region46: #{pose_encoder_style_forward.5} parent=5 // pred_region
      %s811 = ssub.s32 %s9, 2
      // Predicated region
      $region48: #{pose_encoder_style_forward.5} parent=46 // pred_check
        %p812 = pneg %p120
      $region49: #{pose_encoder_style_forward.5} parent=46 // pred_check_branch
        %814 = sbr.rel (%p812) target = $region51
      $region50: #{pose_encoder_style_forward.5} parent=46 // pred_region
        %s815 = smul.u32 32, %s21
        %p816 = scmp.lt.s32.totalorder %s20, 1
        %s817 = scalar_select %p816, %s20, 1
        %p818 = scmp.lt.s32.totalorder %s815, 31
        %s819 = scalar_select %p818, %s815, 31
        %s820 = smul.addr %s817, 32
        %s821 = sadd.s32 %s819, %s820
        %s822 = smul.addr %s821, 8
        %s823 = scalar_lea.vmem %s3, %s822
      $region51: #{pose_encoder_style_forward.5} parent=46 // pred_fallthru
        _
    $region47: #{pose_encoder_style_forward.5} parent=5 // pred_fallthru
      _
  $region6: #{pose_encoder_style_forward.5} parent=0 // loop_footer
    %s13 = sadd.s32 1, %s9
  $region7: #{pose_encoder_style_forward.5} parent=0 // loop_footer_branch
    %8 = sbr.rel target = $region3
  $region8: #{pose_encoder_style_forward.5} parent=0 // loop_exit
    _

// kernel: pose_encoder_style_forward.6
$region0: #{pose_encoder_style_forward.6}
  #allocation0 [shape = 'u32[]', space=smem, size = 0x4, offset = 0x4, fixed_abs, tag = 'smem constant byte address 0x4 - core index']
  #allocation1 [shape = 'u32[144,128]{1,0:T(1,128)}', space=vmem, size = 0x12000, scoped, tag = 'internal scratch']
  #allocation2 [shape = 'f32[56,32]{1,0:T(8,128)}', space=vmem, size = 0x7000, scoped, tag = 'scratch operand']
  %s0 = inlined_call_operand.vmem [shape: f32[2,80,32], index: 0, kind: input, shape index: {}]
  %s1 = inlined_call_operand.vmem [shape: f32[25,32,32], index: 1, kind: input, shape index: {}]
  %s2 = inlined_call_operand.vmem [shape: f32[1,32], index: 2, kind: input, shape index: {}]
  %s3 = inlined_call_operand.vmem [shape: f32[2,56,32], index: 3, kind: output, shape index: {}]
  %s4 = sld [smem:[#allocation0]]
  $region52: #{pose_encoder_style_forward.6} parent=0
    _
  %s6 = ssub.s32 1, %s4
  %s7 = scalar_select 0, %s6, %s4
  loop: start=0, step=1, limit=4
  $region2: #{pose_encoder_style_forward.6} parent=0 // loop_pre_header
    _
  $region3: #{pose_encoder_style_forward.6} parent=0 // loop_header
    %s9 = sphi 0, %s13
    %p10 = scmp.ge.s32.totalorder %s9, 4
    %s16 = sphi 0, %s28
    %s17 = sphi 0, %s24
    %s18 = sphi 0, %s16
    %s19 = sphi 0, %s17
    %s20 = sphi 0, %s18
    %s21 = sphi 0, %s19
    %s31 = sphi 0, %s33
    %s34 = sphi 0, %s31
    %s35 = sphi 0, %s34
    %s51 = sphi 0, %s35
    %s55 = sphi 0, %s55
    %s57 = sphi 0, %s55
    %s58 = sphi 0, %s57
    %s72 = sphi 0, %s58
    %s76 = sphi 0, %s76
    %s78 = sphi 0, %s76
    %s79 = sphi 0, %s78
    %s93 = sphi 0, %s79
    %s101 = sphi 0, %s103
    %s104 = sphi 0, %s101
    %s105 = sphi 0, %s104
    %s121 = sphi 0, %s105
  $region4: #{pose_encoder_style_forward.6} parent=0 // loop_header_branch
    %12 = sbr.rel (%p10) target = $region8
  $region5: #{pose_encoder_style_forward.6} parent=0 // loop_body
    %s14 = ssub.s32 %s9, 1
    %s15 = ssub.s32 %s9, 2
    %s22 = sadd.s32 1, %s17
    %p23 = scmp.ge.s32.totalorder %s22, 1
    %s24 = scalar_select %p23, 0, %s22
    %s25 = sadd.s32 1, %s16
    %s26 = scalar_select %p23, %s25, %s16
    %p27 = scmp.ge.s32.totalorder %s26, 2
    %s28 = scalar_select %p27, 0, %s26
    %s29 = ssub.s32 %s16, %s28
    %p30 = scmp.eq.s32.totalorder %s29, 0
    %s32 = sadd.s32 %s31, 1
    %s33 = scalar_select %p30, %s31, %s32
    %p36 = pneg %p30
    %p37 = scmp.eq.s32.totalorder %s9, 1
    %p38 = por %p36, %p37
    %p39 = scmp.ne.s32.totalorder %s31, %s34
    %p40 = scmp.eq.s32.totalorder %s9, 0
    %p41 = por %p39, %p40
    %p42 = scmp.ne.s32.totalorder %s31, %s34
    %p43 = scmp.eq.s32.totalorder %s14, 1
    %p44 = por %p42, %p43
    %p45 = scmp.ne.s32.totalorder %s34, %s35
    %p46 = scmp.eq.s32.totalorder %s14, 0
    %p47 = por %p45, %p46
    %p48 = scmp.ne.s32.totalorder %s34, %s35
    %p49 = scmp.eq.s32.totalorder %s15, 1
    %p50 = por %p48, %p49
    %p52 = scmp.ne.s32.totalorder %s35, %s51
    %p53 = scmp.eq.s32.totalorder %s15, 0
    %p54 = por %p52, %p53
    %s56 = sadd.s32 %s55, 1
    %p59 = scmp.eq.s32.totalorder %s9, 1
    %p60 = scmp.ne.s32.totalorder %s55, %s57
    %p61 = scmp.eq.s32.totalorder %s9, 0
    %p62 = por %p60, %p61
    %p63 = scmp.ne.s32.totalorder %s55, %s57
    %p64 = scmp.eq.s32.totalorder %s14, 1
    %p65 = por %p63, %p64
    %p66 = scmp.ne.s32.totalorder %s57, %s58
    %p67 = scmp.eq.s32.totalorder %s14, 0
    %p68 = por %p66, %p67
    %p69 = scmp.ne.s32.totalorder %s57, %s58
    %p70 = scmp.eq.s32.totalorder %s15, 1
    %p71 = por %p69, %p70
    %p73 = scmp.ne.s32.totalorder %s58, %s72
    %p74 = scmp.eq.s32.totalorder %s15, 0
    %p75 = por %p73, %p74
    %s77 = sadd.s32 %s76, 1
    %p80 = scmp.eq.s32.totalorder %s9, 1
    %p81 = scmp.ne.s32.totalorder %s76, %s78
    %p82 = scmp.eq.s32.totalorder %s9, 0
    %p83 = por %p81, %p82
    %p84 = scmp.ne.s32.totalorder %s76, %s78
    %p85 = scmp.eq.s32.totalorder %s14, 1
    %p86 = por %p84, %p85
    %p87 = scmp.ne.s32.totalorder %s78, %s79
    %p88 = scmp.eq.s32.totalorder %s14, 0
    %p89 = por %p87, %p88
    %p90 = scmp.ne.s32.totalorder %s78, %s79
    %p91 = scmp.eq.s32.totalorder %s15, 1
    %p92 = por %p90, %p91
    %p94 = scmp.ne.s32.totalorder %s79, %s93
    %p95 = scmp.eq.s32.totalorder %s15, 0
    %p96 = por %p94, %p95
    %s97 = ssub.s32 %s16, %s28
    %s98 = ssub.s32 %s17, %s24
    %s99 = sor.u32 %s97, %s98
    %p100 = scmp.eq.s32.totalorder %s99, 0
    %s102 = sadd.s32 %s101, 1
    %s103 = scalar_select %p100, %s101, %s102
    %p106 = pneg %p100
    %p107 = scmp.eq.s32.totalorder %s9, 1
    %p108 = por %p106, %p107
    %p109 = scmp.ne.s32.totalorder %s101, %s104
    %p110 = scmp.eq.s32.totalorder %s9, 0
    %p111 = por %p109, %p110
    %p112 = scmp.ne.s32.totalorder %s101, %s104
    %p113 = scmp.eq.s32.totalorder %s14, 1
    %p114 = por %p112, %p113
    %p115 = scmp.ne.s32.totalorder %s104, %s105
    %p116 = scmp.eq.s32.totalorder %s14, 0
    %p117 = por %p115, %p116
    %p118 = scmp.ne.s32.totalorder %s104, %s105
    %p119 = scmp.eq.s32.totalorder %s15, 1
    %p120 = por %p118, %p119
    %p122 = scmp.ne.s32.totalorder %s105, %s121
    %p123 = scmp.eq.s32.totalorder %s15, 0
    %p124 = por %p122, %p123
    %p125 = scmp.le.s32.totalorder 1, %s9
    %p126 = scmp.lt.s32.totalorder %s9, 3
    %p127 = pnand %p125, %p126
    %p128 = pneg %p127
    // Predicated region
    $region9: #{pose_encoder_style_forward.6} parent=5 // pred_check
      _
    $region10: #{pose_encoder_style_forward.6} parent=5 // pred_check_branch
      %130 = sbr.rel (%p127) target = $region12
    $region11: #{pose_encoder_style_forward.6} parent=5 // pred_region
      %s131 = ssub.s32 %s9, 1
      // Predicated region
      $region13: #{pose_encoder_style_forward.6} parent=11 // pred_check
        %p132 = pneg %p68
      $region14: #{pose_encoder_style_forward.6} parent=11 // pred_check_branch
        %134 = sbr.rel (%p132) target = $region16
      $region15: #{pose_encoder_style_forward.6} parent=11 // pred_region
        _
      $region16: #{pose_encoder_style_forward.6} parent=11 // pred_fallthru
        _
      // Predicated region
      $region17: #{pose_encoder_style_forward.6} parent=11 // pred_check
        %p135 = pneg %p89
      $region18: #{pose_encoder_style_forward.6} parent=11 // pred_check_branch
        %137 = sbr.rel (%p135) target = $region20
      $region19: #{pose_encoder_style_forward.6} parent=11 // pred_region
        _
      $region20: #{pose_encoder_style_forward.6} parent=11 // pred_fallthru
        _
    $region12: #{pose_encoder_style_forward.6} parent=5 // pred_fallthru
      _
    %p138 = scmp.lt.s32.totalorder %s9, 2
    // Predicated region
    $region21: #{pose_encoder_style_forward.6} parent=5 // pred_check
      %p139 = pneg %p138
    $region22: #{pose_encoder_style_forward.6} parent=5 // pred_check_branch
      %141 = sbr.rel (%p139) target = $region24
    $region23: #{pose_encoder_style_forward.6} parent=5 // pred_region
      // Predicated region
      $region25: #{pose_encoder_style_forward.6} parent=23 // pred_check
        %p142 = pneg %p41
      $region26: #{pose_encoder_style_forward.6} parent=23 // pred_check_branch
        %144 = sbr.rel (%p142) target = $region28
      $region27: #{pose_encoder_style_forward.6} parent=23 // pred_region
        %p145 = scmp.lt.s32.totalorder %s16, 1
        %s146 = scalar_select %p145, %s16, 1
        %s147 = smul.addr %s146, 10
        %s148 = smul.addr %s147, 8
        %s149 = scalar_lea.vmem %s0, %s148
      $region28: #{pose_encoder_style_forward.6} parent=23 // pred_fallthru
        _
    $region24: #{pose_encoder_style_forward.6} parent=5 // pred_fallthru
      _
    %p150 = scmp.le.s32.totalorder 1, %s9
    %p151 = scmp.lt.s32.totalorder %s9, 3
    %p152 = pnand %p150, %p151
    %p153 = pneg %p152
    // Predicated region
    $region29: #{pose_encoder_style_forward.6} parent=5 // pred_check
      _
    $region30: #{pose_encoder_style_forward.6} parent=5 // pred_check_branch
      %155 = sbr.rel (%p152) target = $region32
    $region31: #{pose_encoder_style_forward.6} parent=5 // pred_region
      %s156 = ssub.s32 %s9, 1
      %p157 = scmp.lt.s32.totalorder %s18, 1
      %s158 = scalar_select %p157, %s18, 1
      %s159 = smul.addr %s158, 10
      %s160 = smul.addr %s159, 8
      %s161 = scalar_lea.vmem %s0, %s160
      %p162 = pneg %p47
      %p163 = pneg %p44
      %p164 = pneg %p68
      %p165 = pneg %p65
      %p166 = pneg %p89
      %p167 = pneg %p86
      %p168 = pneg %p117
      %p169 = pneg %p114
      %s170 = smul.u32 7, %s19
      %p171 = scmp.lt.s32.totalorder %s18, 1
      %s172 = scalar_select %p171, %s18, 1
      %p173 = scmp.lt.s32.totalorder %s170, 6
      %s174 = scalar_select %p173, %s170, 6
      %s175 = smul.addr %s172, 7
      %s176 = sadd.s32 %s174, %s175
      %s177 = smul.addr %s176, 8
      %s178 = scalar_lea.vmem %s3, %s177
      %p179 = scmp.lt.s32.totalorder %s18, 1
      %s180 = scalar_select %p179, %s18, 1
      %s181 = smul.addr %s180, 10
      %s182 = smul.addr %s181, 8
      %s183 = scalar_lea.vmem %s0, %s182
      %s184 = smul.u32 7, %s19
      %p185 = scmp.lt.s32.totalorder %s18, 1
      %s186 = scalar_select %p185, %s18, 1
      %p187 = scmp.lt.s32.totalorder %s184, 6
      %s188 = scalar_select %p187, %s184, 6
      %s189 = smul.addr %s186, 7
      %s190 = sadd.s32 %s188, %s189
      %s191 = smul.addr %s190, 8
      %s192 = scalar_lea.vmem %s3, %s191
      %s193 = smul.u32 7, %s19
      %s194 = smul.u32 %s19, 56
      %v195 = vld [vmem:[%s2] sm:$0x1]
      %v197 = vlaneseq
      %v198 = vshrl.u32 %v197, 7
      %v199 = vsub.s32 0, %v198
      %v200 = vrot.slane %v195, %v199
      %vm202 = vcmask 261120
      %203 = vst.msk [vmem:[#allocation2] sm:$0xff] %vm202, %v200
      %204 = vst.msk [vmem:[#allocation2 + $0x8] sm:$0xff] %vm202, %v200
      %205 = vst.msk [vmem:[#allocation2 + $0x10] sm:$0xff] %vm202, %v200
      %206 = vst.msk [vmem:[#allocation2 + $0x18] sm:$0xff] %vm202, %v200
      %207 = vst.msk [vmem:[#allocation2 + $0x20] sm:$0xff] %vm202, %v200
      %208 = vst.msk [vmem:[#allocation2 + $0x28] sm:$0xff] %vm202, %v200
      %209 = vst.msk [vmem:[#allocation2 + $0x30] sm:$0xff] %vm202, %v200
      loop: start=0, step=1, limit=25
      $region33: #{pose_encoder_style_forward.6} parent=31 // loop_pre_header
        _
      $region34: #{pose_encoder_style_forward.6} parent=31 // loop_header
        %s211 = sphi 0, %s215
        %p212 = scmp.ge.s32.totalorder %s211, 25
      $region35: #{pose_encoder_style_forward.6} parent=31 // loop_header_branch
        %214 = sbr.rel (%p212) target = $region39
      $region36: #{pose_encoder_style_forward.6} parent=31 // loop_body
        %s216 = sadd.s32 %s194, %s211
        %s217 = scalar_lea.vmem %s183, %s216
        %v218 = vld [vmem:[%s217] sm:$0xff]
        %v219 = vld [vmem:[%s217 + $0x8] sm:$0xff]
        %v220 = vld [vmem:[%s217 + $0x10] sm:$0xff]
        %v221 = vld [vmem:[%s217 + $0x18] sm:$0xff]
        %v222 = vld [vmem:[%s217 + $0x20] sm:$0xff]
        %v223 = vld [vmem:[%s217 + $0x28] sm:$0xff]
        %v224 = vld [vmem:[%s217 + $0x30] sm:$0xff]
        %v225 = vld [vmem:[#allocation2] sm:$0xff]
        %v226 = vld [vmem:[#allocation2 + $0x8] sm:$0xff]
        %v227 = vld [vmem:[#allocation2 + $0x10] sm:$0xff]
        %v228 = vld [vmem:[#allocation2 + $0x18] sm:$0xff]
        %v229 = vld [vmem:[#allocation2 + $0x20] sm:$0xff]
        %v230 = vld [vmem:[#allocation2 + $0x28] sm:$0xff]
        %v231 = vld [vmem:[#allocation2 + $0x30] sm:$0xff]
        %s232 = smul.u32 %s211, 32
        %s233 = scalar_lea.vmem %s1, %s232
        %v234 = vld [vmem:[%s233] sm:$0xff]
        %v235 = vld [vmem:[%s233 + $0x8] sm:$0xff]
        %v236 = vld [vmem:[%s233 + $0x10] sm:$0xff]
        %v237 = vld [vmem:[%s233 + $0x18] sm:$0xff]
        %v239 = vsel %vm202, %v218, 0
        %v242 = vsel %vm202, %v219, 0
        %v245 = vsel %vm202, %v220, 0
        %v248 = vsel %vm202, %v221, 0
        %v251 = vsel %vm202, %v222, 0
        %v254 = vsel %vm202, %v223, 0
        %v257 = vsel %vm202, %v224, 0
        %259 = vmatprep.subr.mxu0 0.0
        %260 = vmatpush1.msra.mxu0 %v234
        %261 = vmatprep.subr.mxu0 0.0
        %262 = vmatpush1.msra.mxu0 %v235
        %263 = vmatprep.subr.mxu0 0.0
        %264 = vmatpush1.msra.mxu0 %v236
        %265 = vmatprep.subr.mxu0 0.0
        %266 = vmatpush1.msra.mxu0 %v237
        %267 = vmatprep.subr.mxu0 0.0
        %268 = vmatpush1.msra.mxu0 0.0
        %269 = vmatprep.subr.mxu0 0.0
        %270 = vmatpush1.msra.mxu0 0.0
        %271 = vmatprep.subr.mxu0 0.0
        %272 = vmatpush1.msra.mxu0 0.0
        %273 = vmatprep.subr.mxu0 0.0
        %274 = vmatpush1.msra.mxu0 0.0
        %275 = vmatprep.subr.mxu0 0.0
        %276 = vmatpush1.msra.mxu0 0.0
        %277 = vmatprep.subr.mxu0 0.0
        %278 = vmatpush1.msra.mxu0 0.0
        %279 = vmatprep.subr.mxu0 0.0
        %280 = vmatpush1.msra.mxu0 0.0
        %281 = vmatprep.subr.mxu0 0.0
        %282 = vmatpush1.msra.mxu0 0.0
        %283 = vmatprep.subr.mxu0 0.0
        %284 = vmatpush1.msra.mxu0 0.0
        %285 = vmatprep.subr.mxu0 0.0
        %286 = vmatpush1.msra.mxu0 0.0
        %287 = vmatprep.subr.mxu0 0.0
        %288 = vmatpush1.msra.mxu0 0.0
        %289 = vmatprep.subr.mxu0 0.0
        %290 = vmatpush1.msra.mxu0 0.0
        %291 = vmatprep.subr.mxu0 0.0
        %292 = vmatpush1.msra.mxu0 0.0
        %293 = vmatprep.subr.mxu0 0.0
        %294 = vmatpush1.msra.mxu0 0.0
        %295 = vmatprep.subr.mxu0 0.0
        %296 = vmatpush1.msra.mxu0 0.0
        %297 = vmatprep.subr.mxu0 0.0
        %298 = vmatpush1.msra.mxu0 0.0
        %299 = vmatprep.subr.mxu0 0.0
        %300 = vmatpush1.msra.mxu0 0.0
        %301 = vmatprep.subr.mxu0 0.0
        %302 = vmatpush1.msra.mxu0 0.0
        %303 = vmatprep.subr.mxu0 0.0
        %304 = vmatpush1.msra.mxu0 0.0
        %305 = vmatprep.subr.mxu0 0.0
        %306 = vmatpush1.msra.mxu0 0.0
        %307 = vmatprep.subr.mxu0 0.0
        %308 = vmatpush1.msra.mxu0 0.0
        %309 = vmatprep.subr.mxu0 0.0
        %310 = vmatpush1.msra.mxu0 0.0
        %311 = vmatprep.subr.mxu0 0.0
        %312 = vmatpush1.msra.mxu0 0.0
        %313 = vmatprep.subr.mxu0 0.0
        %314 = vmatpush1.msra.mxu0 0.0
        %315 = vmatprep.subr.mxu0 0.0
        %316 = vmatpush1.msra.mxu0 0.0
        %317 = vmatprep.subr.mxu0 0.0
        %318 = vmatpush1.msra.mxu0 0.0
        %319 = vmatprep.subr.mxu0 0.0
        %320 = vmatpush1.msra.mxu0 0.0
        %321 = vmatprep.subr.mxu0 0.0
        %322 = vmatpush1.msra.mxu0 0.0
        %323 = vmatprep.mubr.f32.mxu0 0.0
        %324 = vmatmul.mubr.f32.gmra.mrb[0].mxu0 %v239
        %v325 = vpop.f32.mrb[0].mxu0
        %v326 = vadd.f32 0.0, %v325
        %v327 = vpop.f32.mrb[0].mxu0
        %328 = vmatprep.mubr.f32.mxu0 0.0
        %329 = vmatmul.mubr.f32.gmra.mrb[0].mxu0 %v242
        %v330 = vpop.f32.mrb[0].mxu0
        %v331 = vadd.f32 0.0, %v330
        %v332 = vpop.f32.mrb[0].mxu0
        %333 = vmatprep.mubr.f32.mxu0 0.0
        %334 = vmatmul.mubr.f32.gmra.mrb[0].mxu0 %v245
        %v335 = vpop.f32.mrb[0].mxu0
        %v336 = vadd.f32 0.0, %v335
        %v337 = vpop.f32.mrb[0].mxu0
        %338 = vmatprep.mubr.f32.mxu0 0.0
        %339 = vmatmul.mubr.f32.gmra.mrb[0].mxu0 %v248
        %v340 = vpop.f32.mrb[0].mxu0
        %v341 = vadd.f32 0.0, %v340
        %v342 = vpop.f32.mrb[0].mxu0
        %343 = vmatprep.mubr.f32.mxu0 0.0
        %344 = vmatmul.mubr.f32.gmra.mrb[0].mxu0 %v251
        %v345 = vpop.f32.mrb[0].mxu0
        %v346 = vadd.f32 0.0, %v345
        %v347 = vpop.f32.mrb[0].mxu0
        %348 = vmatprep.mubr.f32.mxu0 0.0
        %349 = vmatmul.mubr.f32.gmra.mrb[0].mxu0 %v254
        %v350 = vpop.f32.mrb[0].mxu0
        %v351 = vadd.f32 0.0, %v350
        %v352 = vpop.f32.mrb[0].mxu0
        %353 = vmatprep.mubr.f32.mxu0 0.0
        %354 = vmatmul.mubr.f32.gmra.mrb[0].mxu0 %v257
        %v355 = vpop.f32.mrb[0].mxu0
        %v356 = vadd.f32 0.0, %v355
        %v357 = vpop.f32.mrb[0].mxu0
        %358 = vdwg.mxu0
        %v359 = vadd.f32 %v225, %v326
        %v360 = vadd.f32 %v226, %v331
        %v361 = vadd.f32 %v227, %v336
        %v362 = vadd.f32 %v228, %v341
        %v363 = vadd.f32 %v229, %v346
        %v364 = vadd.f32 %v230, %v351
        %v365 = vadd.f32 %v231, %v356
        %366 = vst.msk [vmem:[#allocation2] sm:$0xff] %vm202, %v359
        %367 = vst.msk [vmem:[#allocation2 + $0x8] sm:$0xff] %vm202, %v360
        %368 = vst.msk [vmem:[#allocation2 + $0x10] sm:$0xff] %vm202, %v361
        %369 = vst.msk [vmem:[#allocation2 + $0x18] sm:$0xff] %vm202, %v362
        %370 = vst.msk [vmem:[#allocation2 + $0x20] sm:$0xff] %vm202, %v363
        %371 = vst.msk [vmem:[#allocation2 + $0x28] sm:$0xff] %vm202, %v364
        %372 = vst.msk [vmem:[#allocation2 + $0x30] sm:$0xff] %vm202, %v365
      $region37: #{pose_encoder_style_forward.6} parent=31 // loop_footer
        %s215 = sadd.s32 1, %s211
      $region38: #{pose_encoder_style_forward.6} parent=31 // loop_footer_branch
        %210 = sbr.rel target = $region34
      $region39: #{pose_encoder_style_forward.6} parent=31 // loop_exit
        _
      %v373 = vld [vmem:[#allocation2] sm:$0xff]
      %v374 = vld [vmem:[#allocation2 + $0x8] sm:$0xff]
      %v375 = vld [vmem:[#allocation2 + $0x10] sm:$0xff]
      %v376 = vld [vmem:[#allocation2 + $0x18] sm:$0xff]
      %v377 = vld [vmem:[#allocation2 + $0x20] sm:$0xff]
      %v378 = vld [vmem:[#allocation2 + $0x28] sm:$0xff]
      %v379 = vld [vmem:[#allocation2 + $0x30] sm:$0xff]
      %v380 = vmax.f32 %v373, 0.0
      %v381 = vmax.f32 %v374, 0.0
      %v382 = vmax.f32 %v375, 0.0
      %v383 = vmax.f32 %v376, 0.0
      %v384 = vmax.f32 %v377, 0.0
      %v385 = vmax.f32 %v378, 0.0
      %v386 = vmax.f32 %v379, 0.0
      %387 = vst.msk [vmem:[%s192] sm:$0xff] %vm202, %v380
      %388 = vst.msk [vmem:[%s192 + $0x8] sm:$0xff] %vm202, %v381
      %389 = vst.msk [vmem:[%s192 + $0x10] sm:$0xff] %vm202, %v382
      %390 = vst.msk [vmem:[%s192 + $0x18] sm:$0xff] %vm202, %v383
      %391 = vst.msk [vmem:[%s192 + $0x20] sm:$0xff] %vm202, %v384
      %392 = vst.msk [vmem:[%s192 + $0x28] sm:$0xff] %vm202, %v385
      %393 = vst.msk [vmem:[%s192 + $0x30] sm:$0xff] %vm202, %v386
      %s394 = smul.u32 7, %s19
      %p395 = scmp.lt.s32.totalorder %s18, 1
      %s396 = scalar_select %p395, %s18, 1
      %p397 = scmp.lt.s32.totalorder %s394, 6
      %s398 = scalar_select %p397, %s394, 6
      %s399 = smul.addr %s396, 7
      %s400 = sadd.s32 %s398, %s399
      %s401 = smul.addr %s400, 8
      %s402 = scalar_lea.vmem %s3, %s401
      // Predicated region
      $region40: #{pose_encoder_style_forward.6} parent=31 // pred_check
        %p403 = pneg %p114
      $region41: #{pose_encoder_style_forward.6} parent=31 // pred_check_branch
        %405 = sbr.rel (%p403) target = $region43
      $region42: #{pose_encoder_style_forward.6} parent=31 // pred_region
        %s406 = smul.u32 7, %s19
      $region43: #{pose_encoder_style_forward.6} parent=31 // pred_fallthru
        _
    $region32: #{pose_encoder_style_forward.6} parent=5 // pred_fallthru
      _
    %p407 = scmp.le.s32.totalorder 2, %s9
    // Predicated region
    $region44: #{pose_encoder_style_forward.6} parent=5 // pred_check
      %p408 = pneg %p407
    $region45: #{pose_encoder_style_forward.6} parent=5 // pred_check_branch
      %410 = sbr.rel (%p408) target = $region47
    $region46: #{pose_encoder_style_forward.6} parent=5 // pred_region
      %s411 = ssub.s32 %s9, 2
      // Predicated region
      $region48: #{pose_encoder_style_forward.6} parent=46 // pred_check
        %p412 = pneg %p120
      $region49: #{pose_encoder_style_forward.6} parent=46 // pred_check_branch
        %414 = sbr.rel (%p412) target = $region51
      $region50: #{pose_encoder_style_forward.6} parent=46 // pred_region
        %s415 = smul.u32 7, %s21
        %p416 = scmp.lt.s32.totalorder %s20, 1
        %s417 = scalar_select %p416, %s20, 1
        %p418 = scmp.lt.s32.totalorder %s415, 6
        %s419 = scalar_select %p418, %s415, 6
        %s420 = smul.addr %s417, 7
        %s421 = sadd.s32 %s419, %s420
        %s422 = smul.addr %s421, 8
        %s423 = scalar_lea.vmem %s3, %s422
      $region51: #{pose_encoder_style_forward.6} parent=46 // pred_fallthru
        _
    $region47: #{pose_encoder_style_forward.6} parent=5 // pred_fallthru
      _
  $region6: #{pose_encoder_style_forward.6} parent=0 // loop_footer
    %s13 = sadd.s32 1, %s9
  $region7: #{pose_encoder_style_forward.6} parent=0 // loop_footer_branch
    %8 = sbr.rel target = $region3
  $region8: #{pose_encoder_style_forward.6} parent=0 // loop_exit
    _

// kernel: pose_encoder_style_forward.7
$region0: #{pose_encoder_style_forward.7}
  #allocation0 [shape = 'u32[]', space=smem, size = 0x4, offset = 0x4, fixed_abs, tag = 'smem constant byte address 0x4 - core index']
  #allocation1 [shape = 'u32[144,128]{1,0:T(1,128)}', space=vmem, size = 0x12000, scoped, tag = 'internal scratch']
  #allocation2 [shape = 'f32[16,32]{1,0:T(8,128)}', space=vmem, size = 0x2000, scoped, tag = 'scratch operand']
  %s0 = inlined_call_operand.vmem [shape: f32[2,40,32], index: 0, kind: input, shape index: {}]
  %s1 = inlined_call_operand.vmem [shape: f32[25,32,32], index: 1, kind: input, shape index: {}]
  %s2 = inlined_call_operand.vmem [shape: f32[1,32], index: 2, kind: input, shape index: {}]
  %s3 = inlined_call_operand.vmem [shape: f32[2,16,32], index: 3, kind: output, shape index: {}]
  %s4 = sld [smem:[#allocation0]]
  $region52: #{pose_encoder_style_forward.7} parent=0
    _
  %s6 = ssub.s32 1, %s4
  %s7 = scalar_select 0, %s6, %s4
  loop: start=0, step=1, limit=4
  $region2: #{pose_encoder_style_forward.7} parent=0 // loop_pre_header
    _
  $region3: #{pose_encoder_style_forward.7} parent=0 // loop_header
    %s9 = sphi 0, %s13
    %p10 = scmp.ge.s32.totalorder %s9, 4
    %s16 = sphi 0, %s28
    %s17 = sphi 0, %s24
    %s18 = sphi 0, %s16
    %s19 = sphi 0, %s17
    %s20 = sphi 0, %s18
    %s21 = sphi 0, %s19
    %s31 = sphi 0, %s33
    %s34 = sphi 0, %s31
    %s35 = sphi 0, %s34
    %s51 = sphi 0, %s35
    %s55 = sphi 0, %s55
    %s57 = sphi 0, %s55
    %s58 = sphi 0, %s57
    %s72 = sphi 0, %s58
    %s76 = sphi 0, %s76
    %s78 = sphi 0, %s76
    %s79 = sphi 0, %s78
    %s93 = sphi 0, %s79
    %s101 = sphi 0, %s103
    %s104 = sphi 0, %s101
    %s105 = sphi 0, %s104
    %s121 = sphi 0, %s105
  $region4: #{pose_encoder_style_forward.7} parent=0 // loop_header_branch
    %12 = sbr.rel (%p10) target = $region8
  $region5: #{pose_encoder_style_forward.7} parent=0 // loop_body
    %s14 = ssub.s32 %s9, 1
    %s15 = ssub.s32 %s9, 2
    %s22 = sadd.s32 1, %s17
    %p23 = scmp.ge.s32.totalorder %s22, 1
    %s24 = scalar_select %p23, 0, %s22
    %s25 = sadd.s32 1, %s16
    %s26 = scalar_select %p23, %s25, %s16
    %p27 = scmp.ge.s32.totalorder %s26, 2
    %s28 = scalar_select %p27, 0, %s26
    %s29 = ssub.s32 %s16, %s28
    %p30 = scmp.eq.s32.totalorder %s29, 0
    %s32 = sadd.s32 %s31, 1
    %s33 = scalar_select %p30, %s31, %s32
    %p36 = pneg %p30
    %p37 = scmp.eq.s32.totalorder %s9, 1
    %p38 = por %p36, %p37
    %p39 = scmp.ne.s32.totalorder %s31, %s34
    %p40 = scmp.eq.s32.totalorder %s9, 0
    %p41 = por %p39, %p40
    %p42 = scmp.ne.s32.totalorder %s31, %s34
    %p43 = scmp.eq.s32.totalorder %s14, 1
    %p44 = por %p42, %p43
    %p45 = scmp.ne.s32.totalorder %s34, %s35
    %p46 = scmp.eq.s32.totalorder %s14, 0
    %p47 = por %p45, %p46
    %p48 = scmp.ne.s32.totalorder %s34, %s35
    %p49 = scmp.eq.s32.totalorder %s15, 1
    %p50 = por %p48, %p49
    %p52 = scmp.ne.s32.totalorder %s35, %s51
    %p53 = scmp.eq.s32.totalorder %s15, 0
    %p54 = por %p52, %p53
    %s56 = sadd.s32 %s55, 1
    %p59 = scmp.eq.s32.totalorder %s9, 1
    %p60 = scmp.ne.s32.totalorder %s55, %s57
    %p61 = scmp.eq.s32.totalorder %s9, 0
    %p62 = por %p60, %p61
    %p63 = scmp.ne.s32.totalorder %s55, %s57
    %p64 = scmp.eq.s32.totalorder %s14, 1
    %p65 = por %p63, %p64
    %p66 = scmp.ne.s32.totalorder %s57, %s58
    %p67 = scmp.eq.s32.totalorder %s14, 0
    %p68 = por %p66, %p67
    %p69 = scmp.ne.s32.totalorder %s57, %s58
    %p70 = scmp.eq.s32.totalorder %s15, 1
    %p71 = por %p69, %p70
    %p73 = scmp.ne.s32.totalorder %s58, %s72
    %p74 = scmp.eq.s32.totalorder %s15, 0
    %p75 = por %p73, %p74
    %s77 = sadd.s32 %s76, 1
    %p80 = scmp.eq.s32.totalorder %s9, 1
    %p81 = scmp.ne.s32.totalorder %s76, %s78
    %p82 = scmp.eq.s32.totalorder %s9, 0
    %p83 = por %p81, %p82
    %p84 = scmp.ne.s32.totalorder %s76, %s78
    %p85 = scmp.eq.s32.totalorder %s14, 1
    %p86 = por %p84, %p85
    %p87 = scmp.ne.s32.totalorder %s78, %s79
    %p88 = scmp.eq.s32.totalorder %s14, 0
    %p89 = por %p87, %p88
    %p90 = scmp.ne.s32.totalorder %s78, %s79
    %p91 = scmp.eq.s32.totalorder %s15, 1
    %p92 = por %p90, %p91
    %p94 = scmp.ne.s32.totalorder %s79, %s93
    %p95 = scmp.eq.s32.totalorder %s15, 0
    %p96 = por %p94, %p95
    %s97 = ssub.s32 %s16, %s28
    %s98 = ssub.s32 %s17, %s24
    %s99 = sor.u32 %s97, %s98
    %p100 = scmp.eq.s32.totalorder %s99, 0
    %s102 = sadd.s32 %s101, 1
    %s103 = scalar_select %p100, %s101, %s102
    %p106 = pneg %p100
    %p107 = scmp.eq.s32.totalorder %s9, 1
    %p108 = por %p106, %p107
    %p109 = scmp.ne.s32.totalorder %s101, %s104
    %p110 = scmp.eq.s32.totalorder %s9, 0
    %p111 = por %p109, %p110
    %p112 = scmp.ne.s32.totalorder %s101, %s104
    %p113 = scmp.eq.s32.totalorder %s14, 1
    %p114 = por %p112, %p113
    %p115 = scmp.ne.s32.totalorder %s104, %s105
    %p116 = scmp.eq.s32.totalorder %s14, 0
    %p117 = por %p115, %p116
    %p118 = scmp.ne.s32.totalorder %s104, %s105
    %p119 = scmp.eq.s32.totalorder %s15, 1
    %p120 = por %p118, %p119
    %p122 = scmp.ne.s32.totalorder %s105, %s121
    %p123 = scmp.eq.s32.totalorder %s15, 0
    %p124 = por %p122, %p123
    %p125 = scmp.le.s32.totalorder 1, %s9
    %p126 = scmp.lt.s32.totalorder %s9, 3
    %p127 = pnand %p125, %p126
    %p128 = pneg %p127
    // Predicated region
    $region9: #{pose_encoder_style_forward.7} parent=5 // pred_check
      _
    $region10: #{pose_encoder_style_forward.7} parent=5 // pred_check_branch
      %130 = sbr.rel (%p127) target = $region12
    $region11: #{pose_encoder_style_forward.7} parent=5 // pred_region
      %s131 = ssub.s32 %s9, 1
      // Predicated region
      $region13: #{pose_encoder_style_forward.7} parent=11 // pred_check
        %p132 = pneg %p68
      $region14: #{pose_encoder_style_forward.7} parent=11 // pred_check_branch
        %134 = sbr.rel (%p132) target = $region16
      $region15: #{pose_encoder_style_forward.7} parent=11 // pred_region
        _
      $region16: #{pose_encoder_style_forward.7} parent=11 // pred_fallthru
        _
      // Predicated region
      $region17: #{pose_encoder_style_forward.7} parent=11 // pred_check
        %p135 = pneg %p89
      $region18: #{pose_encoder_style_forward.7} parent=11 // pred_check_branch
        %137 = sbr.rel (%p135) target = $region20
      $region19: #{pose_encoder_style_forward.7} parent=11 // pred_region
        _
      $region20: #{pose_encoder_style_forward.7} parent=11 // pred_fallthru
        _
    $region12: #{pose_encoder_style_forward.7} parent=5 // pred_fallthru
      _
    %p138 = scmp.lt.s32.totalorder %s9, 2
    // Predicated region
    $region21: #{pose_encoder_style_forward.7} parent=5 // pred_check
      %p139 = pneg %p138
    $region22: #{pose_encoder_style_forward.7} parent=5 // pred_check_branch
      %141 = sbr.rel (%p139) target = $region24
    $region23: #{pose_encoder_style_forward.7} parent=5 // pred_region
      // Predicated region
      $region25: #{pose_encoder_style_forward.7} parent=23 // pred_check
        %p142 = pneg %p41
      $region26: #{pose_encoder_style_forward.7} parent=23 // pred_check_branch
        %144 = sbr.rel (%p142) target = $region28
      $region27: #{pose_encoder_style_forward.7} parent=23 // pred_region
        %p145 = scmp.lt.s32.totalorder %s16, 1
        %s146 = scalar_select %p145, %s16, 1
        %s147 = smul.addr %s146, 5
        %s148 = smul.addr %s147, 8
        %s149 = scalar_lea.vmem %s0, %s148
      $region28: #{pose_encoder_style_forward.7} parent=23 // pred_fallthru
        _
    $region24: #{pose_encoder_style_forward.7} parent=5 // pred_fallthru
      _
    %p150 = scmp.le.s32.totalorder 1, %s9
    %p151 = scmp.lt.s32.totalorder %s9, 3
    %p152 = pnand %p150, %p151
    %p153 = pneg %p152
    // Predicated region
    $region29: #{pose_encoder_style_forward.7} parent=5 // pred_check
      _
    $region30: #{pose_encoder_style_forward.7} parent=5 // pred_check_branch
      %155 = sbr.rel (%p152) target = $region32
    $region31: #{pose_encoder_style_forward.7} parent=5 // pred_region
      %s156 = ssub.s32 %s9, 1
      %p157 = scmp.lt.s32.totalorder %s18, 1
      %s158 = scalar_select %p157, %s18, 1
      %s159 = smul.addr %s158, 5
      %s160 = smul.addr %s159, 8
      %s161 = scalar_lea.vmem %s0, %s160
      %p162 = pneg %p47
      %p163 = pneg %p44
      %p164 = pneg %p68
      %p165 = pneg %p65
      %p166 = pneg %p89
      %p167 = pneg %p86
      %p168 = pneg %p117
      %p169 = pneg %p114
      %s170 = smul.u32 2, %s19
      %p171 = scmp.lt.s32.totalorder %s18, 1
      %s172 = scalar_select %p171, %s18, 1
      %p173 = scmp.lt.s32.totalorder %s170, 1
      %s174 = scalar_select %p173, %s170, 1
      %s175 = smul.addr %s172, 2
      %s176 = sadd.s32 %s174, %s175
      %s177 = smul.addr %s176, 8
      %s178 = scalar_lea.vmem %s3, %s177
      %p179 = scmp.lt.s32.totalorder %s18, 1
      %s180 = scalar_select %p179, %s18, 1
      %s181 = smul.addr %s180, 5
      %s182 = smul.addr %s181, 8
      %s183 = scalar_lea.vmem %s0, %s182
      %s184 = smul.u32 2, %s19
      %p185 = scmp.lt.s32.totalorder %s18, 1
      %s186 = scalar_select %p185, %s18, 1
      %p187 = scmp.lt.s32.totalorder %s184, 1
      %s188 = scalar_select %p187, %s184, 1
      %s189 = smul.addr %s186, 2
      %s190 = sadd.s32 %s188, %s189
      %s191 = smul.addr %s190, 8
      %s192 = scalar_lea.vmem %s3, %s191
      %s193 = smul.u32 2, %s19
      %s194 = smul.u32 %s19, 16
      %v195 = vld [vmem:[%s2] sm:$0x1]
      %v197 = vlaneseq
      %v198 = vshrl.u32 %v197, 7
      %v199 = vsub.s32 0, %v198
      %v200 = vrot.slane %v195, %v199
      %vm202 = vcmask 261120
      %203 = vst.msk [vmem:[#allocation2] sm:$0xff] %vm202, %v200
      %204 = vst.msk [vmem:[#allocation2 + $0x8] sm:$0xff] %vm202, %v200
      loop: start=0, step=1, limit=25
      $region33: #{pose_encoder_style_forward.7} parent=31 // loop_pre_header
        _
      $region34: #{pose_encoder_style_forward.7} parent=31 // loop_header
        %s206 = sphi 0, %s210
        %p207 = scmp.ge.s32.totalorder %s206, 25
      $region35: #{pose_encoder_style_forward.7} parent=31 // loop_header_branch
        %209 = sbr.rel (%p207) target = $region39
      $region36: #{pose_encoder_style_forward.7} parent=31 // loop_body
        %s211 = sadd.s32 %s194, %s206
        %s212 = scalar_lea.vmem %s183, %s211
        %v213 = vld [vmem:[%s212] sm:$0xff]
        %v214 = vld [vmem:[%s212 + $0x8] sm:$0xff]
        %v215 = vld [vmem:[#allocation2] sm:$0xff]
        %v216 = vld [vmem:[#allocation2 + $0x8] sm:$0xff]
        %s217 = smul.u32 %s206, 32
        %s218 = scalar_lea.vmem %s1, %s217
        %v219 = vld [vmem:[%s218] sm:$0xff]
        %v220 = vld [vmem:[%s218 + $0x8] sm:$0xff]
        %v221 = vld [vmem:[%s218 + $0x10] sm:$0xff]
        %v222 = vld [vmem:[%s218 + $0x18] sm:$0xff]
        %v224 = vsel %vm202, %v213, 0
        %v227 = vsel %vm202, %v214, 0
        %229 = vmatprep.subr.mxu0 0.0
        %230 = vmatpush1.msra.mxu0 %v219
        %231 = vmatprep.subr.mxu0 0.0
        %232 = vmatpush1.msra.mxu0 %v220
        %233 = vmatprep.subr.mxu0 0.0
        %234 = vmatpush1.msra.mxu0 %v221
        %235 = vmatprep.subr.mxu0 0.0
        %236 = vmatpush1.msra.mxu0 %v222
        %237 = vmatprep.subr.mxu0 0.0
        %238 = vmatpush1.msra.mxu0 0.0
        %239 = vmatprep.subr.mxu0 0.0
        %240 = vmatpush1.msra.mxu0 0.0
        %241 = vmatprep.subr.mxu0 0.0
        %242 = vmatpush1.msra.mxu0 0.0
        %243 = vmatprep.subr.mxu0 0.0
        %244 = vmatpush1.msra.mxu0 0.0
        %245 = vmatprep.subr.mxu0 0.0
        %246 = vmatpush1.msra.mxu0 0.0
        %247 = vmatprep.subr.mxu0 0.0
        %248 = vmatpush1.msra.mxu0 0.0
        %249 = vmatprep.subr.mxu0 0.0
        %250 = vmatpush1.msra.mxu0 0.0
        %251 = vmatprep.subr.mxu0 0.0
        %252 = vmatpush1.msra.mxu0 0.0
        %253 = vmatprep.subr.mxu0 0.0
        %254 = vmatpush1.msra.mxu0 0.0
        %255 = vmatprep.subr.mxu0 0.0
        %256 = vmatpush1.msra.mxu0 0.0
        %257 = vmatprep.subr.mxu0 0.0
        %258 = vmatpush1.msra.mxu0 0.0
        %259 = vmatprep.subr.mxu0 0.0
        %260 = vmatpush1.msra.mxu0 0.0
        %261 = vmatprep.subr.mxu0 0.0
        %262 = vmatpush1.msra.mxu0 0.0
        %263 = vmatprep.subr.mxu0 0.0
        %264 = vmatpush1.msra.mxu0 0.0
        %265 = vmatprep.subr.mxu0 0.0
        %266 = vmatpush1.msra.mxu0 0.0
        %267 = vmatprep.subr.mxu0 0.0
        %268 = vmatpush1.msra.mxu0 0.0
        %269 = vmatprep.subr.mxu0 0.0
        %270 = vmatpush1.msra.mxu0 0.0
        %271 = vmatprep.subr.mxu0 0.0
        %272 = vmatpush1.msra.mxu0 0.0
        %273 = vmatprep.subr.mxu0 0.0
        %274 = vmatpush1.msra.mxu0 0.0
        %275 = vmatprep.subr.mxu0 0.0
        %276 = vmatpush1.msra.mxu0 0.0
        %277 = vmatprep.subr.mxu0 0.0
        %278 = vmatpush1.msra.mxu0 0.0
        %279 = vmatprep.subr.mxu0 0.0
        %280 = vmatpush1.msra.mxu0 0.0
        %281 = vmatprep.subr.mxu0 0.0
        %282 = vmatpush1.msra.mxu0 0.0
        %283 = vmatprep.subr.mxu0 0.0
        %284 = vmatpush1.msra.mxu0 0.0
        %285 = vmatprep.subr.mxu0 0.0
        %286 = vmatpush1.msra.mxu0 0.0
        %287 = vmatprep.subr.mxu0 0.0
        %288 = vmatpush1.msra.mxu0 0.0
        %289 = vmatprep.subr.mxu0 0.0
        %290 = vmatpush1.msra.mxu0 0.0
        %291 = vmatprep.subr.mxu0 0.0
        %292 = vmatpush1.msra.mxu0 0.0
        %293 = vmatprep.mubr.f32.mxu0 0.0
        %294 = vmatmul.mubr.f32.gmra.mrb[0].mxu0 %v224
        %v295 = vpop.f32.mrb[0].mxu0
        %v296 = vadd.f32 0.0, %v295
        %v297 = vpop.f32.mrb[0].mxu0
        %298 = vmatprep.mubr.f32.mxu0 0.0
        %299 = vmatmul.mubr.f32.gmra.mrb[0].mxu0 %v227
        %v300 = vpop.f32.mrb[0].mxu0
        %v301 = vadd.f32 0.0, %v300
        %v302 = vpop.f32.mrb[0].mxu0
        %303 = vdwg.mxu0
        %v304 = vadd.f32 %v215, %v296
        %v305 = vadd.f32 %v216, %v301
        %306 = vst.msk [vmem:[#allocation2] sm:$0xff] %vm202, %v304
        %307 = vst.msk [vmem:[#allocation2 + $0x8] sm:$0xff] %vm202, %v305
      $region37: #{pose_encoder_style_forward.7} parent=31 // loop_footer
        %s210 = sadd.s32 1, %s206
      $region38: #{pose_encoder_style_forward.7} parent=31 // loop_footer_branch
        %205 = sbr.rel target = $region34
      $region39: #{pose_encoder_style_forward.7} parent=31 // loop_exit
        _
      %v308 = vld [vmem:[#allocation2] sm:$0xff]
      %v309 = vld [vmem:[#allocation2 + $0x8] sm:$0xff]
      %v310 = vmax.f32 %v308, 0.0
      %v311 = vmax.f32 %v309, 0.0
      %312 = vst.msk [vmem:[%s192] sm:$0xff] %vm202, %v310
      %313 = vst.msk [vmem:[%s192 + $0x8] sm:$0xff] %vm202, %v311
      %s314 = smul.u32 2, %s19
      %p315 = scmp.lt.s32.totalorder %s18, 1
      %s316 = scalar_select %p315, %s18, 1
      %p317 = scmp.lt.s32.totalorder %s314, 1
      %s318 = scalar_select %p317, %s314, 1
      %s319 = smul.addr %s316, 2
      %s320 = sadd.s32 %s318, %s319
      %s321 = smul.addr %s320, 8
      %s322 = scalar_lea.vmem %s3, %s321
      // Predicated region
      $region40: #{pose_encoder_style_forward.7} parent=31 // pred_check
        %p323 = pneg %p114
      $region41: #{pose_encoder_style_forward.7} parent=31 // pred_check_branch
        %325 = sbr.rel (%p323) target = $region43
      $region42: #{pose_encoder_style_forward.7} parent=31 // pred_region
        %s326 = smul.u32 2, %s19
      $region43: #{pose_encoder_style_forward.7} parent=31 // pred_fallthru
        _
    $region32: #{pose_encoder_style_forward.7} parent=5 // pred_fallthru
      _
    %p327 = scmp.le.s32.totalorder 2, %s9
    // Predicated region
    $region44: #{pose_encoder_style_forward.7} parent=5 // pred_check
      %p328 = pneg %p327
    $region45: #{pose_encoder_style_forward.7} parent=5 // pred_check_branch
      %330 = sbr.rel (%p328) target = $region47
    $region46: #{pose_encoder_style_forward.7} parent=5 // pred_region
      %s331 = ssub.s32 %s9, 2
      // Predicated region
      $region48: #{pose_encoder_style_forward.7} parent=46 // pred_check
        %p332 = pneg %p120
      $region49: #{pose_encoder_style_forward.7} parent=46 // pred_check_branch
        %334 = sbr.rel (%p332) target = $region51
      $region50: #{pose_encoder_style_forward.7} parent=46 // pred_region
        %s335 = smul.u32 2, %s21
        %p336 = scmp.lt.s32.totalorder %s20, 1
        %s337 = scalar_select %p336, %s20, 1
        %p338 = scmp.lt.s32.totalorder %s335, 1
        %s339 = scalar_select %p338, %s335, 1
        %s340 = smul.addr %s337, 2
        %s341 = sadd.s32 %s339, %s340
        %s342 = smul.addr %s341, 8
        %s343 = scalar_lea.vmem %s3, %s342
      $region51: #{pose_encoder_style_forward.7} parent=46 // pred_fallthru
        _
    $region47: #{pose_encoder_style_forward.7} parent=5 // pred_fallthru
      _
  $region6: #{pose_encoder_style_forward.7} parent=0 // loop_footer
    %s13 = sadd.s32 1, %s9
  $region7: #{pose_encoder_style_forward.7} parent=0 // loop_footer_branch
    %8 = sbr.rel target = $region3
  $region8: #{pose_encoder_style_forward.7} parent=0 // loop_exit
    _

</llo_original>
